<compile_context>
chip_gen: v5e
topology: v5e:2x2
jax: 0.10.0
libtpu: 0.0.40
codegen_flags: <defaults>
</compile_context>

<pallas_src>
import functools

import jax
import jax.numpy as jnp
import numpy as np
from jax.experimental import pallas as pl
from jax.experimental.pallas import tpu as pltpu

_STAT_LANES = 128  # lane-dense stats row: lane 0 = sum, lane 1 = sum of squares


def _round_up(x, m):
    return (x + m - 1) // m * m


@functools.lru_cache(maxsize=None)
def _vmem_limit_bytes():
    """Generation-aware VMEM budget with headroom for double-buffered windows."""
    cap = 64 * 1024 * 1024
    try:
        cap = int(getattr(pltpu.get_tpu_info(), "vmem_capacity_bytes", cap))
    except Exception:
        pass
    return int(max(32 * 1024 * 1024,
                   min(cap - 16 * 1024 * 1024, 112 * 1024 * 1024)))


# ----------------------------------------------------------------------------
# Kernel A: [optional prev-BN affine fold] -> 3x3 dilated conv -> bias -> ReLU
#           + lane-dense per-channel (sum, sumsq) for the following BN.
# PF layout, one batch element per grid step, per-tap roll + accumulating dot.
# ----------------------------------------------------------------------------
def _conv_relu_stats_kernel(*refs, shifts, fold_bn, compute_dtype):
    if fold_bn:
        x_ref, m_ref, w_ref, b_ref, sc_ref, sh_ref, y_ref, st_ref = refs
    else:
        x_ref, m_ref, w_ref, b_ref, y_ref, st_ref = refs
        sc_ref = sh_ref = None

    mask = m_ref[...]                                   # (1, LPpad) f32, 1 on valid px

    if fold_bn:
        # Fold the previous layer's BatchNorm affine into this conv's input
        # read; the mask keeps the halo / dead lanes exactly zero.
        f = x_ref[0].astype(jnp.float32)
        f = f * sc_ref[...] + sh_ref[...] * mask
        f = f.astype(compute_dtype)
    else:
        f = x_ref[0]                                    # (Cin, LPpad), already zero halo
        if f.dtype != compute_dtype:
            f = f.astype(compute_dtype)

    # 9 per-tap accumulating MXU dots.  Each tap's shifted image comes from a
    # cyclic lane rotation (XLU); wrapped values only land at halo/dead output
    # positions, which are re-zeroed by the mask below.
    acc = None
    for t, s in enumerate(shifts):
        shifted = f if s == 0 else pltpu.roll(f, shift=s, axis=1)
        part = jnp.dot(w_ref[t], shifted,               # (Cout,Cin)@(Cin,LPpad)
                       preferred_element_type=jnp.float32)
        acc = part if acc is None else acc + part

    acc = jnp.maximum(acc + b_ref[...], 0.0) * mask     # bias + ReLU, re-zero halo/dead

    y_store = acc.astype(y_ref.dtype)
    y_ref[0] = y_store

    # Statistics over exactly the values the next stage will consume.
    acc_s = acc if y_ref.dtype == jnp.float32 else y_store.astype(jnp.float32)
    s1 = jnp.sum(acc_s, axis=1, keepdims=True)          # (Cout, 1)
    s2 = jnp.sum(acc_s * acc_s, axis=1, keepdims=True)  # (Cout, 1)
    pad = jnp.zeros((s1.shape[0], st_ref.shape[-1] - 2), jnp.float32)
    st_ref[0] = jnp.concatenate([s1, s2, pad], axis=1)  # lane-dense (Cout, 128)


def _conv_relu_stats(x_pf, mask, w_taps, bias, *, d, H, W, Wp, LPpad,
                     compute_dtype, in_scale=None, in_shift=None):
    N, Cin, _ = x_pf.shape
    Cout = w_taps.shape[1]
    # flat-index offset of tap (ky, kx) relative to the output pixel, and the
    # equivalent cyclic roll amount (out[p] = f[p + delta]  =>  roll by -delta).
    taps = tuple((ky - 1) * d * Wp + (kx - 1) * d
                 for ky in range(3) for kx in range(3))
    shifts = tuple(int((-t) % LPpad) for t in taps)
    fold = in_scale is not None

    kern = functools.partial(_conv_relu_stats_kernel, shifts=shifts,
                             fold_bn=fold, compute_dtype=compute_dtype)

    in_specs = [
        pl.BlockSpec((1, Cin, LPpad), lambda n: (n, 0, 0)),
        pl.BlockSpec((1, LPpad), lambda n: (0, 0)),
        pl.BlockSpec((9, Cout, Cin), lambda n: (0, 0, 0)),
        pl.BlockSpec((Cout, 1), lambda n: (0, 0)),
    ]
    args = [x_pf, mask, w_taps.astype(compute_dtype), bias.reshape(Cout, 1)]
    if fold:
        in_specs += [pl.BlockSpec((Cin, 1), lambda n: (0, 0)),
                     pl.BlockSpec((Cin, 1), lambda n: (0, 0))]
        args += [in_scale, in_shift]

    return pl.pallas_call(
        kern,
        out_shape=(jax.ShapeDtypeStruct((N, Cout, LPpad), compute_dtype),
                   jax.ShapeDtypeStruct((N, Cout, _STAT_LANES), jnp.float32)),
        grid=(N,),
        in_specs=in_specs,
        out_specs=(pl.BlockSpec((1, Cout, LPpad), lambda n: (n, 0, 0)),
                   pl.BlockSpec((1, Cout, _STAT_LANES), lambda n: (n, 0, 0))),
        compiler_params=pltpu.CompilerParams(
            dimension_semantics=("parallel",),
            vmem_limit_bytes=_vmem_limit_bytes()),
    )(*args)


# ----------------------------------------------------------------------------
# Kernel B: apply the last BN affine and un-pad PF -> dense NCHW output.
# ----------------------------------------------------------------------------
def _bn_apply_unpad_kernel(y_ref, sc_ref, sh_ref, o_ref, *, d, H, W, Wp):
    y = y_ref[0].astype(jnp.float32) * sc_ref[...] + sh_ref[...]   # (C, LPpad)
    y = y.astype(o_ref.dtype)
    # TODO(synk): row-tile this loop (grid axis over H) for very large images.
    for h in range(H):
        start = (h + d) * Wp + d
        o_ref[0, :, h, :] = y[:, start:start + W]


def _bn_apply_unpad(y_pf, scale, shift, *, d, H, W, Wp, out_dtype):
    N, C, LPpad = y_pf.shape
    kern = functools.partial(_bn_apply_unpad_kernel, d=d, H=H, W=W, Wp=Wp)
    return pl.pallas_call(
        kern,
        out_shape=jax.ShapeDtypeStruct((N, C, H, W), out_dtype),
        grid=(N,),
        in_specs=[
            pl.BlockSpec((1, C, LPpad), lambda n: (n, 0, 0)),
            pl.BlockSpec((C, 1), lambda n: (0, 0)),
            pl.BlockSpec((C, 1), lambda n: (0, 0)),
        ],
        out_specs=pl.BlockSpec((1, C, H, W), lambda n: (n, 0, 0, 0)),
        compiler_params=pltpu.CompilerParams(
            dimension_semantics=("parallel",),
            vmem_limit_bytes=_vmem_limit_bytes()),
    )(y_pf, scale, shift)


# ----------------------------------------------------------------------------
# BN (training-mode) affine from the kernel-emitted per-channel sums.
# ----------------------------------------------------------------------------
def _bn_affine(stats, gamma, beta, count, eps):
    tot = jnp.sum(stats, axis=0)                          # (Cout, 128)
    mean = tot[:, 0] / count
    var = jnp.maximum(tot[:, 1] / count - mean * mean, 0.0)   # biased variance
    scale = gamma / jnp.sqrt(var + eps)
    shift = beta - mean * scale
    return (scale.reshape(-1, 1).astype(jnp.float32),
            shift.reshape(-1, 1).astype(jnp.float32))


# ----------------------------------------------------------------------------
# Module forward:  relu(conv1) -> bn1 -> relu(conv2) -> bn2   (all fused)
# ----------------------------------------------------------------------------
def double_conv_with_bn(x_nchw, params, dilation_rate=1,
                        compute_dtype=jnp.float32, eps=1e-5):
    N, Cin, H, W = x_nchw.shape
    Cout = params["w1_taps"].shape[1]
    d = int(dilation_rate)
    Hp, Wp = H + 2 * d, W + 2 * d
    LP = Hp * Wp
    LPpad = _round_up(LP, 128)                            # lane-dense flat length
    count = N * H * W

    # Only the raw module input is converted to PF layout; intermediates are
    # produced directly in PF layout by the conv kernel (no per-conv pad).
    x_p = jnp.pad(x_nchw, ((0, 0), (0, 0), (d, d), (d, d))).reshape(N, Cin, LP)
    x_pf = jnp.pad(x_p, ((0, 0), (0, 0), (0, LPpad - LP))).astype(compute_dtype)

    m = np.zeros((Hp, Wp), np.float32)
    m[d:d + H, d:d + W] = 1.0
    mask = jnp.asarray(np.pad(m.reshape(-1), (0, LPpad - LP)).reshape(1, LPpad))

    # conv1 + ReLU (+ BN1 statistics); no input affine fold (identity).
    y1_pf, st1 = _conv_relu_stats(
        x_pf, mask, params["w1_taps"], params["b1"],
        d=d, H=H, W=W, Wp=Wp, LPpad=LPpad, compute_dtype=compute_dtype)
    scale1, shift1 = _bn_affine(st1, params["g1"], params["beta1"], count, eps)

    # BN1 folded into conv2's input read; conv2 + ReLU (+ BN2 statistics).
    y2_pf, st2 = _conv_relu_stats(
        y1_pf, mask, params["w2_taps"], params["b2"],
        d=d, H=H, W=W, Wp=Wp, LPpad=LPpad, compute_dtype=compute_dtype,
        in_scale=scale1, in_shift=shift1)
    scale2, shift2 = _bn_affine(st2, params["g2"], params["beta2"], count, eps)

    # BN2 applied while un-padding PF -> dense NCHW.
    return _bn_apply_unpad(y2_pf, scale2, shift2, d=d, H=H, W=W, Wp=Wp,
                           out_dtype=x_nchw.dtype)


# ----------------------------------------------------------------------------
# Deterministic parameter init (matches the module's __init__ shapes/schemes)
# ----------------------------------------------------------------------------
def init_params(key, in_channels, filters):
    k1, k2, k3, k4 = jax.random.split(key, 4)

    def kaiming_uniform_conv(k, cout, cin):
        fan_in = cin * 9
        bound = float(np.sqrt(6.0 / fan_in))              # gain=sqrt(2), relu
        return jax.random.uniform(k, (cout, cin, 3, 3), jnp.float32,
                                  -bound, bound)

    def conv_bias(k, cout, cin):
        bound = 1.0 / float(np.sqrt(cin * 9))
        return jax.random.uniform(k, (cout,), jnp.float32, -bound, bound)

    def to_taps(w_oihw):
        # OIHW -> (9, Cout, Cin) with tap index t = ky*3 + kx.
        cout, cin = w_oihw.shape[0], w_oihw.shape[1]
        return jnp.transpose(w_oihw, (2, 3, 0, 1)).reshape(9, cout, cin)

    w1 = kaiming_uniform_conv(k1, filters, in_channels)
    w2 = kaiming_uniform_conv(k2, filters, filters)
    return {
        "w1_oihw": w1, "w2_oihw": w2,                     # for the reference
        "w1_taps": to_taps(w1), "w2_taps": to_taps(w2),
        "b1": conv_bias(k3, filters, in_channels),
        "b2": conv_bias(k4, filters, filters),
        "g1": jnp.ones((filters,), jnp.float32),          # BN defaults
        "beta1": jnp.zeros((filters,), jnp.float32),
        "g2": jnp.ones((filters,), jnp.float32),
        "beta2": jnp.zeros((filters,), jnp.float32),
    }


# ----------------------------------------------------------------------------
# Pure-JAX reference (for correctness check)
# ----------------------------------------------------------------------------
def reference(x_nchw, params, d):
    def conv_relu(x, w_oihw, b):
        y = jax.lax.conv_general_dilated(
            x, w_oihw, window_strides=(1, 1), padding=((d, d), (d, d)),
            rhs_dilation=(d, d), dimension_numbers=("NCHW", "OIHW", "NCHW"))
        return jax.nn.relu(y + b[None, :, None, None])

    def bn(x, g, b, eps=1e-5):
        mean = jnp.mean(x, axis=(0, 2, 3), keepdims=True)
        var = jnp.mean((x - mean) ** 2, axis=(0, 2, 3), keepdims=True)
        return ((x - mean) / jnp.sqrt(var + eps)
                * g[None, :, None, None] + b[None, :, None, None])

    x = bn(conv_relu(x_nchw, params["w1_oihw"], params["b1"]),
           params["g1"], params["beta1"])
    x = bn(conv_relu(x, params["w2_oihw"], params["b2"]),
           params["g2"], params["beta2"])
    return x


if __name__ == "__main__":
    N, Cin, H, W = 2, 4, 16, 16
    filters = 8
    dilation_rate = 1

    key = jax.random.PRNGKey(0)
    kx_, kp = jax.random.split(key)
    x = jax.random.normal(kx_, (N, Cin, H, W), jnp.float32)   # NCHW like PyTorch
    params = init_params(kp, Cin, filters)

    ref = jax.block_until_ready(reference(x, params, dilation_rate))

    # 1) f32 path: strict correctness check against the f32 reference.
    fwd_f32 = jax.jit(functools.partial(
        double_conv_with_bn, dilation_rate=dilation_rate,
        compute_dtype=jnp.float32))
    out_f32 = jax.block_until_ready(fwd_f32(x, params))
    assert out_f32.shape == (N, filters, H, W)
    assert np.allclose(np.asarray(out_f32), np.asarray(ref),
                       atol=1e-2, rtol=1e-2), \
        f"f32 max abs diff {np.max(np.abs(np.asarray(out_f32) - np.asarray(ref)))}"

    # 2) bf16 MXU/storage path (production config); looser tolerance reflects
    #    bf16 rounding of activations and weights.
    fwd_bf16 = jax.jit(functools.partial(
        double_conv_with_bn, dilation_rate=dilation_rate,
        compute_dtype=jnp.bfloat16))
    out_bf16 = jax.block_until_ready(fwd_bf16(x, params))
    assert out_bf16.shape == (N, filters, H, W)
    assert np.allclose(np.asarray(out_bf16), np.asarray(ref),
                       atol=6e-2, rtol=6e-2), \
        f"bf16 max abs diff {np.max(np.abs(np.asarray(out_bf16) - np.asarray(ref)))}"

    print("KERNEL_OK")
</pallas_src>

<mosaic_0001>
module attributes {stable_mosaic.version = 11 : i64} {
  func.func @_conv_relu_stats_kernel(%arg0: i32, %arg1: memref<1x4x384xf32, #tpu.memory_space<vmem>>, %arg2: memref<1x384xf32, #tpu.memory_space<vmem>>, %arg3: memref<9x8x4xf32, #tpu.memory_space<vmem>>, %arg4: memref<8x1xf32, #tpu.memory_space<vmem>>, %arg5: memref<1x8x384xf32, #tpu.memory_space<vmem>>, %arg6: memref<1x8x128xf32, #tpu.memory_space<vmem>>) attributes {dimension_semantics = [#tpu.dimension_semantics<parallel>], iteration_bounds = array<i64: 2>, scalar_prefetch = 0 : i64, scratch_operands = 0 : i64, tpu.core_type = #tpu.core_type<tc>, window_params = [{transform_indices = @transform_0, window_bounds = array<i64: 1, 4, 384>}, {pipeline_mode = #tpu.pipeline_mode<synchronous>, transform_indices = @transform_1, window_bounds = array<i64: 1, 384>}, {pipeline_mode = #tpu.pipeline_mode<synchronous>, transform_indices = @transform_2, window_bounds = array<i64: 9, 8, 4>}, {pipeline_mode = #tpu.pipeline_mode<synchronous>, transform_indices = @transform_3, window_bounds = array<i64: 8, 1>}, {transform_indices = @transform_4, window_bounds = array<i64: 1, 8, 384>}, {transform_indices = @transform_5, window_bounds = array<i64: 1, 8, 128>}]} {
    %c0 = arith.constant 0 : index
    %c0_0 = arith.constant 0 : index
    %0 = vector.load %arg2[%c0, %c0_0] : memref<1x384xf32, #tpu.memory_space<vmem>>, vector<1x384xf32>
    %c0_1 = arith.constant 0 : index
    %c0_2 = arith.constant 0 : index
    %c0_3 = arith.constant 0 : index
    %1 = vector.load %arg1[%c0_1, %c0_2, %c0_3] : memref<1x4x384xf32, #tpu.memory_space<vmem>>, vector<1x4x384xf32>
    %2 = vector.shape_cast %1 : vector<1x4x384xf32> to vector<4x384xf32>
    %c19_i32 = arith.constant 19 : i32
    %3 = tpu.dynamic_rotate %2 by %c19_i32 dim 1 : vector<4x384xf32>, i32 -> vector<4x384xf32>
    %c0_4 = arith.constant 0 : index
    %c0_5 = arith.constant 0 : index
    %c0_6 = arith.constant 0 : index
    %4 = vector.load %arg3[%c0_4, %c0_5, %c0_6] : memref<9x8x4xf32, #tpu.memory_space<vmem>>, vector<1x8x4xf32>
    %5 = vector.shape_cast %4 : vector<1x8x4xf32> to vector<8x4xf32>
    %cst = arith.constant dense<0.000000e+00> : vector<8x384xf32>
    %6 = tpu.matmul %5, %3, %cst {dimension_numbers = #tpu.dot_dimension_numbers<[1], [0], [0], [1], [0, 0, 1, 1], [], []>} : vector<8x4xf32>, vector<4x384xf32>, vector<8x384xf32> -> vector<8x384xf32>
    %c18_i32 = arith.constant 18 : i32
    %7 = tpu.dynamic_rotate %2 by %c18_i32 dim 1 : vector<4x384xf32>, i32 -> vector<4x384xf32>
    %c1 = arith.constant 1 : index
    %c0_7 = arith.constant 0 : index
    %c0_8 = arith.constant 0 : index
    %8 = vector.load %arg3[%c1, %c0_7, %c0_8] : memref<9x8x4xf32, #tpu.memory_space<vmem>>, vector<1x8x4xf32>
    %9 = vector.shape_cast %8 : vector<1x8x4xf32> to vector<8x4xf32>
    %cst_9 = arith.constant dense<0.000000e+00> : vector<8x384xf32>
    %10 = tpu.matmul %9, %7, %cst_9 {dimension_numbers = #tpu.dot_dimension_numbers<[1], [0], [0], [1], [0, 0, 1, 1], [], []>} : vector<8x4xf32>, vector<4x384xf32>, vector<8x384xf32> -> vector<8x384xf32>
    %11 = arith.addf %6, %10 : vector<8x384xf32>
    %c17_i32 = arith.constant 17 : i32
    %12 = tpu.dynamic_rotate %2 by %c17_i32 dim 1 : vector<4x384xf32>, i32 -> vector<4x384xf32>
    %c2 = arith.constant 2 : index
    %c0_10 = arith.constant 0 : index
    %c0_11 = arith.constant 0 : index
    %13 = vector.load %arg3[%c2, %c0_10, %c0_11] : memref<9x8x4xf32, #tpu.memory_space<vmem>>, vector<1x8x4xf32>
    %14 = vector.shape_cast %13 : vector<1x8x4xf32> to vector<8x4xf32>
    %cst_12 = arith.constant dense<0.000000e+00> : vector<8x384xf32>
    %15 = tpu.matmul %14, %12, %cst_12 {dimension_numbers = #tpu.dot_dimension_numbers<[1], [0], [0], [1], [0, 0, 1, 1], [], []>} : vector<8x4xf32>, vector<4x384xf32>, vector<8x384xf32> -> vector<8x384xf32>
    %16 = arith.addf %11, %15 : vector<8x384xf32>
    %c1_i32 = arith.constant 1 : i32
    %17 = tpu.dynamic_rotate %2 by %c1_i32 dim 1 : vector<4x384xf32>, i32 -> vector<4x384xf32>
    %c3 = arith.constant 3 : index
    %c0_13 = arith.constant 0 : index
    %c0_14 = arith.constant 0 : index
    %18 = vector.load %arg3[%c3, %c0_13, %c0_14] : memref<9x8x4xf32, #tpu.memory_space<vmem>>, vector<1x8x4xf32>
    %19 = vector.shape_cast %18 : vector<1x8x4xf32> to vector<8x4xf32>
    %cst_15 = arith.constant dense<0.000000e+00> : vector<8x384xf32>
    %20 = tpu.matmul %19, %17, %cst_15 {dimension_numbers = #tpu.dot_dimension_numbers<[1], [0], [0], [1], [0, 0, 1, 1], [], []>} : vector<8x4xf32>, vector<4x384xf32>, vector<8x384xf32> -> vector<8x384xf32>
    %21 = arith.addf %16, %20 : vector<8x384xf32>
    %c4 = arith.constant 4 : index
    %c0_16 = arith.constant 0 : index
    %c0_17 = arith.constant 0 : index
    %22 = vector.load %arg3[%c4, %c0_16, %c0_17] : memref<9x8x4xf32, #tpu.memory_space<vmem>>, vector<1x8x4xf32>
    %23 = vector.shape_cast %22 : vector<1x8x4xf32> to vector<8x4xf32>
    %cst_18 = arith.constant dense<0.000000e+00> : vector<8x384xf32>
    %24 = tpu.matmul %23, %2, %cst_18 {dimension_numbers = #tpu.dot_dimension_numbers<[1], [0], [0], [1], [0, 0, 1, 1], [], []>} : vector<8x4xf32>, vector<4x384xf32>, vector<8x384xf32> -> vector<8x384xf32>
    %25 = arith.addf %21, %24 : vector<8x384xf32>
    %c383_i32 = arith.constant 383 : i32
    %26 = tpu.dynamic_rotate %2 by %c383_i32 dim 1 : vector<4x384xf32>, i32 -> vector<4x384xf32>
    %c5 = arith.constant 5 : index
    %c0_19 = arith.constant 0 : index
    %c0_20 = arith.constant 0 : index
    %27 = vector.load %arg3[%c5, %c0_19, %c0_20] : memref<9x8x4xf32, #tpu.memory_space<vmem>>, vector<1x8x4xf32>
    %28 = vector.shape_cast %27 : vector<1x8x4xf32> to vector<8x4xf32>
    %cst_21 = arith.constant dense<0.000000e+00> : vector<8x384xf32>
    %29 = tpu.matmul %28, %26, %cst_21 {dimension_numbers = #tpu.dot_dimension_numbers<[1], [0], [0], [1], [0, 0, 1, 1], [], []>} : vector<8x4xf32>, vector<4x384xf32>, vector<8x384xf32> -> vector<8x384xf32>
    %30 = arith.addf %25, %29 : vector<8x384xf32>
    %c367_i32 = arith.constant 367 : i32
    %31 = tpu.dynamic_rotate %2 by %c367_i32 dim 1 : vector<4x384xf32>, i32 -> vector<4x384xf32>
    %c6 = arith.constant 6 : index
    %c0_22 = arith.constant 0 : index
    %c0_23 = arith.constant 0 : index
    %32 = vector.load %arg3[%c6, %c0_22, %c0_23] : memref<9x8x4xf32, #tpu.memory_space<vmem>>, vector<1x8x4xf32>
    %33 = vector.shape_cast %32 : vector<1x8x4xf32> to vector<8x4xf32>
    %cst_24 = arith.constant dense<0.000000e+00> : vector<8x384xf32>
    %34 = tpu.matmul %33, %31, %cst_24 {dimension_numbers = #tpu.dot_dimension_numbers<[1], [0], [0], [1], [0, 0, 1, 1], [], []>} : vector<8x4xf32>, vector<4x384xf32>, vector<8x384xf32> -> vector<8x384xf32>
    %35 = arith.addf %30, %34 : vector<8x384xf32>
    %c366_i32 = arith.constant 366 : i32
    %36 = tpu.dynamic_rotate %2 by %c366_i32 dim 1 : vector<4x384xf32>, i32 -> vector<4x384xf32>
    %c7 = arith.constant 7 : index
    %c0_25 = arith.constant 0 : index
    %c0_26 = arith.constant 0 : index
    %37 = vector.load %arg3[%c7, %c0_25, %c0_26] : memref<9x8x4xf32, #tpu.memory_space<vmem>>, vector<1x8x4xf32>
    %38 = vector.shape_cast %37 : vector<1x8x4xf32> to vector<8x4xf32>
    %cst_27 = arith.constant dense<0.000000e+00> : vector<8x384xf32>
    %39 = tpu.matmul %38, %36, %cst_27 {dimension_numbers = #tpu.dot_dimension_numbers<[1], [0], [0], [1], [0, 0, 1, 1], [], []>} : vector<8x4xf32>, vector<4x384xf32>, vector<8x384xf32> -> vector<8x384xf32>
    %40 = arith.addf %35, %39 : vector<8x384xf32>
    %c365_i32 = arith.constant 365 : i32
    %41 = tpu.dynamic_rotate %2 by %c365_i32 dim 1 : vector<4x384xf32>, i32 -> vector<4x384xf32>
    %c8 = arith.constant 8 : index
    %c0_28 = arith.constant 0 : index
    %c0_29 = arith.constant 0 : index
    %42 = vector.load %arg3[%c8, %c0_28, %c0_29] : memref<9x8x4xf32, #tpu.memory_space<vmem>>, vector<1x8x4xf32>
    %43 = vector.shape_cast %42 : vector<1x8x4xf32> to vector<8x4xf32>
    %cst_30 = arith.constant dense<0.000000e+00> : vector<8x384xf32>
    %44 = tpu.matmul %43, %41, %cst_30 {dimension_numbers = #tpu.dot_dimension_numbers<[1], [0], [0], [1], [0, 0, 1, 1], [], []>} : vector<8x4xf32>, vector<4x384xf32>, vector<8x384xf32> -> vector<8x384xf32>
    %45 = arith.addf %40, %44 : vector<8x384xf32>
    %c0_31 = arith.constant 0 : index
    %c0_32 = arith.constant 0 : index
    %46 = vector.load %arg4[%c0_31, %c0_32] : memref<8x1xf32, #tpu.memory_space<vmem>>, vector<8x1xf32>
    %47 = vector.broadcast %46 : vector<8x1xf32> to vector<8x384xf32>
    %48 = arith.addf %45, %47 : vector<8x384xf32>
    %cst_33 = arith.constant 0.000000e+00 : f32
    %49 = vector.broadcast %cst_33 : f32 to vector<8x384xf32>
    %50 = arith.maximumf %48, %49 : vector<8x384xf32>
    %51 = vector.broadcast %0 : vector<1x384xf32> to vector<8x384xf32>
    %52 = arith.mulf %50, %51 : vector<8x384xf32>
    %c0_34 = arith.constant 0 : index
    %c0_35 = arith.constant 0 : index
    %c0_36 = arith.constant 0 : index
    %53 = vector.load %arg5[%c0_34, %c0_35, %c0_36] : memref<1x8x384xf32, #tpu.memory_space<vmem>>, vector<1x8x384xf32>
    %54 = vector.shape_cast %53 : vector<1x8x384xf32> to vector<8x384xf32>
    %55 = vector.shape_cast %52 : vector<8x384xf32> to vector<1x8x384xf32>
    tpu.vector_store %arg5[%c0_34, %c0_35, %c0_36], %55 {strides = array<i32>} : memref<1x8x384xf32, #tpu.memory_space<vmem>>, vector<1x8x384xf32>,
    %cst_37 = arith.constant dense<0.000000e+00> : vector<8xf32>
    %56 = vector.multi_reduction <add>, %52, %cst_37 [1] : vector<8x384xf32> to vector<8xf32>
    %57 = vector.shape_cast %56 : vector<8xf32> to vector<8x1xf32>
    %58 = arith.mulf %52, %52 : vector<8x384xf32>
    %cst_38 = arith.constant dense<0.000000e+00> : vector<8xf32>
    %59 = vector.multi_reduction <add>, %58, %cst_38 [1] : vector<8x384xf32> to vector<8xf32>
    %60 = vector.shape_cast %59 : vector<8xf32> to vector<8x1xf32>
    %cst_39 = arith.constant 0.000000e+00 : f32
    %61 = vector.broadcast %cst_39 : f32 to vector<8x126xf32>
    %62 = tpu.concatenate %57, %60, %61 in 1 : vector<8x1xf32>, vector<8x1xf32>, vector<8x126xf32> -> vector<8x128xf32>
    %c0_40 = arith.constant 0 : index
    %c0_41 = arith.constant 0 : index
    %c0_42 = arith.constant 0 : index
    %63 = vector.load %arg6[%c0_40, %c0_41, %c0_42] : memref<1x8x128xf32, #tpu.memory_space<vmem>>, vector<1x8x128xf32>
    %64 = vector.shape_cast %63 : vector<1x8x128xf32> to vector<8x128xf32>
    %65 = vector.shape_cast %62 : vector<8x128xf32> to vector<1x8x128xf32>
    tpu.vector_store %arg6[%c0_40, %c0_41, %c0_42], %65 {strides = array<i32>} : memref<1x8x128xf32, #tpu.memory_space<vmem>>, vector<1x8x128xf32>,
    return
  }
  func.func @transform_0(%arg0: i32) -> (i32, i32, i32) {
    %c0_i32 = arith.constant 0 : i32
    %c0_i32_0 = arith.constant 0 : i32
    %c0_i32_1 = arith.constant 0 : i32
    return %arg0, %c0_i32, %c0_i32_0 : i32, i32, i32
  }
  func.func @transform_1(%arg0: i32) -> (i32, i32) {
    %c0_i32 = arith.constant 0 : i32
    %c0_i32_0 = arith.constant 0 : i32
    %c0_i32_1 = arith.constant 0 : i32
    return %c0_i32, %c0_i32_0 : i32, i32
  }
  func.func @transform_2(%arg0: i32) -> (i32, i32, i32) {
    %c0_i32 = arith.constant 0 : i32
    %c0_i32_0 = arith.constant 0 : i32
    %c0_i32_1 = arith.constant 0 : i32
    %c0_i32_2 = arith.constant 0 : i32
    return %c0_i32, %c0_i32_0, %c0_i32_1 : i32, i32, i32
  }
  func.func @transform_3(%arg0: i32) -> (i32, i32) {
    %c0_i32 = arith.constant 0 : i32
    %c0_i32_0 = arith.constant 0 : i32
    %c0_i32_1 = arith.constant 0 : i32
    return %c0_i32, %c0_i32_0 : i32, i32
  }
  func.func @transform_4(%arg0: i32) -> (i32, i32, i32) {
    %c0_i32 = arith.constant 0 : i32
    %c0_i32_0 = arith.constant 0 : i32
    %c0_i32_1 = arith.constant 0 : i32
    return %arg0, %c0_i32, %c0_i32_0 : i32, i32, i32
  }
  func.func @transform_5(%arg0: i32) -> (i32, i32, i32) {
    %c0_i32 = arith.constant 0 : i32
    %c0_i32_0 = arith.constant 0 : i32
    %c0_i32_1 = arith.constant 0 : i32
    return %arg0, %c0_i32, %c0_i32_0 : i32, i32, i32
  }
}

module attributes {stable_mosaic.version = 11 : i64} {
  func.func @_conv_relu_stats_kernel(%arg0: i32, %arg1: memref<1x8x384xf32, #tpu.memory_space<vmem>>, %arg2: memref<1x384xf32, #tpu.memory_space<vmem>>, %arg3: memref<9x8x8xf32, #tpu.memory_space<vmem>>, %arg4: memref<8x1xf32, #tpu.memory_space<vmem>>, %arg5: memref<8x1xf32, #tpu.memory_space<vmem>>, %arg6: memref<8x1xf32, #tpu.memory_space<vmem>>, %arg7: memref<1x8x384xf32, #tpu.memory_space<vmem>>, %arg8: memref<1x8x128xf32, #tpu.memory_space<vmem>>) attributes {dimension_semantics = [#tpu.dimension_semantics<parallel>], iteration_bounds = array<i64: 2>, scalar_prefetch = 0 : i64, scratch_operands = 0 : i64, tpu.core_type = #tpu.core_type<tc>, window_params = [{transform_indices = @transform_0, window_bounds = array<i64: 1, 8, 384>}, {pipeline_mode = #tpu.pipeline_mode<synchronous>, transform_indices = @transform_1, window_bounds = array<i64: 1, 384>}, {pipeline_mode = #tpu.pipeline_mode<synchronous>, transform_indices = @transform_2, window_bounds = array<i64: 9, 8, 8>}, {pipeline_mode = #tpu.pipeline_mode<synchronous>, transform_indices = @transform_3, window_bounds = array<i64: 8, 1>}, {pipeline_mode = #tpu.pipeline_mode<synchronous>, transform_indices = @transform_4, window_bounds = array<i64: 8, 1>}, {pipeline_mode = #tpu.pipeline_mode<synchronous>, transform_indices = @transform_5, window_bounds = array<i64: 8, 1>}, {transform_indices = @transform_6, window_bounds = array<i64: 1, 8, 384>}, {transform_indices = @transform_7, window_bounds = array<i64: 1, 8, 128>}]} {
    %c0 = arith.constant 0 : index
    %c0_0 = arith.constant 0 : index
    %0 = vector.load %arg2[%c0, %c0_0] : memref<1x384xf32, #tpu.memory_space<vmem>>, vector<1x384xf32>
    %c0_1 = arith.constant 0 : index
    %c0_2 = arith.constant 0 : index
    %c0_3 = arith.constant 0 : index
    %1 = vector.load %arg1[%c0_1, %c0_2, %c0_3] : memref<1x8x384xf32, #tpu.memory_space<vmem>>, vector<1x8x384xf32>
    %2 = vector.shape_cast %1 : vector<1x8x384xf32> to vector<8x384xf32>
    %c0_4 = arith.constant 0 : index
    %c0_5 = arith.constant 0 : index
    %3 = vector.load %arg5[%c0_4, %c0_5] : memref<8x1xf32, #tpu.memory_space<vmem>>, vector<8x1xf32>
    %4 = vector.broadcast %3 : vector<8x1xf32> to vector<8x384xf32>
    %5 = arith.mulf %2, %4 : vector<8x384xf32>
    %c0_6 = arith.constant 0 : index
    %c0_7 = arith.constant 0 : index
    %6 = vector.load %arg6[%c0_6, %c0_7] : memref<8x1xf32, #tpu.memory_space<vmem>>, vector<8x1xf32>
    %7 = vector.broadcast %6 : vector<8x1xf32> to vector<8x384xf32>
    %8 = vector.broadcast %0 : vector<1x384xf32> to vector<8x384xf32>
    %9 = arith.mulf %7, %8 : vector<8x384xf32>
    %10 = arith.addf %5, %9 : vector<8x384xf32>
    %c19_i32 = arith.constant 19 : i32
    %11 = tpu.dynamic_rotate %10 by %c19_i32 dim 1 : vector<8x384xf32>, i32 -> vector<8x384xf32>
    %c0_8 = arith.constant 0 : index
    %c0_9 = arith.constant 0 : index
    %c0_10 = arith.constant 0 : index
    %12 = vector.load %arg3[%c0_8, %c0_9, %c0_10] : memref<9x8x8xf32, #tpu.memory_space<vmem>>, vector<1x8x8xf32>
    %13 = vector.shape_cast %12 : vector<1x8x8xf32> to vector<8x8xf32>
    %cst = arith.constant dense<0.000000e+00> : vector<8x384xf32>
    %14 = tpu.matmul %13, %11, %cst {dimension_numbers = #tpu.dot_dimension_numbers<[1], [0], [0], [1], [0, 0, 1, 1], [], []>} : vector<8x8xf32>, vector<8x384xf32>, vector<8x384xf32> -> vector<8x384xf32>
    %c18_i32 = arith.constant 18 : i32
    %15 = tpu.dynamic_rotate %10 by %c18_i32 dim 1 : vector<8x384xf32>, i32 -> vector<8x384xf32>
    %c1 = arith.constant 1 : index
    %c0_11 = arith.constant 0 : index
    %c0_12 = arith.constant 0 : index
    %16 = vector.load %arg3[%c1, %c0_11, %c0_12] : memref<9x8x8xf32, #tpu.memory_space<vmem>>, vector<1x8x8xf32>
    %17 = vector.shape_cast %16 : vector<1x8x8xf32> to vector<8x8xf32>
    %cst_13 = arith.constant dense<0.000000e+00> : vector<8x384xf32>
    %18 = tpu.matmul %17, %15, %cst_13 {dimension_numbers = #tpu.dot_dimension_numbers<[1], [0], [0], [1], [0, 0, 1, 1], [], []>} : vector<8x8xf32>, vector<8x384xf32>, vector<8x384xf32> -> vector<8x384xf32>
    %19 = arith.addf %14, %18 : vector<8x384xf32>
    %c17_i32 = arith.constant 17 : i32
    %20 = tpu.dynamic_rotate %10 by %c17_i32 dim 1 : vector<8x384xf32>, i32 -> vector<8x384xf32>
    %c2 = arith.constant 2 : index
    %c0_14 = arith.constant 0 : index
    %c0_15 = arith.constant 0 : index
    %21 = vector.load %arg3[%c2, %c0_14, %c0_15] : memref<9x8x8xf32, #tpu.memory_space<vmem>>, vector<1x8x8xf32>
    %22 = vector.shape_cast %21 : vector<1x8x8xf32> to vector<8x8xf32>
    %cst_16 = arith.constant dense<0.000000e+00> : vector<8x384xf32>
    %23 = tpu.matmul %22, %20, %cst_16 {dimension_numbers = #tpu.dot_dimension_numbers<[1], [0], [0], [1], [0, 0, 1, 1], [], []>} : vector<8x8xf32>, vector<8x384xf32>, vector<8x384xf32> -> vector<8x384xf32>
    %24 = arith.addf %19, %23 : vector<8x384xf32>
    %c1_i32 = arith.constant 1 : i32
    %25 = tpu.dynamic_rotate %10 by %c1_i32 dim 1 : vector<8x384xf32>, i32 -> vector<8x384xf32>
    %c3 = arith.constant 3 : index
    %c0_17 = arith.constant 0 : index
    %c0_18 = arith.constant 0 : index
    %26 = vector.load %arg3[%c3, %c0_17, %c0_18] : memref<9x8x8xf32, #tpu.memory_space<vmem>>, vector<1x8x8xf32>
    %27 = vector.shape_cast %26 : vector<1x8x8xf32> to vector<8x8xf32>
    %cst_19 = arith.constant dense<0.000000e+00> : vector<8x384xf32>
    %28 = tpu.matmul %27, %25, %cst_19 {dimension_numbers = #tpu.dot_dimension_numbers<[1], [0], [0], [1], [0, 0, 1, 1], [], []>} : vector<8x8xf32>, vector<8x384xf32>, vector<8x384xf32> -> vector<8x384xf32>
    %29 = arith.addf %24, %28 : vector<8x384xf32>
    %c4 = arith.constant 4 : index
    %c0_20 = arith.constant 0 : index
    %c0_21 = arith.constant 0 : index
    %30 = vector.load %arg3[%c4, %c0_20, %c0_21] : memref<9x8x8xf32, #tpu.memory_space<vmem>>, vector<1x8x8xf32>
    %31 = vector.shape_cast %30 : vector<1x8x8xf32> to vector<8x8xf32>
    %cst_22 = arith.constant dense<0.000000e+00> : vector<8x384xf32>
    %32 = tpu.matmul %31, %10, %cst_22 {dimension_numbers = #tpu.dot_dimension_numbers<[1], [0], [0], [1], [0, 0, 1, 1], [], []>} : vector<8x8xf32>, vector<8x384xf32>, vector<8x384xf32> -> vector<8x384xf32>
    %33 = arith.addf %29, %32 : vector<8x384xf32>
    %c383_i32 = arith.constant 383 : i32
    %34 = tpu.dynamic_rotate %10 by %c383_i32 dim 1 : vector<8x384xf32>, i32 -> vector<8x384xf32>
    %c5 = arith.constant 5 : index
    %c0_23 = arith.constant 0 : index
    %c0_24 = arith.constant 0 : index
    %35 = vector.load %arg3[%c5, %c0_23, %c0_24] : memref<9x8x8xf32, #tpu.memory_space<vmem>>, vector<1x8x8xf32>
    %36 = vector.shape_cast %35 : vector<1x8x8xf32> to vector<8x8xf32>
    %cst_25 = arith.constant dense<0.000000e+00> : vector<8x384xf32>
    %37 = tpu.matmul %36, %34, %cst_25 {dimension_numbers = #tpu.dot_dimension_numbers<[1], [0], [0], [1], [0, 0, 1, 1], [], []>} : vector<8x8xf32>, vector<8x384xf32>, vector<8x384xf32> -> vector<8x384xf32>
    %38 = arith.addf %33, %37 : vector<8x384xf32>
    %c367_i32 = arith.constant 367 : i32
    %39 = tpu.dynamic_rotate %10 by %c367_i32 dim 1 : vector<8x384xf32>, i32 -> vector<8x384xf32>
    %c6 = arith.constant 6 : index
    %c0_26 = arith.constant 0 : index
    %c0_27 = arith.constant 0 : index
    %40 = vector.load %arg3[%c6, %c0_26, %c0_27] : memref<9x8x8xf32, #tpu.memory_space<vmem>>, vector<1x8x8xf32>
    %41 = vector.shape_cast %40 : vector<1x8x8xf32> to vector<8x8xf32>
    %cst_28 = arith.constant dense<0.000000e+00> : vector<8x384xf32>
    %42 = tpu.matmul %41, %39, %cst_28 {dimension_numbers = #tpu.dot_dimension_numbers<[1], [0], [0], [1], [0, 0, 1, 1], [], []>} : vector<8x8xf32>, vector<8x384xf32>, vector<8x384xf32> -> vector<8x384xf32>
    %43 = arith.addf %38, %42 : vector<8x384xf32>
    %c366_i32 = arith.constant 366 : i32
    %44 = tpu.dynamic_rotate %10 by %c366_i32 dim 1 : vector<8x384xf32>, i32 -> vector<8x384xf32>
    %c7 = arith.constant 7 : index
    %c0_29 = arith.constant 0 : index
    %c0_30 = arith.constant 0 : index
    %45 = vector.load %arg3[%c7, %c0_29, %c0_30] : memref<9x8x8xf32, #tpu.memory_space<vmem>>, vector<1x8x8xf32>
    %46 = vector.shape_cast %45 : vector<1x8x8xf32> to vector<8x8xf32>
    %cst_31 = arith.constant dense<0.000000e+00> : vector<8x384xf32>
    %47 = tpu.matmul %46, %44, %cst_31 {dimension_numbers = #tpu.dot_dimension_numbers<[1], [0], [0], [1], [0, 0, 1, 1], [], []>} : vector<8x8xf32>, vector<8x384xf32>, vector<8x384xf32> -> vector<8x384xf32>
    %48 = arith.addf %43, %47 : vector<8x384xf32>
    %c365_i32 = arith.constant 365 : i32
    %49 = tpu.dynamic_rotate %10 by %c365_i32 dim 1 : vector<8x384xf32>, i32 -> vector<8x384xf32>
    %c8 = arith.constant 8 : index
    %c0_32 = arith.constant 0 : index
    %c0_33 = arith.constant 0 : index
    %50 = vector.load %arg3[%c8, %c0_32, %c0_33] : memref<9x8x8xf32, #tpu.memory_space<vmem>>, vector<1x8x8xf32>
    %51 = vector.shape_cast %50 : vector<1x8x8xf32> to vector<8x8xf32>
    %cst_34 = arith.constant dense<0.000000e+00> : vector<8x384xf32>
    %52 = tpu.matmul %51, %49, %cst_34 {dimension_numbers = #tpu.dot_dimension_numbers<[1], [0], [0], [1], [0, 0, 1, 1], [], []>} : vector<8x8xf32>, vector<8x384xf32>, vector<8x384xf32> -> vector<8x384xf32>
    %53 = arith.addf %48, %52 : vector<8x384xf32>
    %c0_35 = arith.constant 0 : index
    %c0_36 = arith.constant 0 : index
    %54 = vector.load %arg4[%c0_35, %c0_36] : memref<8x1xf32, #tpu.memory_space<vmem>>, vector<8x1xf32>
    %55 = vector.broadcast %54 : vector<8x1xf32> to vector<8x384xf32>
    %56 = arith.addf %53, %55 : vector<8x384xf32>
    %cst_37 = arith.constant 0.000000e+00 : f32
    %57 = vector.broadcast %cst_37 : f32 to vector<8x384xf32>
    %58 = arith.maximumf %56, %57 : vector<8x384xf32>
    %59 = vector.broadcast %0 : vector<1x384xf32> to vector<8x384xf32>
    %60 = arith.mulf %58, %59 : vector<8x384xf32>
    %c0_38 = arith.constant 0 : index
    %c0_39 = arith.constant 0 : index
    %c0_40 = arith.constant 0 : index
    %61 = vector.load %arg7[%c0_38, %c0_39, %c0_40] : memref<1x8x384xf32, #tpu.memory_space<vmem>>, vector<1x8x384xf32>
    %62 = vector.shape_cast %61 : vector<1x8x384xf32> to vector<8x384xf32>
    %63 = vector.shape_cast %60 : vector<8x384xf32> to vector<1x8x384xf32>
    tpu.vector_store %arg7[%c0_38, %c0_39, %c0_40], %63 {strides = array<i32>} : memref<1x8x384xf32, #tpu.memory_space<vmem>>, vector<1x8x384xf32>,
    %cst_41 = arith.constant dense<0.000000e+00> : vector<8xf32>
    %64 = vector.multi_reduction <add>, %60, %cst_41 [1] : vector<8x384xf32> to vector<8xf32>
    %65 = vector.shape_cast %64 : vector<8xf32> to vector<8x1xf32>
    %66 = arith.mulf %60, %60 : vector<8x384xf32>
    %cst_42 = arith.constant dense<0.000000e+00> : vector<8xf32>
    %67 = vector.multi_reduction <add>, %66, %cst_42 [1] : vector<8x384xf32> to vector<8xf32>
    %68 = vector.shape_cast %67 : vector<8xf32> to vector<8x1xf32>
    %cst_43 = arith.constant 0.000000e+00 : f32
    %69 = vector.broadcast %cst_43 : f32 to vector<8x126xf32>
    %70 = tpu.concatenate %65, %68, %69 in 1 : vector<8x1xf32>, vector<8x1xf32>, vector<8x126xf32> -> vector<8x128xf32>
    %c0_44 = arith.constant 0 : index
    %c0_45 = arith.constant 0 : index
    %c0_46 = arith.constant 0 : index
    %71 = vector.load %arg8[%c0_44, %c0_45, %c0_46] : memref<1x8x128xf32, #tpu.memory_space<vmem>>, vector<1x8x128xf32>
    %72 = vector.shape_cast %71 : vector<1x8x128xf32> to vector<8x128xf32>
    %73 = vector.shape_cast %70 : vector<8x128xf32> to vector<1x8x128xf32>
    tpu.vector_store %arg8[%c0_44, %c0_45, %c0_46], %73 {strides = array<i32>} : memref<1x8x128xf32, #tpu.memory_space<vmem>>, vector<1x8x128xf32>,
    return
  }
  func.func @transform_0(%arg0: i32) -> (i32, i32, i32) {
    %c0_i32 = arith.constant 0 : i32
    %c0_i32_0 = arith.constant 0 : i32
    %c0_i32_1 = arith.constant 0 : i32
    return %arg0, %c0_i32, %c0_i32_0 : i32, i32, i32
  }
  func.func @transform_1(%arg0: i32) -> (i32, i32) {
    %c0_i32 = arith.constant 0 : i32
    %c0_i32_0 = arith.constant 0 : i32
    %c0_i32_1 = arith.constant 0 : i32
    return %c0_i32, %c0_i32_0 : i32, i32
  }
  func.func @transform_2(%arg0: i32) -> (i32, i32, i32) {
    %c0_i32 = arith.constant 0 : i32
    %c0_i32_0 = arith.constant 0 : i32
    %c0_i32_1 = arith.constant 0 : i32
    %c0_i32_2 = arith.constant 0 : i32
    return %c0_i32, %c0_i32_0, %c0_i32_1 : i32, i32, i32
  }
  func.func @transform_3(%arg0: i32) -> (i32, i32) {
    %c0_i32 = arith.constant 0 : i32
    %c0_i32_0 = arith.constant 0 : i32
    %c0_i32_1 = arith.constant 0 : i32
    return %c0_i32, %c0_i32_0 : i32, i32
  }
  func.func @transform_4(%arg0: i32) -> (i32, i32) {
    %c0_i32 = arith.constant 0 : i32
    %c0_i32_0 = arith.constant 0 : i32
    %c0_i32_1 = arith.constant 0 : i32
    return %c0_i32, %c0_i32_0 : i32, i32
  }
  func.func @transform_5(%arg0: i32) -> (i32, i32) {
    %c0_i32 = arith.constant 0 : i32
    %c0_i32_0 = arith.constant 0 : i32
    %c0_i32_1 = arith.constant 0 : i32
    return %c0_i32, %c0_i32_0 : i32, i32
  }
  func.func @transform_6(%arg0: i32) -> (i32, i32, i32) {
    %c0_i32 = arith.constant 0 : i32
    %c0_i32_0 = arith.constant 0 : i32
    %c0_i32_1 = arith.constant 0 : i32
    return %arg0, %c0_i32, %c0_i32_0 : i32, i32, i32
  }
  func.func @transform_7(%arg0: i32) -> (i32, i32, i32) {
    %c0_i32 = arith.constant 0 : i32
    %c0_i32_0 = arith.constant 0 : i32
    %c0_i32_1 = arith.constant 0 : i32
    return %arg0, %c0_i32, %c0_i32_0 : i32, i32, i32
  }
}

module attributes {stable_mosaic.version = 11 : i64} {
  func.func @_bn_apply_unpad_kernel(%arg0: i32, %arg1: memref<1x8x384xf32, #tpu.memory_space<vmem>>, %arg2: memref<8x1xf32, #tpu.memory_space<vmem>>, %arg3: memref<8x1xf32, #tpu.memory_space<vmem>>, %arg4: memref<1x8x16x16xf32, #tpu.memory_space<vmem>>) attributes {dimension_semantics = [#tpu.dimension_semantics<parallel>], iteration_bounds = array<i64: 2>, scalar_prefetch = 0 : i64, scratch_operands = 0 : i64, tpu.core_type = #tpu.core_type<tc>, window_params = [{transform_indices = @transform_0, window_bounds = array<i64: 1, 8, 384>}, {pipeline_mode = #tpu.pipeline_mode<synchronous>, transform_indices = @transform_1, window_bounds = array<i64: 8, 1>}, {pipeline_mode = #tpu.pipeline_mode<synchronous>, transform_indices = @transform_2, window_bounds = array<i64: 8, 1>}, {transform_indices = @transform_3, window_bounds = array<i64: 1, 8, 16, 16>}]} {
    %c0 = arith.constant 0 : index
    %c0_0 = arith.constant 0 : index
    %c0_1 = arith.constant 0 : index
    %0 = vector.load %arg1[%c0, %c0_0, %c0_1] : memref<1x8x384xf32, #tpu.memory_space<vmem>>, vector<1x8x384xf32>
    %1 = vector.shape_cast %0 : vector<1x8x384xf32> to vector<8x384xf32>
    %c0_2 = arith.constant 0 : index
    %c0_3 = arith.constant 0 : index
    %2 = vector.load %arg2[%c0_2, %c0_3] : memref<8x1xf32, #tpu.memory_space<vmem>>, vector<8x1xf32>
    %3 = vector.broadcast %2 : vector<8x1xf32> to vector<8x384xf32>
    %4 = arith.mulf %1, %3 : vector<8x384xf32>
    %c0_4 = arith.constant 0 : index
    %c0_5 = arith.constant 0 : index
    %5 = vector.load %arg3[%c0_4, %c0_5] : memref<8x1xf32, #tpu.memory_space<vmem>>, vector<8x1xf32>
    %6 = vector.broadcast %5 : vector<8x1xf32> to vector<8x384xf32>
    %7 = arith.addf %4, %6 : vector<8x384xf32>
    %8 = vector.extract_strided_slice %7 {offsets = [0, 19], sizes = [8, 16], strides = [1, 1]} : vector<8x384xf32> to vector<8x16xf32>
    %c0_6 = arith.constant 0 : index
    %c0_7 = arith.constant 0 : index
    %c0_8 = arith.constant 0 : index
    %c0_9 = arith.constant 0 : index
    %9 = vector.load %arg4[%c0_6, %c0_7, %c0_8, %c0_9] : memref<1x8x16x16xf32, #tpu.memory_space<vmem>>, vector<1x8x1x16xf32>
    %10 = vector.shape_cast %9 : vector<1x8x1x16xf32> to vector<8x16xf32>
    %11 = vector.shape_cast %8 : vector<8x16xf32> to vector<1x8x1x16xf32>
    tpu.vector_store %arg4[%c0_6, %c0_7, %c0_8, %c0_9], %11 {strides = array<i32>} : memref<1x8x16x16xf32, #tpu.memory_space<vmem>>, vector<1x8x1x16xf32>,
    %12 = vector.extract_strided_slice %7 {offsets = [0, 37], sizes = [8, 16], strides = [1, 1]} : vector<8x384xf32> to vector<8x16xf32>
    %c0_10 = arith.constant 0 : index
    %c0_11 = arith.constant 0 : index
    %c1 = arith.constant 1 : index
    %c0_12 = arith.constant 0 : index
    %13 = vector.load %arg4[%c0_10, %c0_11, %c1, %c0_12] : memref<1x8x16x16xf32, #tpu.memory_space<vmem>>, vector<1x8x1x16xf32>
    %14 = vector.shape_cast %13 : vector<1x8x1x16xf32> to vector<8x16xf32>
    %15 = vector.shape_cast %12 : vector<8x16xf32> to vector<1x8x1x16xf32>
    tpu.vector_store %arg4[%c0_10, %c0_11, %c1, %c0_12], %15 {strides = array<i32>} : memref<1x8x16x16xf32, #tpu.memory_space<vmem>>, vector<1x8x1x16xf32>,
    %16 = vector.extract_strided_slice %7 {offsets = [0, 55], sizes = [8, 16], strides = [1, 1]} : vector<8x384xf32> to vector<8x16xf32>
    %c0_13 = arith.constant 0 : index
    %c0_14 = arith.constant 0 : index
    %c2 = arith.constant 2 : index
    %c0_15 = arith.constant 0 : index
    %17 = vector.load %arg4[%c0_13, %c0_14, %c2, %c0_15] : memref<1x8x16x16xf32, #tpu.memory_space<vmem>>, vector<1x8x1x16xf32>
    %18 = vector.shape_cast %17 : vector<1x8x1x16xf32> to vector<8x16xf32>
    %19 = vector.shape_cast %16 : vector<8x16xf32> to vector<1x8x1x16xf32>
    tpu.vector_store %arg4[%c0_13, %c0_14, %c2, %c0_15], %19 {strides = array<i32>} : memref<1x8x16x16xf32, #tpu.memory_space<vmem>>, vector<1x8x1x16xf32>,
    %20 = vector.extract_strided_slice %7 {offsets = [0, 73], sizes = [8, 16], strides = [1, 1]} : vector<8x384xf32> to vector<8x16xf32>
    %c0_16 = arith.constant 0 : index
    %c0_17 = arith.constant 0 : index
    %c3 = arith.constant 3 : index
    %c0_18 = arith.constant 0 : index
    %21 = vector.load %arg4[%c0_16, %c0_17, %c3, %c0_18] : memref<1x8x16x16xf32, #tpu.memory_space<vmem>>, vector<1x8x1x16xf32>
    %22 = vector.shape_cast %21 : vector<1x8x1x16xf32> to vector<8x16xf32>
    %23 = vector.shape_cast %20 : vector<8x16xf32> to vector<1x8x1x16xf32>
    tpu.vector_store %arg4[%c0_16, %c0_17, %c3, %c0_18], %23 {strides = array<i32>} : memref<1x8x16x16xf32, #tpu.memory_space<vmem>>, vector<1x8x1x16xf32>,
    %24 = vector.extract_strided_slice %7 {offsets = [0, 91], sizes = [8, 16], strides = [1, 1]} : vector<8x384xf32> to vector<8x16xf32>
    %c0_19 = arith.constant 0 : index
    %c0_20 = arith.constant 0 : index
    %c4 = arith.constant 4 : index
    %c0_21 = arith.constant 0 : index
    %25 = vector.load %arg4[%c0_19, %c0_20, %c4, %c0_21] : memref<1x8x16x16xf32, #tpu.memory_space<vmem>>, vector<1x8x1x16xf32>
    %26 = vector.shape_cast %25 : vector<1x8x1x16xf32> to vector<8x16xf32>
    %27 = vector.shape_cast %24 : vector<8x16xf32> to vector<1x8x1x16xf32>
    tpu.vector_store %arg4[%c0_19, %c0_20, %c4, %c0_21], %27 {strides = array<i32>} : memref<1x8x16x16xf32, #tpu.memory_space<vmem>>, vector<1x8x1x16xf32>,
    %28 = vector.extract_strided_slice %7 {offsets = [0, 109], sizes = [8, 16], strides = [1, 1]} : vector<8x384xf32> to vector<8x16xf32>
    %c0_22 = arith.constant 0 : index
    %c0_23 = arith.constant 0 : index
    %c5 = arith.constant 5 : index
    %c0_24 = arith.constant 0 : index
    %29 = vector.load %arg4[%c0_22, %c0_23, %c5, %c0_24] : memref<1x8x16x16xf32, #tpu.memory_space<vmem>>, vector<1x8x1x16xf32>
    %30 = vector.shape_cast %29 : vector<1x8x1x16xf32> to vector<8x16xf32>
    %31 = vector.shape_cast %28 : vector<8x16xf32> to vector<1x8x1x16xf32>
    tpu.vector_store %arg4[%c0_22, %c0_23, %c5, %c0_24], %31 {strides = array<i32>} : memref<1x8x16x16xf32, #tpu.memory_space<vmem>>, vector<1x8x1x16xf32>,
    %32 = vector.extract_strided_slice %7 {offsets = [0, 127], sizes = [8, 16], strides = [1, 1]} : vector<8x384xf32> to vector<8x16xf32>
    %c0_25 = arith.constant 0 : index
    %c0_26 = arith.constant 0 : index
    %c6 = arith.constant 6 : index
    %c0_27 = arith.constant 0 : index
    %33 = vector.load %arg4[%c0_25, %c0_26, %c6, %c0_27] : memref<1x8x16x16xf32, #tpu.memory_space<vmem>>, vector<1x8x1x16xf32>
    %34 = vector.shape_cast %33 : vector<1x8x1x16xf32> to vector<8x16xf32>
    %35 = vector.shape_cast %32 : vector<8x16xf32> to vector<1x8x1x16xf32>
    tpu.vector_store %arg4[%c0_25, %c0_26, %c6, %c0_27], %35 {strides = array<i32>} : memref<1x8x16x16xf32, #tpu.memory_space<vmem>>, vector<1x8x1x16xf32>,
    %36 = vector.extract_strided_slice %7 {offsets = [0, 145], sizes = [8, 16], strides = [1, 1]} : vector<8x384xf32> to vector<8x16xf32>
    %c0_28 = arith.constant 0 : index
    %c0_29 = arith.constant 0 : index
    %c7 = arith.constant 7 : index
    %c0_30 = arith.constant 0 : index
    %37 = vector.load %arg4[%c0_28, %c0_29, %c7, %c0_30] : memref<1x8x16x16xf32, #tpu.memory_space<vmem>>, vector<1x8x1x16xf32>
    %38 = vector.shape_cast %37 : vector<1x8x1x16xf32> to vector<8x16xf32>
    %39 = vector.shape_cast %36 : vector<8x16xf32> to vector<1x8x1x16xf32>
    tpu.vector_store %arg4[%c0_28, %c0_29, %c7, %c0_30], %39 {strides = array<i32>} : memref<1x8x16x16xf32, #tpu.memory_space<vmem>>, vector<1x8x1x16xf32>,
    %40 = vector.extract_strided_slice %7 {offsets = [0, 163], sizes = [8, 16], strides = [1, 1]} : vector<8x384xf32> to vector<8x16xf32>
    %c0_31 = arith.constant 0 : index
    %c0_32 = arith.constant 0 : index
    %c8 = arith.constant 8 : index
    %c0_33 = arith.constant 0 : index
    %41 = vector.load %arg4[%c0_31, %c0_32, %c8, %c0_33] : memref<1x8x16x16xf32, #tpu.memory_space<vmem>>, vector<1x8x1x16xf32>
    %42 = vector.shape_cast %41 : vector<1x8x1x16xf32> to vector<8x16xf32>
    %43 = vector.shape_cast %40 : vector<8x16xf32> to vector<1x8x1x16xf32>
    tpu.vector_store %arg4[%c0_31, %c0_32, %c8, %c0_33], %43 {strides = array<i32>} : memref<1x8x16x16xf32, #tpu.memory_space<vmem>>, vector<1x8x1x16xf32>,
    %44 = vector.extract_strided_slice %7 {offsets = [0, 181], sizes = [8, 16], strides = [1, 1]} : vector<8x384xf32> to vector<8x16xf32>
    %c0_34 = arith.constant 0 : index
    %c0_35 = arith.constant 0 : index
    %c9 = arith.constant 9 : index
    %c0_36 = arith.constant 0 : index
    %45 = vector.load %arg4[%c0_34, %c0_35, %c9, %c0_36] : memref<1x8x16x16xf32, #tpu.memory_space<vmem>>, vector<1x8x1x16xf32>
    %46 = vector.shape_cast %45 : vector<1x8x1x16xf32> to vector<8x16xf32>
    %47 = vector.shape_cast %44 : vector<8x16xf32> to vector<1x8x1x16xf32>
    tpu.vector_store %arg4[%c0_34, %c0_35, %c9, %c0_36], %47 {strides = array<i32>} : memref<1x8x16x16xf32, #tpu.memory_space<vmem>>, vector<1x8x1x16xf32>,
    %48 = vector.extract_strided_slice %7 {offsets = [0, 199], sizes = [8, 16], strides = [1, 1]} : vector<8x384xf32> to vector<8x16xf32>
    %c0_37 = arith.constant 0 : index
    %c0_38 = arith.constant 0 : index
    %c10 = arith.constant 10 : index
    %c0_39 = arith.constant 0 : index
    %49 = vector.load %arg4[%c0_37, %c0_38, %c10, %c0_39] : memref<1x8x16x16xf32, #tpu.memory_space<vmem>>, vector<1x8x1x16xf32>
    %50 = vector.shape_cast %49 : vector<1x8x1x16xf32> to vector<8x16xf32>
    %51 = vector.shape_cast %48 : vector<8x16xf32> to vector<1x8x1x16xf32>
    tpu.vector_store %arg4[%c0_37, %c0_38, %c10, %c0_39], %51 {strides = array<i32>} : memref<1x8x16x16xf32, #tpu.memory_space<vmem>>, vector<1x8x1x16xf32>,
    %52 = vector.extract_strided_slice %7 {offsets = [0, 217], sizes = [8, 16], strides = [1, 1]} : vector<8x384xf32> to vector<8x16xf32>
    %c0_40 = arith.constant 0 : index
    %c0_41 = arith.constant 0 : index
    %c11 = arith.constant 11 : index
    %c0_42 = arith.constant 0 : index
    %53 = vector.load %arg4[%c0_40, %c0_41, %c11, %c0_42] : memref<1x8x16x16xf32, #tpu.memory_space<vmem>>, vector<1x8x1x16xf32>
    %54 = vector.shape_cast %53 : vector<1x8x1x16xf32> to vector<8x16xf32>
    %55 = vector.shape_cast %52 : vector<8x16xf32> to vector<1x8x1x16xf32>
    tpu.vector_store %arg4[%c0_40, %c0_41, %c11, %c0_42], %55 {strides = array<i32>} : memref<1x8x16x16xf32, #tpu.memory_space<vmem>>, vector<1x8x1x16xf32>,
    %56 = vector.extract_strided_slice %7 {offsets = [0, 235], sizes = [8, 16], strides = [1, 1]} : vector<8x384xf32> to vector<8x16xf32>
    %c0_43 = arith.constant 0 : index
    %c0_44 = arith.constant 0 : index
    %c12 = arith.constant 12 : index
    %c0_45 = arith.constant 0 : index
    %57 = vector.load %arg4[%c0_43, %c0_44, %c12, %c0_45] : memref<1x8x16x16xf32, #tpu.memory_space<vmem>>, vector<1x8x1x16xf32>
    %58 = vector.shape_cast %57 : vector<1x8x1x16xf32> to vector<8x16xf32>
    %59 = vector.shape_cast %56 : vector<8x16xf32> to vector<1x8x1x16xf32>
    tpu.vector_store %arg4[%c0_43, %c0_44, %c12, %c0_45], %59 {strides = array<i32>} : memref<1x8x16x16xf32, #tpu.memory_space<vmem>>, vector<1x8x1x16xf32>,
    %60 = vector.extract_strided_slice %7 {offsets = [0, 253], sizes = [8, 16], strides = [1, 1]} : vector<8x384xf32> to vector<8x16xf32>
    %c0_46 = arith.constant 0 : index
    %c0_47 = arith.constant 0 : index
    %c13 = arith.constant 13 : index
    %c0_48 = arith.constant 0 : index
    %61 = vector.load %arg4[%c0_46, %c0_47, %c13, %c0_48] : memref<1x8x16x16xf32, #tpu.memory_space<vmem>>, vector<1x8x1x16xf32>
    %62 = vector.shape_cast %61 : vector<1x8x1x16xf32> to vector<8x16xf32>
    %63 = vector.shape_cast %60 : vector<8x16xf32> to vector<1x8x1x16xf32>
    tpu.vector_store %arg4[%c0_46, %c0_47, %c13, %c0_48], %63 {strides = array<i32>} : memref<1x8x16x16xf32, #tpu.memory_space<vmem>>, vector<1x8x1x16xf32>,
    %64 = vector.extract_strided_slice %7 {offsets = [0, 271], sizes = [8, 16], strides = [1, 1]} : vector<8x384xf32> to vector<8x16xf32>
    %c0_49 = arith.constant 0 : index
    %c0_50 = arith.constant 0 : index
    %c14 = arith.constant 14 : index
    %c0_51 = arith.constant 0 : index
    %65 = vector.load %arg4[%c0_49, %c0_50, %c14, %c0_51] : memref<1x8x16x16xf32, #tpu.memory_space<vmem>>, vector<1x8x1x16xf32>
    %66 = vector.shape_cast %65 : vector<1x8x1x16xf32> to vector<8x16xf32>
    %67 = vector.shape_cast %64 : vector<8x16xf32> to vector<1x8x1x16xf32>
    tpu.vector_store %arg4[%c0_49, %c0_50, %c14, %c0_51], %67 {strides = array<i32>} : memref<1x8x16x16xf32, #tpu.memory_space<vmem>>, vector<1x8x1x16xf32>,
    %68 = vector.extract_strided_slice %7 {offsets = [0, 289], sizes = [8, 16], strides = [1, 1]} : vector<8x384xf32> to vector<8x16xf32>
    %c0_52 = arith.constant 0 : index
    %c0_53 = arith.constant 0 : index
    %c15 = arith.constant 15 : index
    %c0_54 = arith.constant 0 : index
    %69 = vector.load %arg4[%c0_52, %c0_53, %c15, %c0_54] : memref<1x8x16x16xf32, #tpu.memory_space<vmem>>, vector<1x8x1x16xf32>
    %70 = vector.shape_cast %69 : vector<1x8x1x16xf32> to vector<8x16xf32>
    %71 = vector.shape_cast %68 : vector<8x16xf32> to vector<1x8x1x16xf32>
    tpu.vector_store %arg4[%c0_52, %c0_53, %c15, %c0_54], %71 {strides = array<i32>} : memref<1x8x16x16xf32, #tpu.memory_space<vmem>>, vector<1x8x1x16xf32>,
    return
  }
  func.func @transform_0(%arg0: i32) -> (i32, i32, i32) {
    %c0_i32 = arith.constant 0 : i32
    %c0_i32_0 = arith.constant 0 : i32
    %c0_i32_1 = arith.constant 0 : i32
    return %arg0, %c0_i32, %c0_i32_0 : i32, i32, i32
  }
  func.func @transform_1(%arg0: i32) -> (i32, i32) {
    %c0_i32 = arith.constant 0 : i32
    %c0_i32_0 = arith.constant 0 : i32
    %c0_i32_1 = arith.constant 0 : i32
    return %c0_i32, %c0_i32_0 : i32, i32
  }
  func.func @transform_2(%arg0: i32) -> (i32, i32) {
    %c0_i32 = arith.constant 0 : i32
    %c0_i32_0 = arith.constant 0 : i32
    %c0_i32_1 = arith.constant 0 : i32
    return %c0_i32, %c0_i32_0 : i32, i32
  }
  func.func @transform_3(%arg0: i32) -> (i32, i32, i32, i32) {
    %c0_i32 = arith.constant 0 : i32
    %c0_i32_0 = arith.constant 0 : i32
    %c0_i32_1 = arith.constant 0 : i32
    %c0_i32_2 = arith.constant 0 : i32
    return %arg0, %c0_i32, %c0_i32_0, %c0_i32_1 : i32, i32, i32, i32
  }
}

</mosaic_0001>

<llo_original>
// kernel: double_conv_with_bn.3
$region0: #{double_conv_with_bn.3}
  #allocation0 [shape = 'u32[]', space=smem, size = 0x4, offset = 0x4, fixed_abs, tag = 'smem constant byte address 0x4 - core index']
  #allocation1 [shape = 'u32[72,128]{1,0:T(1,128)}', space=vmem, size = 0x9000, scoped, tag = 'internal scratch']
  %s0 = inlined_call_operand.vmem [shape: f32[2,4,384], index: 0, kind: input, shape index: {}]
  %s1 = inlined_call_operand.vmem [shape: f32[1,384], index: 1, kind: input, shape index: {}]
  %s2 = inlined_call_operand.vmem [shape: f32[9,8,4], index: 2, kind: input, shape index: {}]
  %s3 = inlined_call_operand.vmem [shape: f32[8,1], index: 3, kind: input, shape index: {}]
  %s4 = inlined_call_operand.vmem [shape: f32[2,8,384], index: 4, kind: output, shape index: {0}]
  %s5 = inlined_call_operand.vmem [shape: f32[2,8,128], index: 5, kind: output, shape index: {1}]
  %6 = xla_tuple %s4, %s5
  %s7 = sld [smem:[#allocation0]]
  $region57: #{double_conv_with_bn.3} parent=0
    _
  %s9 = ssub.s32 1, %s7
  %s10 = scalar_select 0, %s9, %s7
  loop: start=0, step=1, limit=4
  $region2: #{double_conv_with_bn.3} parent=0 // loop_pre_header
    _
  $region3: #{double_conv_with_bn.3} parent=0 // loop_header
    %s12 = sphi 0, %s16
    %p13 = scmp.ge.s32.totalorder %s12, 4
    %s22 = sphi 0, %s24
    %s25 = sphi 0, %s22
    %s26 = sphi 0, %s25
    %s42 = sphi 0, %s26
    %s46 = sphi 0, %s46
    %s48 = sphi 0, %s46
    %s49 = sphi 0, %s48
    %s63 = sphi 0, %s49
    %s67 = sphi 0, %s67
    %s69 = sphi 0, %s67
    %s70 = sphi 0, %s69
    %s84 = sphi 0, %s70
    %s88 = sphi 0, %s88
    %s90 = sphi 0, %s88
    %s91 = sphi 0, %s90
    %s105 = sphi 0, %s91
    %s111 = sphi 0, %s113
    %s114 = sphi 0, %s111
    %s115 = sphi 0, %s114
    %s131 = sphi 0, %s115
    %s137 = sphi 0, %s139
    %s140 = sphi 0, %s137
    %s141 = sphi 0, %s140
    %s157 = sphi 0, %s141
  $region4: #{double_conv_with_bn.3} parent=0 // loop_header_branch
    %15 = sbr.rel (%p13) target = $region8
  $region5: #{double_conv_with_bn.3} parent=0 // loop_body
    %s17 = ssub.s32 %s12, 1
    %s18 = ssub.s32 %s12, 2
    %s19 = sadd.s32 %s12, 1
    %s20 = ssub.s32 %s12, %s19
    %p21 = scmp.eq.s32.totalorder %s20, 0
    %s23 = sadd.s32 %s22, 1
    %s24 = scalar_select %p21, %s22, %s23
    %p27 = pneg %p21
    %p28 = scmp.eq.s32.totalorder %s12, 1
    %p29 = por %p27, %p28
    %p30 = scmp.ne.s32.totalorder %s22, %s25
    %p31 = scmp.eq.s32.totalorder %s12, 0
    %p32 = por %p30, %p31
    %p33 = scmp.ne.s32.totalorder %s22, %s25
    %p34 = scmp.eq.s32.totalorder %s17, 1
    %p35 = por %p33, %p34
    %p36 = scmp.ne.s32.totalorder %s25, %s26
    %p37 = scmp.eq.s32.totalorder %s17, 0
    %p38 = por %p36, %p37
    %p39 = scmp.ne.s32.totalorder %s25, %s26
    %p40 = scmp.eq.s32.totalorder %s18, 1
    %p41 = por %p39, %p40
    %p43 = scmp.ne.s32.totalorder %s26, %s42
    %p44 = scmp.eq.s32.totalorder %s18, 0
    %p45 = por %p43, %p44
    %s47 = sadd.s32 %s46, 1
    %p50 = scmp.eq.s32.totalorder %s12, 1
    %p51 = scmp.ne.s32.totalorder %s46, %s48
    %p52 = scmp.eq.s32.totalorder %s12, 0
    %p53 = por %p51, %p52
    %p54 = scmp.ne.s32.totalorder %s46, %s48
    %p55 = scmp.eq.s32.totalorder %s17, 1
    %p56 = por %p54, %p55
    %p57 = scmp.ne.s32.totalorder %s48, %s49
    %p58 = scmp.eq.s32.totalorder %s17, 0
    %p59 = por %p57, %p58
    %p60 = scmp.ne.s32.totalorder %s48, %s49
    %p61 = scmp.eq.s32.totalorder %s18, 1
    %p62 = por %p60, %p61
    %p64 = scmp.ne.s32.totalorder %s49, %s63
    %p65 = scmp.eq.s32.totalorder %s18, 0
    %p66 = por %p64, %p65
    %s68 = sadd.s32 %s67, 1
    %p71 = scmp.eq.s32.totalorder %s12, 1
    %p72 = scmp.ne.s32.totalorder %s67, %s69
    %p73 = scmp.eq.s32.totalorder %s12, 0
    %p74 = por %p72, %p73
    %p75 = scmp.ne.s32.totalorder %s67, %s69
    %p76 = scmp.eq.s32.totalorder %s17, 1
    %p77 = por %p75, %p76
    %p78 = scmp.ne.s32.totalorder %s69, %s70
    %p79 = scmp.eq.s32.totalorder %s17, 0
    %p80 = por %p78, %p79
    %p81 = scmp.ne.s32.totalorder %s69, %s70
    %p82 = scmp.eq.s32.totalorder %s18, 1
    %p83 = por %p81, %p82
    %p85 = scmp.ne.s32.totalorder %s70, %s84
    %p86 = scmp.eq.s32.totalorder %s18, 0
    %p87 = por %p85, %p86
    %s89 = sadd.s32 %s88, 1
    %p92 = scmp.eq.s32.totalorder %s12, 1
    %p93 = scmp.ne.s32.totalorder %s88, %s90
    %p94 = scmp.eq.s32.totalorder %s12, 0
    %p95 = por %p93, %p94
    %p96 = scmp.ne.s32.totalorder %s88, %s90
    %p97 = scmp.eq.s32.totalorder %s17, 1
    %p98 = por %p96, %p97
    %p99 = scmp.ne.s32.totalorder %s90, %s91
    %p100 = scmp.eq.s32.totalorder %s17, 0
    %p101 = por %p99, %p100
    %p102 = scmp.ne.s32.totalorder %s90, %s91
    %p103 = scmp.eq.s32.totalorder %s18, 1
    %p104 = por %p102, %p103
    %p106 = scmp.ne.s32.totalorder %s91, %s105
    %p107 = scmp.eq.s32.totalorder %s18, 0
    %p108 = por %p106, %p107
    %s109 = ssub.s32 %s12, %s19
    %p110 = scmp.eq.s32.totalorder %s109, 0
    %s112 = sadd.s32 %s111, 1
    %s113 = scalar_select %p110, %s111, %s112
    %p116 = pneg %p110
    %p117 = scmp.eq.s32.totalorder %s12, 1
    %p118 = por %p116, %p117
    %p119 = scmp.ne.s32.totalorder %s111, %s114
    %p120 = scmp.eq.s32.totalorder %s12, 0
    %p121 = por %p119, %p120
    %p122 = scmp.ne.s32.totalorder %s111, %s114
    %p123 = scmp.eq.s32.totalorder %s17, 1
    %p124 = por %p122, %p123
    %p125 = scmp.ne.s32.totalorder %s114, %s115
    %p126 = scmp.eq.s32.totalorder %s17, 0
    %p127 = por %p125, %p126
    %p128 = scmp.ne.s32.totalorder %s114, %s115
    %p129 = scmp.eq.s32.totalorder %s18, 1
    %p130 = por %p128, %p129
    %p132 = scmp.ne.s32.totalorder %s115, %s131
    %p133 = scmp.eq.s32.totalorder %s18, 0
    %p134 = por %p132, %p133
    %s135 = ssub.s32 %s12, %s19
    %p136 = scmp.eq.s32.totalorder %s135, 0
    %s138 = sadd.s32 %s137, 1
    %s139 = scalar_select %p136, %s137, %s138
    %p142 = pneg %p136
    %p143 = scmp.eq.s32.totalorder %s12, 1
    %p144 = por %p142, %p143
    %p145 = scmp.ne.s32.totalorder %s137, %s140
    %p146 = scmp.eq.s32.totalorder %s12, 0
    %p147 = por %p145, %p146
    %p148 = scmp.ne.s32.totalorder %s137, %s140
    %p149 = scmp.eq.s32.totalorder %s17, 1
    %p150 = por %p148, %p149
    %p151 = scmp.ne.s32.totalorder %s140, %s141
    %p152 = scmp.eq.s32.totalorder %s17, 0
    %p153 = por %p151, %p152
    %p154 = scmp.ne.s32.totalorder %s140, %s141
    %p155 = scmp.eq.s32.totalorder %s18, 1
    %p156 = por %p154, %p155
    %p158 = scmp.ne.s32.totalorder %s141, %s157
    %p159 = scmp.eq.s32.totalorder %s18, 0
    %p160 = por %p158, %p159
    %p161 = scmp.le.s32.totalorder 1, %s12
    %p162 = scmp.lt.s32.totalorder %s12, 3
    %p163 = pnand %p161, %p162
    %p164 = pneg %p163
    // Predicated region
    $region9: #{double_conv_with_bn.3} parent=5 // pred_check
      _
    $region10: #{double_conv_with_bn.3} parent=5 // pred_check_branch
      %166 = sbr.rel (%p163) target = $region12
    $region11: #{double_conv_with_bn.3} parent=5 // pred_region
      %s167 = ssub.s32 %s12, 1
      // Predicated region
      $region13: #{double_conv_with_bn.3} parent=11 // pred_check
        %p168 = pneg %p59
      $region14: #{double_conv_with_bn.3} parent=11 // pred_check_branch
        %170 = sbr.rel (%p168) target = $region16
      $region15: #{double_conv_with_bn.3} parent=11 // pred_region
        _
      $region16: #{double_conv_with_bn.3} parent=11 // pred_fallthru
        _
      // Predicated region
      $region17: #{double_conv_with_bn.3} parent=11 // pred_check
        %p171 = pneg %p80
      $region18: #{double_conv_with_bn.3} parent=11 // pred_check_branch
        %173 = sbr.rel (%p171) target = $region20
      $region19: #{double_conv_with_bn.3} parent=11 // pred_region
        _
      $region20: #{double_conv_with_bn.3} parent=11 // pred_fallthru
        _
      // Predicated region
      $region21: #{double_conv_with_bn.3} parent=11 // pred_check
        %p174 = pneg %p101
      $region22: #{double_conv_with_bn.3} parent=11 // pred_check_branch
        %176 = sbr.rel (%p174) target = $region24
      $region23: #{double_conv_with_bn.3} parent=11 // pred_region
        _
      $region24: #{double_conv_with_bn.3} parent=11 // pred_fallthru
        _
    $region12: #{double_conv_with_bn.3} parent=5 // pred_fallthru
      _
    %p177 = scmp.lt.s32.totalorder %s12, 2
    // Predicated region
    $region25: #{double_conv_with_bn.3} parent=5 // pred_check
      %p178 = pneg %p177
    $region26: #{double_conv_with_bn.3} parent=5 // pred_check_branch
      %180 = sbr.rel (%p178) target = $region28
    $region27: #{double_conv_with_bn.3} parent=5 // pred_region
      // Predicated region
      $region29: #{double_conv_with_bn.3} parent=27 // pred_check
        %p181 = pneg %p32
      $region30: #{double_conv_with_bn.3} parent=27 // pred_check_branch
        %183 = sbr.rel (%p181) target = $region32
      $region31: #{double_conv_with_bn.3} parent=27 // pred_region
        %p184 = scmp.lt.s32.totalorder %s12, 1
        %s185 = scalar_select %p184, %s12, 1
        %s186 = smul.addr %s185, 3
        %s187 = smul.addr %s186, 4
        %s188 = scalar_lea.vmem %s0, %s187
      $region32: #{double_conv_with_bn.3} parent=27 // pred_fallthru
        _
    $region28: #{double_conv_with_bn.3} parent=5 // pred_fallthru
      _
    %p189 = scmp.le.s32.totalorder 1, %s12
    %p190 = scmp.lt.s32.totalorder %s12, 3
    %p191 = pnand %p189, %p190
    %p192 = pneg %p191
    // Predicated region
    $region33: #{double_conv_with_bn.3} parent=5 // pred_check
      _
    $region34: #{double_conv_with_bn.3} parent=5 // pred_check_branch
      %194 = sbr.rel (%p191) target = $region36
    $region35: #{double_conv_with_bn.3} parent=5 // pred_region
      %s195 = ssub.s32 %s12, 1
      %p196 = scmp.lt.s32.totalorder %s17, 1
      %s197 = scalar_select %p196, %s17, 1
      %s198 = smul.addr %s197, 3
      %s199 = smul.addr %s198, 4
      %s200 = scalar_lea.vmem %s0, %s199
      %p201 = pneg %p38
      %p202 = pneg %p35
      %p203 = pneg %p59
      %p204 = pneg %p56
      %p205 = pneg %p80
      %p206 = pneg %p77
      %p207 = pneg %p101
      %p208 = pneg %p98
      %p209 = pneg %p127
      %p210 = pneg %p124
      %p211 = scmp.lt.s32.totalorder %s17, 1
      %s212 = scalar_select %p211, %s17, 1
      %s213 = smul.addr %s212, 3
      %s214 = smul.addr %s213, 8
      %s215 = scalar_lea.vmem %s4, %s214
      %p216 = pneg %p153
      %p217 = pneg %p150
      %p218 = scmp.lt.s32.totalorder %s17, 1
      %s219 = scalar_select %p218, %s17, 1
      %s220 = smul.addr %s219, 8
      %s221 = scalar_lea.vmem %s5, %s220
      %p222 = scmp.lt.s32.totalorder %s17, 1
      %s223 = scalar_select %p222, %s17, 1
      %s224 = smul.addr %s223, 3
      %s225 = smul.addr %s224, 4
      %s226 = scalar_lea.vmem %s0, %s225
      %p227 = scmp.lt.s32.totalorder %s17, 1
      %s228 = scalar_select %p227, %s17, 1
      %s229 = smul.addr %s228, 3
      %s230 = smul.addr %s229, 8
      %s231 = scalar_lea.vmem %s4, %s230
      %p232 = scmp.lt.s32.totalorder %s17, 1
      %s233 = scalar_select %p232, %s17, 1
      %s234 = smul.addr %s233, 8
      %s235 = scalar_lea.vmem %s5, %s234
      %v236 = vld [vmem:[%s1] sm:$0x7]
      %v237 = vld [vmem:[%s226] sm:$0xff]
      %v238 = vld [vmem:[%s226 + $0x8] sm:$0xf]
      %241 = vst [vmem:[#allocation1] ss:$2 sm:$0xff] %v237
      %s242 = scalar_lea.vmem [#allocation1], 16
      %243 = vst [vmem:[%s242] ss:$2 sm:$0xff] %v238
      %v244 = vld.sshfl [vmem:[#allocation1] sm:$0xff pattern:$0x75316420]
      %v245 = vld.sshfl [vmem:[#allocation1 + $0x8] sm:$0xff pattern:$0x75316420]
      %v246 = vld.sshfl [vmem:[#allocation1 + $0x10] sm:$0xff pattern:$0x75316420]
      %250 = vrot.lane.b32.xlu0 %v244, 19
      %v251 = vpop.permute.xlu0 %250
      %252 = vrot.lane.b32.xlu0 %v245, 19
      %v253 = vpop.permute.xlu0 %252
      %254 = vrot.lane.b32.xlu0 %v246, 19
      %v255 = vpop.permute.xlu0 %254
      %v256 = vlaneseq
      %v257 = vand.u32 %v256, 127
      %vm258 = vcmp.lt.s32.totalorder %v257, 19
      %v259 = vsel %vm258, %v253, %v255
      %v260 = vsel %vm258, %v251, %v253
      %v261 = vsel %vm258, %v255, %v251
      %v262 = vld [vmem:[%s2] sm:$0xff]
      %263 = vst [vmem:[#allocation1] ss:$2 sm:$0xff] %v237
      %s264 = scalar_lea.vmem [#allocation1], 16
      %265 = vst [vmem:[%s264] ss:$2 sm:$0xff] %v238
      %v266 = vld.sshfl [vmem:[#allocation1] sm:$0xff pattern:$0x75316420]
      %v267 = vld.sshfl [vmem:[#allocation1 + $0x8] sm:$0xff pattern:$0x75316420]
      %v268 = vld.sshfl [vmem:[#allocation1 + $0x10] sm:$0xff pattern:$0x75316420]
      %272 = vrot.lane.b32.xlu0 %v266, 18
      %v273 = vpop.permute.xlu0 %272
      %274 = vrot.lane.b32.xlu0 %v267, 18
      %v275 = vpop.permute.xlu0 %274
      %276 = vrot.lane.b32.xlu0 %v268, 18
      %v277 = vpop.permute.xlu0 %276
      %vm278 = vcmp.lt.s32.totalorder %v257, 18
      %v279 = vsel %vm278, %v275, %v277
      %v280 = vsel %vm278, %v273, %v275
      %v281 = vsel %vm278, %v277, %v273
      %s282 = scalar_lea.vmem %s2, 8
      %v283 = vld [vmem:[%s282] sm:$0xff]
      %vm284 = vcmask 31744
      %v286 = vsel %vm284, %v283, 0
      %vm288 = vcmask 1043456
      %v290 = vsel %vm288, %v281, 0
      %v293 = vsel %vm288, %v280, 0
      %v296 = vsel %vm288, %v279, 0
      %298 = vmatpush.msra.mxu0 0.0
      %299 = vmatpush.msra.mxu0 0.0
      %300 = vmatpush.msra.mxu0 0.0
      %301 = vmatpush.msra.mxu0 0.0
      %302 = vmatpush.msra.mxu0 0.0
      %303 = vmatpush.msra.mxu0 0.0
      %304 = vmatpush.msra.mxu0 0.0
      %305 = vmatpush.msra.mxu0 0.0
      %306 = vmatpush.msra.mxu0 0.0
      %307 = vmatpush.msra.mxu0 0.0
      %308 = vmatpush.msra.mxu0 0.0
      %309 = vmatpush.msra.mxu0 0.0
      %310 = vmatpush.msra.mxu0 0.0
      %311 = vmatpush.msra.mxu0 0.0
      %312 = vmatpush.msra.mxu0 0.0
      %313 = vmatpush.msra.mxu0 %v290
      %314 = vmatmul.f32.gmra.mxu0 %v286
      %v315 = vpop.f32.mrf.mxu0
      %v316 = vadd.f32 0.0, %v315
      %317 = vdwg.mxu0
      %318 = vmatpush.msra.mxu0 0.0
      %319 = vmatpush.msra.mxu0 0.0
      %320 = vmatpush.msra.mxu0 0.0
      %321 = vmatpush.msra.mxu0 0.0
      %322 = vmatpush.msra.mxu0 0.0
      %323 = vmatpush.msra.mxu0 0.0
      %324 = vmatpush.msra.mxu0 0.0
      %325 = vmatpush.msra.mxu0 0.0
      %326 = vmatpush.msra.mxu0 0.0
      %327 = vmatpush.msra.mxu0 0.0
      %328 = vmatpush.msra.mxu0 0.0
      %329 = vmatpush.msra.mxu0 0.0
      %330 = vmatpush.msra.mxu0 0.0
      %331 = vmatpush.msra.mxu0 0.0
      %332 = vmatpush.msra.mxu0 0.0
      %333 = vmatpush.msra.mxu0 %v293
      %334 = vmatmul.f32.gmra.mxu0 %v286
      %v335 = vpop.f32.mrf.mxu0
      %v336 = vadd.f32 0.0, %v335
      %337 = vdwg.mxu0
      %338 = vmatpush.msra.mxu0 0.0
      %339 = vmatpush.msra.mxu0 0.0
      %340 = vmatpush.msra.mxu0 0.0
      %341 = vmatpush.msra.mxu0 0.0
      %342 = vmatpush.msra.mxu0 0.0
      %343 = vmatpush.msra.mxu0 0.0
      %344 = vmatpush.msra.mxu0 0.0
      %345 = vmatpush.msra.mxu0 0.0
      %346 = vmatpush.msra.mxu0 0.0
      %347 = vmatpush.msra.mxu0 0.0
      %348 = vmatpush.msra.mxu0 0.0
      %349 = vmatpush.msra.mxu0 0.0
      %350 = vmatpush.msra.mxu0 0.0
      %351 = vmatpush.msra.mxu0 0.0
      %352 = vmatpush.msra.mxu0 0.0
      %353 = vmatpush.msra.mxu0 %v296
      %354 = vmatmul.f32.gmra.mxu0 %v286
      %v355 = vpop.f32.mrf.mxu0
      %v356 = vadd.f32 0.0, %v355
      %357 = vdwg.mxu0
      %v359 = vsel %vm284, %v262, 0
      %v362 = vsel %vm288, %v261, 0
      %v365 = vsel %vm288, %v260, 0
      %v368 = vsel %vm288, %v259, 0
      %370 = vmatpush.msra.mxu0 0.0
      %371 = vmatpush.msra.mxu0 0.0
      %372 = vmatpush.msra.mxu0 0.0
      %373 = vmatpush.msra.mxu0 0.0
      %374 = vmatpush.msra.mxu0 0.0
      %375 = vmatpush.msra.mxu0 0.0
      %376 = vmatpush.msra.mxu0 0.0
      %377 = vmatpush.msra.mxu0 0.0
      %378 = vmatpush.msra.mxu0 0.0
      %379 = vmatpush.msra.mxu0 0.0
      %380 = vmatpush.msra.mxu0 0.0
      %381 = vmatpush.msra.mxu0 0.0
      %382 = vmatpush.msra.mxu0 0.0
      %383 = vmatpush.msra.mxu0 0.0
      %384 = vmatpush.msra.mxu0 0.0
      %385 = vmatpush.msra.mxu0 %v362
      %386 = vmatmul.f32.gmra.mxu0 %v359
      %v387 = vpop.f32.mrf.mxu0
      %v388 = vadd.f32 %v316, %v387
      %389 = vdwg.mxu0
      %390 = vmatpush.msra.mxu0 0.0
      %391 = vmatpush.msra.mxu0 0.0
      %392 = vmatpush.msra.mxu0 0.0
      %393 = vmatpush.msra.mxu0 0.0
      %394 = vmatpush.msra.mxu0 0.0
      %395 = vmatpush.msra.mxu0 0.0
      %396 = vmatpush.msra.mxu0 0.0
      %397 = vmatpush.msra.mxu0 0.0
      %398 = vmatpush.msra.mxu0 0.0
      %399 = vmatpush.msra.mxu0 0.0
      %400 = vmatpush.msra.mxu0 0.0
      %401 = vmatpush.msra.mxu0 0.0
      %402 = vmatpush.msra.mxu0 0.0
      %403 = vmatpush.msra.mxu0 0.0
      %404 = vmatpush.msra.mxu0 0.0
      %405 = vmatpush.msra.mxu0 %v365
      %406 = vmatmul.f32.gmra.mxu0 %v359
      %v407 = vpop.f32.mrf.mxu0
      %v408 = vadd.f32 %v336, %v407
      %409 = vdwg.mxu0
      %410 = vmatpush.msra.mxu0 0.0
      %411 = vmatpush.msra.mxu0 0.0
      %412 = vmatpush.msra.mxu0 0.0
      %413 = vmatpush.msra.mxu0 0.0
      %414 = vmatpush.msra.mxu0 0.0
      %415 = vmatpush.msra.mxu0 0.0
      %416 = vmatpush.msra.mxu0 0.0
      %417 = vmatpush.msra.mxu0 0.0
      %418 = vmatpush.msra.mxu0 0.0
      %419 = vmatpush.msra.mxu0 0.0
      %420 = vmatpush.msra.mxu0 0.0
      %421 = vmatpush.msra.mxu0 0.0
      %422 = vmatpush.msra.mxu0 0.0
      %423 = vmatpush.msra.mxu0 0.0
      %424 = vmatpush.msra.mxu0 0.0
      %425 = vmatpush.msra.mxu0 %v368
      %426 = vmatmul.f32.gmra.mxu0 %v359
      %v427 = vpop.f32.mrf.mxu0
      %v428 = vadd.f32 %v356, %v427
      %429 = vdwg.mxu0
      %430 = vst [vmem:[#allocation1] ss:$2 sm:$0xff] %v237
      %s431 = scalar_lea.vmem [#allocation1], 16
      %432 = vst [vmem:[%s431] ss:$2 sm:$0xff] %v238
      %v433 = vld.sshfl [vmem:[#allocation1] sm:$0xff pattern:$0x75316420]
      %v434 = vld.sshfl [vmem:[#allocation1 + $0x8] sm:$0xff pattern:$0x75316420]
      %v435 = vld.sshfl [vmem:[#allocation1 + $0x10] sm:$0xff pattern:$0x75316420]
      %439 = vrot.lane.b32.xlu0 %v433, 17
      %v440 = vpop.permute.xlu0 %439
      %441 = vrot.lane.b32.xlu0 %v434, 17
      %v442 = vpop.permute.xlu0 %441
      %443 = vrot.lane.b32.xlu0 %v435, 17
      %v444 = vpop.permute.xlu0 %443
      %vm445 = vcmp.lt.s32.totalorder %v257, 17
      %v446 = vsel %vm445, %v442, %v444
      %v447 = vsel %vm445, %v440, %v442
      %v448 = vsel %vm445, %v444, %v440
      %s449 = scalar_lea.vmem %s2, 16
      %v450 = vld [vmem:[%s449] sm:$0xff]
      %v452 = vsel %vm284, %v450, 0
      %v455 = vsel %vm288, %v448, 0
      %v458 = vsel %vm288, %v447, 0
      %v461 = vsel %vm288, %v446, 0
      %463 = vmatpush.msra.mxu0 0.0
      %464 = vmatpush.msra.mxu0 0.0
      %465 = vmatpush.msra.mxu0 0.0
      %466 = vmatpush.msra.mxu0 0.0
      %467 = vmatpush.msra.mxu0 0.0
      %468 = vmatpush.msra.mxu0 0.0
      %469 = vmatpush.msra.mxu0 0.0
      %470 = vmatpush.msra.mxu0 0.0
      %471 = vmatpush.msra.mxu0 0.0
      %472 = vmatpush.msra.mxu0 0.0
      %473 = vmatpush.msra.mxu0 0.0
      %474 = vmatpush.msra.mxu0 0.0
      %475 = vmatpush.msra.mxu0 0.0
      %476 = vmatpush.msra.mxu0 0.0
      %477 = vmatpush.msra.mxu0 0.0
      %478 = vmatpush.msra.mxu0 %v455
      %479 = vmatmul.f32.gmra.mxu0 %v452
      %v480 = vpop.f32.mrf.mxu0
      %v481 = vadd.f32 0.0, %v480
      %482 = vdwg.mxu0
      %483 = vmatpush.msra.mxu0 0.0
      %484 = vmatpush.msra.mxu0 0.0
      %485 = vmatpush.msra.mxu0 0.0
      %486 = vmatpush.msra.mxu0 0.0
      %487 = vmatpush.msra.mxu0 0.0
      %488 = vmatpush.msra.mxu0 0.0
      %489 = vmatpush.msra.mxu0 0.0
      %490 = vmatpush.msra.mxu0 0.0
      %491 = vmatpush.msra.mxu0 0.0
      %492 = vmatpush.msra.mxu0 0.0
      %493 = vmatpush.msra.mxu0 0.0
      %494 = vmatpush.msra.mxu0 0.0
      %495 = vmatpush.msra.mxu0 0.0
      %496 = vmatpush.msra.mxu0 0.0
      %497 = vmatpush.msra.mxu0 0.0
      %498 = vmatpush.msra.mxu0 %v458
      %499 = vmatmul.f32.gmra.mxu0 %v452
      %v500 = vpop.f32.mrf.mxu0
      %v501 = vadd.f32 0.0, %v500
      %502 = vdwg.mxu0
      %503 = vmatpush.msra.mxu0 0.0
      %504 = vmatpush.msra.mxu0 0.0
      %505 = vmatpush.msra.mxu0 0.0
      %506 = vmatpush.msra.mxu0 0.0
      %507 = vmatpush.msra.mxu0 0.0
      %508 = vmatpush.msra.mxu0 0.0
      %509 = vmatpush.msra.mxu0 0.0
      %510 = vmatpush.msra.mxu0 0.0
      %511 = vmatpush.msra.mxu0 0.0
      %512 = vmatpush.msra.mxu0 0.0
      %513 = vmatpush.msra.mxu0 0.0
      %514 = vmatpush.msra.mxu0 0.0
      %515 = vmatpush.msra.mxu0 0.0
      %516 = vmatpush.msra.mxu0 0.0
      %517 = vmatpush.msra.mxu0 0.0
      %518 = vmatpush.msra.mxu0 %v461
      %519 = vmatmul.f32.gmra.mxu0 %v452
      %v520 = vpop.f32.mrf.mxu0
      %v521 = vadd.f32 0.0, %v520
      %522 = vdwg.mxu0
      %v523 = vadd.f32 %v388, %v481
      %v524 = vadd.f32 %v408, %v501
      %v525 = vadd.f32 %v428, %v521
      %526 = vst [vmem:[#allocation1] ss:$2 sm:$0xff] %v237
      %s527 = scalar_lea.vmem [#allocation1], 16
      %528 = vst [vmem:[%s527] ss:$2 sm:$0xff] %v238
      %v529 = vld.sshfl [vmem:[#allocation1] sm:$0xff pattern:$0x75316420]
      %v530 = vld.sshfl [vmem:[#allocation1 + $0x8] sm:$0xff pattern:$0x75316420]
      %v531 = vld.sshfl [vmem:[#allocation1 + $0x10] sm:$0xff pattern:$0x75316420]
      %535 = vrot.lane.b32.xlu0 %v529, 1
      %v536 = vpop.permute.xlu0 %535
      %537 = vrot.lane.b32.xlu0 %v530, 1
      %v538 = vpop.permute.xlu0 %537
      %539 = vrot.lane.b32.xlu0 %v531, 1
      %v540 = vpop.permute.xlu0 %539
      %vm541 = vcmp.lt.s32.totalorder %v257, 1
      %v542 = vsel %vm541, %v538, %v540
      %v543 = vsel %vm541, %v536, %v538
      %v544 = vsel %vm541, %v540, %v536
      %s545 = scalar_lea.vmem %s2, 24
      %v546 = vld [vmem:[%s545] sm:$0xff]
      %v548 = vsel %vm284, %v546, 0
      %v551 = vsel %vm288, %v544, 0
      %v554 = vsel %vm288, %v543, 0
      %v557 = vsel %vm288, %v542, 0
      %559 = vmatpush.msra.mxu0 0.0
      %560 = vmatpush.msra.mxu0 0.0
      %561 = vmatpush.msra.mxu0 0.0
      %562 = vmatpush.msra.mxu0 0.0
      %563 = vmatpush.msra.mxu0 0.0
      %564 = vmatpush.msra.mxu0 0.0
      %565 = vmatpush.msra.mxu0 0.0
      %566 = vmatpush.msra.mxu0 0.0
      %567 = vmatpush.msra.mxu0 0.0
      %568 = vmatpush.msra.mxu0 0.0
      %569 = vmatpush.msra.mxu0 0.0
      %570 = vmatpush.msra.mxu0 0.0
      %571 = vmatpush.msra.mxu0 0.0
      %572 = vmatpush.msra.mxu0 0.0
      %573 = vmatpush.msra.mxu0 0.0
      %574 = vmatpush.msra.mxu0 %v551
      %575 = vmatmul.f32.gmra.mxu0 %v548
      %v576 = vpop.f32.mrf.mxu0
      %v577 = vadd.f32 0.0, %v576
      %578 = vdwg.mxu0
      %579 = vmatpush.msra.mxu0 0.0
      %580 = vmatpush.msra.mxu0 0.0
      %581 = vmatpush.msra.mxu0 0.0
      %582 = vmatpush.msra.mxu0 0.0
      %583 = vmatpush.msra.mxu0 0.0
      %584 = vmatpush.msra.mxu0 0.0
      %585 = vmatpush.msra.mxu0 0.0
      %586 = vmatpush.msra.mxu0 0.0
      %587 = vmatpush.msra.mxu0 0.0
      %588 = vmatpush.msra.mxu0 0.0
      %589 = vmatpush.msra.mxu0 0.0
      %590 = vmatpush.msra.mxu0 0.0
      %591 = vmatpush.msra.mxu0 0.0
      %592 = vmatpush.msra.mxu0 0.0
      %593 = vmatpush.msra.mxu0 0.0
      %594 = vmatpush.msra.mxu0 %v554
      %595 = vmatmul.f32.gmra.mxu0 %v548
      %v596 = vpop.f32.mrf.mxu0
      %v597 = vadd.f32 0.0, %v596
      %598 = vdwg.mxu0
      %599 = vmatpush.msra.mxu0 0.0
      %600 = vmatpush.msra.mxu0 0.0
      %601 = vmatpush.msra.mxu0 0.0
      %602 = vmatpush.msra.mxu0 0.0
      %603 = vmatpush.msra.mxu0 0.0
      %604 = vmatpush.msra.mxu0 0.0
      %605 = vmatpush.msra.mxu0 0.0
      %606 = vmatpush.msra.mxu0 0.0
      %607 = vmatpush.msra.mxu0 0.0
      %608 = vmatpush.msra.mxu0 0.0
      %609 = vmatpush.msra.mxu0 0.0
      %610 = vmatpush.msra.mxu0 0.0
      %611 = vmatpush.msra.mxu0 0.0
      %612 = vmatpush.msra.mxu0 0.0
      %613 = vmatpush.msra.mxu0 0.0
      %614 = vmatpush.msra.mxu0 %v557
      %615 = vmatmul.f32.gmra.mxu0 %v548
      %v616 = vpop.f32.mrf.mxu0
      %v617 = vadd.f32 0.0, %v616
      %618 = vdwg.mxu0
      %v619 = vadd.f32 %v523, %v577
      %v620 = vadd.f32 %v524, %v597
      %v621 = vadd.f32 %v525, %v617
      %s622 = scalar_lea.vmem %s2, 32
      %v623 = vld [vmem:[%s622] sm:$0xff]
      %624 = vst [vmem:[#allocation1] ss:$2 sm:$0xff] %v237
      %s625 = scalar_lea.vmem [#allocation1], 16
      %626 = vst [vmem:[%s625] ss:$2 sm:$0xff] %v238
      %v627 = vld.sshfl [vmem:[#allocation1] sm:$0xff pattern:$0x75316420]
      %v628 = vld.sshfl [vmem:[#allocation1 + $0x8] sm:$0xff pattern:$0x75316420]
      %v629 = vld.sshfl [vmem:[#allocation1 + $0x10] sm:$0xff pattern:$0x75316420]
      %v631 = vsel %vm284, %v623, 0
      %v633 = vsel %vm288, %v627, 0
      %v635 = vsel %vm288, %v628, 0
      %v637 = vsel %vm288, %v629, 0
      %639 = vmatpush.msra.mxu0 0.0
      %640 = vmatpush.msra.mxu0 0.0
      %641 = vmatpush.msra.mxu0 0.0
      %642 = vmatpush.msra.mxu0 0.0
      %643 = vmatpush.msra.mxu0 0.0
      %644 = vmatpush.msra.mxu0 0.0
      %645 = vmatpush.msra.mxu0 0.0
      %646 = vmatpush.msra.mxu0 0.0
      %647 = vmatpush.msra.mxu0 0.0
      %648 = vmatpush.msra.mxu0 0.0
      %649 = vmatpush.msra.mxu0 0.0
      %650 = vmatpush.msra.mxu0 0.0
      %651 = vmatpush.msra.mxu0 0.0
      %652 = vmatpush.msra.mxu0 0.0
      %653 = vmatpush.msra.mxu0 0.0
      %654 = vmatpush.msra.mxu0 %v633
      %655 = vmatmul.f32.gmra.mxu0 %v631
      %v656 = vpop.f32.mrf.mxu0
      %v657 = vadd.f32 0.0, %v656
      %658 = vdwg.mxu0
      %659 = vmatpush.msra.mxu0 0.0
      %660 = vmatpush.msra.mxu0 0.0
      %661 = vmatpush.msra.mxu0 0.0
      %662 = vmatpush.msra.mxu0 0.0
      %663 = vmatpush.msra.mxu0 0.0
      %664 = vmatpush.msra.mxu0 0.0
      %665 = vmatpush.msra.mxu0 0.0
      %666 = vmatpush.msra.mxu0 0.0
      %667 = vmatpush.msra.mxu0 0.0
      %668 = vmatpush.msra.mxu0 0.0
      %669 = vmatpush.msra.mxu0 0.0
      %670 = vmatpush.msra.mxu0 0.0
      %671 = vmatpush.msra.mxu0 0.0
      %672 = vmatpush.msra.mxu0 0.0
      %673 = vmatpush.msra.mxu0 0.0
      %674 = vmatpush.msra.mxu0 %v635
      %675 = vmatmul.f32.gmra.mxu0 %v631
      %v676 = vpop.f32.mrf.mxu0
      %v677 = vadd.f32 0.0, %v676
      %678 = vdwg.mxu0
      %679 = vmatpush.msra.mxu0 0.0
      %680 = vmatpush.msra.mxu0 0.0
      %681 = vmatpush.msra.mxu0 0.0
      %682 = vmatpush.msra.mxu0 0.0
      %683 = vmatpush.msra.mxu0 0.0
      %684 = vmatpush.msra.mxu0 0.0
      %685 = vmatpush.msra.mxu0 0.0
      %686 = vmatpush.msra.mxu0 0.0
      %687 = vmatpush.msra.mxu0 0.0
      %688 = vmatpush.msra.mxu0 0.0
      %689 = vmatpush.msra.mxu0 0.0
      %690 = vmatpush.msra.mxu0 0.0
      %691 = vmatpush.msra.mxu0 0.0
      %692 = vmatpush.msra.mxu0 0.0
      %693 = vmatpush.msra.mxu0 0.0
      %694 = vmatpush.msra.mxu0 %v637
      %695 = vmatmul.f32.gmra.mxu0 %v631
      %v696 = vpop.f32.mrf.mxu0
      %v697 = vadd.f32 0.0, %v696
      %698 = vdwg.mxu0
      %v699 = vadd.f32 %v619, %v657
      %v700 = vadd.f32 %v620, %v677
      %v701 = vadd.f32 %v621, %v697
      %702 = vst [vmem:[#allocation1] ss:$2 sm:$0xff] %v237
      %s703 = scalar_lea.vmem [#allocation1], 16
      %704 = vst [vmem:[%s703] ss:$2 sm:$0xff] %v238
      %v705 = vld.sshfl [vmem:[#allocation1] sm:$0xff pattern:$0x75316420]
      %v706 = vld.sshfl [vmem:[#allocation1 + $0x8] sm:$0xff pattern:$0x75316420]
      %v707 = vld.sshfl [vmem:[#allocation1 + $0x10] sm:$0xff pattern:$0x75316420]
      %711 = vrot.lane.b32.xlu0 %v705, 127
      %v712 = vpop.permute.xlu0 %711
      %713 = vrot.lane.b32.xlu0 %v706, 127
      %v714 = vpop.permute.xlu0 %713
      %715 = vrot.lane.b32.xlu0 %v707, 127
      %v716 = vpop.permute.xlu0 %715
      %vm717 = vcmp.lt.s32.totalorder %v257, 127
      %v718 = vsel %vm717, %v714, %v716
      %v719 = vsel %vm717, %v712, %v714
      %v720 = vsel %vm717, %v716, %v712
      %s721 = scalar_lea.vmem %s2, 40
      %v722 = vld [vmem:[%s721] sm:$0xff]
      %v724 = vsel %vm284, %v722, 0
      %v727 = vsel %vm288, %v719, 0
      %v730 = vsel %vm288, %v718, 0
      %v733 = vsel %vm288, %v720, 0
      %735 = vmatpush.msra.mxu0 0.0
      %736 = vmatpush.msra.mxu0 0.0
      %737 = vmatpush.msra.mxu0 0.0
      %738 = vmatpush.msra.mxu0 0.0
      %739 = vmatpush.msra.mxu0 0.0
      %740 = vmatpush.msra.mxu0 0.0
      %741 = vmatpush.msra.mxu0 0.0
      %742 = vmatpush.msra.mxu0 0.0
      %743 = vmatpush.msra.mxu0 0.0
      %744 = vmatpush.msra.mxu0 0.0
      %745 = vmatpush.msra.mxu0 0.0
      %746 = vmatpush.msra.mxu0 0.0
      %747 = vmatpush.msra.mxu0 0.0
      %748 = vmatpush.msra.mxu0 0.0
      %749 = vmatpush.msra.mxu0 0.0
      %750 = vmatpush.msra.mxu0 %v727
      %751 = vmatmul.f32.gmra.mxu0 %v724
      %v752 = vpop.f32.mrf.mxu0
      %v753 = vadd.f32 0.0, %v752
      %754 = vdwg.mxu0
      %755 = vmatpush.msra.mxu0 0.0
      %756 = vmatpush.msra.mxu0 0.0
      %757 = vmatpush.msra.mxu0 0.0
      %758 = vmatpush.msra.mxu0 0.0
      %759 = vmatpush.msra.mxu0 0.0
      %760 = vmatpush.msra.mxu0 0.0
      %761 = vmatpush.msra.mxu0 0.0
      %762 = vmatpush.msra.mxu0 0.0
      %763 = vmatpush.msra.mxu0 0.0
      %764 = vmatpush.msra.mxu0 0.0
      %765 = vmatpush.msra.mxu0 0.0
      %766 = vmatpush.msra.mxu0 0.0
      %767 = vmatpush.msra.mxu0 0.0
      %768 = vmatpush.msra.mxu0 0.0
      %769 = vmatpush.msra.mxu0 0.0
      %770 = vmatpush.msra.mxu0 %v730
      %771 = vmatmul.f32.gmra.mxu0 %v724
      %v772 = vpop.f32.mrf.mxu0
      %v773 = vadd.f32 0.0, %v772
      %774 = vdwg.mxu0
      %775 = vmatpush.msra.mxu0 0.0
      %776 = vmatpush.msra.mxu0 0.0
      %777 = vmatpush.msra.mxu0 0.0
      %778 = vmatpush.msra.mxu0 0.0
      %779 = vmatpush.msra.mxu0 0.0
      %780 = vmatpush.msra.mxu0 0.0
      %781 = vmatpush.msra.mxu0 0.0
      %782 = vmatpush.msra.mxu0 0.0
      %783 = vmatpush.msra.mxu0 0.0
      %784 = vmatpush.msra.mxu0 0.0
      %785 = vmatpush.msra.mxu0 0.0
      %786 = vmatpush.msra.mxu0 0.0
      %787 = vmatpush.msra.mxu0 0.0
      %788 = vmatpush.msra.mxu0 0.0
      %789 = vmatpush.msra.mxu0 0.0
      %790 = vmatpush.msra.mxu0 %v733
      %791 = vmatmul.f32.gmra.mxu0 %v724
      %v792 = vpop.f32.mrf.mxu0
      %v793 = vadd.f32 0.0, %v792
      %794 = vdwg.mxu0
      %v795 = vadd.f32 %v699, %v753
      %v796 = vadd.f32 %v700, %v773
      %v797 = vadd.f32 %v701, %v793
      %798 = vst [vmem:[#allocation1] ss:$2 sm:$0xff] %v237
      %s799 = scalar_lea.vmem [#allocation1], 16
      %800 = vst [vmem:[%s799] ss:$2 sm:$0xff] %v238
      %v801 = vld.sshfl [vmem:[#allocation1] sm:$0xff pattern:$0x75316420]
      %v802 = vld.sshfl [vmem:[#allocation1 + $0x8] sm:$0xff pattern:$0x75316420]
      %v803 = vld.sshfl [vmem:[#allocation1 + $0x10] sm:$0xff pattern:$0x75316420]
      %807 = vrot.lane.b32.xlu0 %v801, 111
      %v808 = vpop.permute.xlu0 %807
      %809 = vrot.lane.b32.xlu0 %v802, 111
      %v810 = vpop.permute.xlu0 %809
      %811 = vrot.lane.b32.xlu0 %v803, 111
      %v812 = vpop.permute.xlu0 %811
      %vm813 = vcmp.lt.s32.totalorder %v257, 111
      %v814 = vsel %vm813, %v810, %v812
      %v815 = vsel %vm813, %v808, %v810
      %v816 = vsel %vm813, %v812, %v808
      %s817 = scalar_lea.vmem %s2, 48
      %v818 = vld [vmem:[%s817] sm:$0xff]
      %v820 = vsel %vm284, %v818, 0
      %v823 = vsel %vm288, %v815, 0
      %v826 = vsel %vm288, %v814, 0
      %v829 = vsel %vm288, %v816, 0
      %831 = vmatpush.msra.mxu0 0.0
      %832 = vmatpush.msra.mxu0 0.0
      %833 = vmatpush.msra.mxu0 0.0
      %834 = vmatpush.msra.mxu0 0.0
      %835 = vmatpush.msra.mxu0 0.0
      %836 = vmatpush.msra.mxu0 0.0
      %837 = vmatpush.msra.mxu0 0.0
      %838 = vmatpush.msra.mxu0 0.0
      %839 = vmatpush.msra.mxu0 0.0
      %840 = vmatpush.msra.mxu0 0.0
      %841 = vmatpush.msra.mxu0 0.0
      %842 = vmatpush.msra.mxu0 0.0
      %843 = vmatpush.msra.mxu0 0.0
      %844 = vmatpush.msra.mxu0 0.0
      %845 = vmatpush.msra.mxu0 0.0
      %846 = vmatpush.msra.mxu0 %v823
      %847 = vmatmul.f32.gmra.mxu0 %v820
      %v848 = vpop.f32.mrf.mxu0
      %v849 = vadd.f32 0.0, %v848
      %850 = vdwg.mxu0
      %851 = vmatpush.msra.mxu0 0.0
      %852 = vmatpush.msra.mxu0 0.0
      %853 = vmatpush.msra.mxu0 0.0
      %854 = vmatpush.msra.mxu0 0.0
      %855 = vmatpush.msra.mxu0 0.0
      %856 = vmatpush.msra.mxu0 0.0
      %857 = vmatpush.msra.mxu0 0.0
      %858 = vmatpush.msra.mxu0 0.0
      %859 = vmatpush.msra.mxu0 0.0
      %860 = vmatpush.msra.mxu0 0.0
      %861 = vmatpush.msra.mxu0 0.0
      %862 = vmatpush.msra.mxu0 0.0
      %863 = vmatpush.msra.mxu0 0.0
      %864 = vmatpush.msra.mxu0 0.0
      %865 = vmatpush.msra.mxu0 0.0
      %866 = vmatpush.msra.mxu0 %v826
      %867 = vmatmul.f32.gmra.mxu0 %v820
      %v868 = vpop.f32.mrf.mxu0
      %v869 = vadd.f32 0.0, %v868
      %870 = vdwg.mxu0
      %871 = vmatpush.msra.mxu0 0.0
      %872 = vmatpush.msra.mxu0 0.0
      %873 = vmatpush.msra.mxu0 0.0
      %874 = vmatpush.msra.mxu0 0.0
      %875 = vmatpush.msra.mxu0 0.0
      %876 = vmatpush.msra.mxu0 0.0
      %877 = vmatpush.msra.mxu0 0.0
      %878 = vmatpush.msra.mxu0 0.0
      %879 = vmatpush.msra.mxu0 0.0
      %880 = vmatpush.msra.mxu0 0.0
      %881 = vmatpush.msra.mxu0 0.0
      %882 = vmatpush.msra.mxu0 0.0
      %883 = vmatpush.msra.mxu0 0.0
      %884 = vmatpush.msra.mxu0 0.0
      %885 = vmatpush.msra.mxu0 0.0
      %886 = vmatpush.msra.mxu0 %v829
      %887 = vmatmul.f32.gmra.mxu0 %v820
      %v888 = vpop.f32.mrf.mxu0
      %v889 = vadd.f32 0.0, %v888
      %890 = vdwg.mxu0
      %v891 = vadd.f32 %v795, %v849
      %v892 = vadd.f32 %v796, %v869
      %v893 = vadd.f32 %v797, %v889
      %894 = vst [vmem:[#allocation1] ss:$2 sm:$0xff] %v237
      %s895 = scalar_lea.vmem [#allocation1], 16
      %896 = vst [vmem:[%s895] ss:$2 sm:$0xff] %v238
      %v897 = vld.sshfl [vmem:[#allocation1] sm:$0xff pattern:$0x75316420]
      %v898 = vld.sshfl [vmem:[#allocation1 + $0x8] sm:$0xff pattern:$0x75316420]
      %v899 = vld.sshfl [vmem:[#allocation1 + $0x10] sm:$0xff pattern:$0x75316420]
      %903 = vrot.lane.b32.xlu0 %v897, 110
      %v904 = vpop.permute.xlu0 %903
      %905 = vrot.lane.b32.xlu0 %v898, 110
      %v906 = vpop.permute.xlu0 %905
      %907 = vrot.lane.b32.xlu0 %v899, 110
      %v908 = vpop.permute.xlu0 %907
      %vm909 = vcmp.lt.s32.totalorder %v257, 110
      %v910 = vsel %vm909, %v906, %v908
      %v911 = vsel %vm909, %v904, %v906
      %v912 = vsel %vm909, %v908, %v904
      %s913 = scalar_lea.vmem %s2, 56
      %v914 = vld [vmem:[%s913] sm:$0xff]
      %v916 = vsel %vm284, %v914, 0
      %v919 = vsel %vm288, %v911, 0
      %v922 = vsel %vm288, %v910, 0
      %v925 = vsel %vm288, %v912, 0
      %927 = vmatpush.msra.mxu0 0.0
      %928 = vmatpush.msra.mxu0 0.0
      %929 = vmatpush.msra.mxu0 0.0
      %930 = vmatpush.msra.mxu0 0.0
      %931 = vmatpush.msra.mxu0 0.0
      %932 = vmatpush.msra.mxu0 0.0
      %933 = vmatpush.msra.mxu0 0.0
      %934 = vmatpush.msra.mxu0 0.0
      %935 = vmatpush.msra.mxu0 0.0
      %936 = vmatpush.msra.mxu0 0.0
      %937 = vmatpush.msra.mxu0 0.0
      %938 = vmatpush.msra.mxu0 0.0
      %939 = vmatpush.msra.mxu0 0.0
      %940 = vmatpush.msra.mxu0 0.0
      %941 = vmatpush.msra.mxu0 0.0
      %942 = vmatpush.msra.mxu0 %v919
      %943 = vmatmul.f32.gmra.mxu0 %v916
      %v944 = vpop.f32.mrf.mxu0
      %v945 = vadd.f32 0.0, %v944
      %946 = vdwg.mxu0
      %947 = vmatpush.msra.mxu0 0.0
      %948 = vmatpush.msra.mxu0 0.0
      %949 = vmatpush.msra.mxu0 0.0
      %950 = vmatpush.msra.mxu0 0.0
      %951 = vmatpush.msra.mxu0 0.0
      %952 = vmatpush.msra.mxu0 0.0
      %953 = vmatpush.msra.mxu0 0.0
      %954 = vmatpush.msra.mxu0 0.0
      %955 = vmatpush.msra.mxu0 0.0
      %956 = vmatpush.msra.mxu0 0.0
      %957 = vmatpush.msra.mxu0 0.0
      %958 = vmatpush.msra.mxu0 0.0
      %959 = vmatpush.msra.mxu0 0.0
      %960 = vmatpush.msra.mxu0 0.0
      %961 = vmatpush.msra.mxu0 0.0
      %962 = vmatpush.msra.mxu0 %v922
      %963 = vmatmul.f32.gmra.mxu0 %v916
      %v964 = vpop.f32.mrf.mxu0
      %v965 = vadd.f32 0.0, %v964
      %966 = vdwg.mxu0
      %967 = vmatpush.msra.mxu0 0.0
      %968 = vmatpush.msra.mxu0 0.0
      %969 = vmatpush.msra.mxu0 0.0
      %970 = vmatpush.msra.mxu0 0.0
      %971 = vmatpush.msra.mxu0 0.0
      %972 = vmatpush.msra.mxu0 0.0
      %973 = vmatpush.msra.mxu0 0.0
      %974 = vmatpush.msra.mxu0 0.0
      %975 = vmatpush.msra.mxu0 0.0
      %976 = vmatpush.msra.mxu0 0.0
      %977 = vmatpush.msra.mxu0 0.0
      %978 = vmatpush.msra.mxu0 0.0
      %979 = vmatpush.msra.mxu0 0.0
      %980 = vmatpush.msra.mxu0 0.0
      %981 = vmatpush.msra.mxu0 0.0
      %982 = vmatpush.msra.mxu0 %v925
      %983 = vmatmul.f32.gmra.mxu0 %v916
      %v984 = vpop.f32.mrf.mxu0
      %v985 = vadd.f32 0.0, %v984
      %986 = vdwg.mxu0
      %v987 = vadd.f32 %v891, %v945
      %v988 = vadd.f32 %v892, %v965
      %v989 = vadd.f32 %v893, %v985
      %990 = vst [vmem:[#allocation1] ss:$2 sm:$0xff] %v237
      %s991 = scalar_lea.vmem [#allocation1], 16
      %992 = vst [vmem:[%s991] ss:$2 sm:$0xff] %v238
      %v993 = vld.sshfl [vmem:[#allocation1] sm:$0xff pattern:$0x75316420]
      %v994 = vld.sshfl [vmem:[#allocation1 + $0x8] sm:$0xff pattern:$0x75316420]
      %v995 = vld.sshfl [vmem:[#allocation1 + $0x10] sm:$0xff pattern:$0x75316420]
      %999 = vrot.lane.b32.xlu0 %v993, 109
      %v1000 = vpop.permute.xlu0 %999
      %1001 = vrot.lane.b32.xlu0 %v994, 109
      %v1002 = vpop.permute.xlu0 %1001
      %1003 = vrot.lane.b32.xlu0 %v995, 109
      %v1004 = vpop.permute.xlu0 %1003
      %vm1005 = vcmp.lt.s32.totalorder %v257, 109
      %v1006 = vsel %vm1005, %v1002, %v1004
      %v1007 = vsel %vm1005, %v1000, %v1002
      %v1008 = vsel %vm1005, %v1004, %v1000
      %s1009 = scalar_lea.vmem %s2, 64
      %v1010 = vld [vmem:[%s1009] sm:$0xff]
      %v1012 = vsel %vm284, %v1010, 0
      %v1015 = vsel %vm288, %v1007, 0
      %v1018 = vsel %vm288, %v1006, 0
      %v1021 = vsel %vm288, %v1008, 0
      %1023 = vmatpush.msra.mxu0 0.0
      %1024 = vmatpush.msra.mxu0 0.0
      %1025 = vmatpush.msra.mxu0 0.0
      %1026 = vmatpush.msra.mxu0 0.0
      %1027 = vmatpush.msra.mxu0 0.0
      %1028 = vmatpush.msra.mxu0 0.0
      %1029 = vmatpush.msra.mxu0 0.0
      %1030 = vmatpush.msra.mxu0 0.0
      %1031 = vmatpush.msra.mxu0 0.0
      %1032 = vmatpush.msra.mxu0 0.0
      %1033 = vmatpush.msra.mxu0 0.0
      %1034 = vmatpush.msra.mxu0 0.0
      %1035 = vmatpush.msra.mxu0 0.0
      %1036 = vmatpush.msra.mxu0 0.0
      %1037 = vmatpush.msra.mxu0 0.0
      %1038 = vmatpush.msra.mxu0 %v1015
      %1039 = vmatmul.f32.gmra.mxu0 %v1012
      %v1040 = vpop.f32.mrf.mxu0
      %v1041 = vadd.f32 0.0, %v1040
      %1042 = vdwg.mxu0
      %1043 = vmatpush.msra.mxu0 0.0
      %1044 = vmatpush.msra.mxu0 0.0
      %1045 = vmatpush.msra.mxu0 0.0
      %1046 = vmatpush.msra.mxu0 0.0
      %1047 = vmatpush.msra.mxu0 0.0
      %1048 = vmatpush.msra.mxu0 0.0
      %1049 = vmatpush.msra.mxu0 0.0
      %1050 = vmatpush.msra.mxu0 0.0
      %1051 = vmatpush.msra.mxu0 0.0
      %1052 = vmatpush.msra.mxu0 0.0
      %1053 = vmatpush.msra.mxu0 0.0
      %1054 = vmatpush.msra.mxu0 0.0
      %1055 = vmatpush.msra.mxu0 0.0
      %1056 = vmatpush.msra.mxu0 0.0
      %1057 = vmatpush.msra.mxu0 0.0
      %1058 = vmatpush.msra.mxu0 %v1018
      %1059 = vmatmul.f32.gmra.mxu0 %v1012
      %v1060 = vpop.f32.mrf.mxu0
      %v1061 = vadd.f32 0.0, %v1060
      %1062 = vdwg.mxu0
      %1063 = vmatpush.msra.mxu0 0.0
      %1064 = vmatpush.msra.mxu0 0.0
      %1065 = vmatpush.msra.mxu0 0.0
      %1066 = vmatpush.msra.mxu0 0.0
      %1067 = vmatpush.msra.mxu0 0.0
      %1068 = vmatpush.msra.mxu0 0.0
      %1069 = vmatpush.msra.mxu0 0.0
      %1070 = vmatpush.msra.mxu0 0.0
      %1071 = vmatpush.msra.mxu0 0.0
      %1072 = vmatpush.msra.mxu0 0.0
      %1073 = vmatpush.msra.mxu0 0.0
      %1074 = vmatpush.msra.mxu0 0.0
      %1075 = vmatpush.msra.mxu0 0.0
      %1076 = vmatpush.msra.mxu0 0.0
      %1077 = vmatpush.msra.mxu0 0.0
      %1078 = vmatpush.msra.mxu0 %v1021
      %1079 = vmatmul.f32.gmra.mxu0 %v1012
      %v1080 = vpop.f32.mrf.mxu0
      %v1081 = vadd.f32 0.0, %v1080
      %1082 = vdwg.mxu0
      %v1083 = vadd.f32 %v987, %v1041
      %v1084 = vadd.f32 %v988, %v1061
      %v1085 = vadd.f32 %v989, %v1081
      %v1086 = vld [vmem:[%s3] sm:$0xff]
      %1088 = vset.pattern.permute.xlu0 0
      %1089 = vperm.xlu0 %1088, %v1086
      %v1090 = vpop.permute.xlu0 %1089
      %v1092 = vadd.f32 %v1083, %v1090
      %v1093 = vadd.f32 %v1084, %v1090
      %v1094 = vadd.f32 %v1085, %v1090
      %v1095 = vmax.f32 %v1092, 0.0
      %v1096 = vmax.f32 %v1093, 0.0
      %v1097 = vmax.f32 %v1094, 0.0
      %v1099 = vperm.slane %v236, 0
      %v1100 = vperm.slane %v236, 1
      %v1101 = vperm.slane %v236, 2
      %v1105 = vmul.f32 %v1095, %v1099
      %v1106 = vmul.f32 %v1096, %v1100
      %v1107 = vmul.f32 %v1097, %v1101
      %1108 = vst [vmem:[%s231] sm:$0xff] %v1105
      %1109 = vst [vmem:[%s231 + $0x8] sm:$0xff] %v1106
      %1110 = vst [vmem:[%s231 + $0x10] sm:$0xff] %v1107
      %v1111 = vadd.f32 %v1105, %v1106
      %v1112 = vadd.f32 %v1111, %v1107
      %1113 = vadd.xlane.f32.xlu0 %v1112
      %v1114 = vpop.xlane.xlu0 %1113
      %v1115 = vmul.f32 %v1105, %v1105
      %v1116 = vmul.f32 %v1106, %v1106
      %v1117 = vmul.f32 %v1107, %v1107
      %v1118 = vadd.f32 %v1115, %v1116
      %v1119 = vadd.f32 %v1118, %v1117
      %1120 = vadd.xlane.f32.xlu0 %v1119
      %v1121 = vpop.xlane.xlu0 %1120
      %vm1122 = vcmask 7168
      %v1123 = vsel %vm1122, %v1114, %v1121
      %vm1124 = vcmask 15360
      %v1125 = vsel %vm1124, %v1123, 0.0
      %1126 = vst [vmem:[%s235] sm:$0xff] %v1125
      %p1127 = scmp.lt.s32.totalorder %s17, 1
      %s1128 = scalar_select %p1127, %s17, 1
      %s1129 = smul.addr %s1128, 3
      %s1130 = smul.addr %s1129, 8
      %s1131 = scalar_lea.vmem %s4, %s1130
      %p1132 = scmp.lt.s32.totalorder %s17, 1
      %s1133 = scalar_select %p1132, %s17, 1
      %s1134 = smul.addr %s1133, 8
      %s1135 = scalar_lea.vmem %s5, %s1134
      // Predicated region
      $region37: #{double_conv_with_bn.3} parent=35 // pred_check
        %p1136 = pneg %p124
      $region38: #{double_conv_with_bn.3} parent=35 // pred_check_branch
        %1138 = sbr.rel (%p1136) target = $region40
      $region39: #{double_conv_with_bn.3} parent=35 // pred_region
        _
      $region40: #{double_conv_with_bn.3} parent=35 // pred_fallthru
        _
      // Predicated region
      $region41: #{double_conv_with_bn.3} parent=35 // pred_check
        %p1139 = pneg %p150
      $region42: #{double_conv_with_bn.3} parent=35 // pred_check_branch
        %1141 = sbr.rel (%p1139) target = $region44
      $region43: #{double_conv_with_bn.3} parent=35 // pred_region
        _
      $region44: #{double_conv_with_bn.3} parent=35 // pred_fallthru
        _
    $region36: #{double_conv_with_bn.3} parent=5 // pred_fallthru
      _
    %p1142 = scmp.le.s32.totalorder 2, %s12
    // Predicated region
    $region45: #{double_conv_with_bn.3} parent=5 // pred_check
      %p1143 = pneg %p1142
    $region46: #{double_conv_with_bn.3} parent=5 // pred_check_branch
      %1145 = sbr.rel (%p1143) target = $region48
    $region47: #{double_conv_with_bn.3} parent=5 // pred_region
      %s1146 = ssub.s32 %s12, 2
      // Predicated region
      $region49: #{double_conv_with_bn.3} parent=47 // pred_check
        %p1147 = pneg %p130
      $region50: #{double_conv_with_bn.3} parent=47 // pred_check_branch
        %1149 = sbr.rel (%p1147) target = $region52
      $region51: #{double_conv_with_bn.3} parent=47 // pred_region
        %p1150 = scmp.lt.s32.totalorder %s18, 1
        %s1151 = scalar_select %p1150, %s18, 1
        %s1152 = smul.addr %s1151, 3
        %s1153 = smul.addr %s1152, 8
        %s1154 = scalar_lea.vmem %s4, %s1153
      $region52: #{double_conv_with_bn.3} parent=47 // pred_fallthru
        _
      // Predicated region
      $region53: #{double_conv_with_bn.3} parent=47 // pred_check
        %p1155 = pneg %p156
      $region54: #{double_conv_with_bn.3} parent=47 // pred_check_branch
        %1157 = sbr.rel (%p1155) target = $region56
      $region55: #{double_conv_with_bn.3} parent=47 // pred_region
        %p1158 = scmp.lt.s32.totalorder %s18, 1
        %s1159 = scalar_select %p1158, %s18, 1
        %s1160 = smul.addr %s1159, 8
        %s1161 = scalar_lea.vmem %s5, %s1160
      $region56: #{double_conv_with_bn.3} parent=47 // pred_fallthru
        _
    $region48: #{double_conv_with_bn.3} parent=5 // pred_fallthru
      _
  $region6: #{double_conv_with_bn.3} parent=0 // loop_footer
    %s16 = sadd.s32 1, %s12
  $region7: #{double_conv_with_bn.3} parent=0 // loop_footer_branch
    %11 = sbr.rel target = $region3
  $region8: #{double_conv_with_bn.3} parent=0 // loop_exit
    _

// kernel: double_conv_with_bn.4
$region0: #{double_conv_with_bn.4}
  #allocation0 [shape = 'u32[]', space=smem, size = 0x4, offset = 0x4, fixed_abs, tag = 'smem constant byte address 0x4 - core index']
  #allocation1 [shape = 'u32[72,128]{1,0:T(1,128)}', space=vmem, size = 0x9000, scoped, tag = 'internal scratch']
  %s0 = inlined_call_operand.vmem [shape: f32[2,8,384], index: 0, kind: input, shape index: {}]
  %s1 = inlined_call_operand.vmem [shape: f32[1,384], index: 1, kind: input, shape index: {}]
  %s2 = inlined_call_operand.vmem [shape: f32[9,8,8], index: 2, kind: input, shape index: {}]
  %s3 = inlined_call_operand.vmem [shape: f32[8,1], index: 3, kind: input, shape index: {}]
  %s4 = inlined_call_operand.vmem [shape: f32[8,1], index: 4, kind: input, shape index: {}]
  %s5 = inlined_call_operand.vmem [shape: f32[8,1], index: 5, kind: input, shape index: {}]
  %s6 = inlined_call_operand.vmem [shape: f32[2,8,384], index: 6, kind: output, shape index: {0}]
  %s7 = inlined_call_operand.vmem [shape: f32[2,8,128], index: 7, kind: output, shape index: {1}]
  %8 = xla_tuple %s6, %s7
  %s9 = sld [smem:[#allocation0]]
  $region65: #{double_conv_with_bn.4} parent=0
    _
  %s11 = ssub.s32 1, %s9
  %s12 = scalar_select 0, %s11, %s9
  loop: start=0, step=1, limit=4
  $region2: #{double_conv_with_bn.4} parent=0 // loop_pre_header
    _
  $region3: #{double_conv_with_bn.4} parent=0 // loop_header
    %s14 = sphi 0, %s18
    %p15 = scmp.ge.s32.totalorder %s14, 4
    %s24 = sphi 0, %s26
    %s27 = sphi 0, %s24
    %s28 = sphi 0, %s27
    %s44 = sphi 0, %s28
    %s48 = sphi 0, %s48
    %s50 = sphi 0, %s48
    %s51 = sphi 0, %s50
    %s65 = sphi 0, %s51
    %s69 = sphi 0, %s69
    %s71 = sphi 0, %s69
    %s72 = sphi 0, %s71
    %s86 = sphi 0, %s72
    %s90 = sphi 0, %s90
    %s92 = sphi 0, %s90
    %s93 = sphi 0, %s92
    %s107 = sphi 0, %s93
    %s111 = sphi 0, %s111
    %s113 = sphi 0, %s111
    %s114 = sphi 0, %s113
    %s128 = sphi 0, %s114
    %s132 = sphi 0, %s132
    %s134 = sphi 0, %s132
    %s135 = sphi 0, %s134
    %s149 = sphi 0, %s135
    %s155 = sphi 0, %s157
    %s158 = sphi 0, %s155
    %s159 = sphi 0, %s158
    %s175 = sphi 0, %s159
    %s181 = sphi 0, %s183
    %s184 = sphi 0, %s181
    %s185 = sphi 0, %s184
    %s201 = sphi 0, %s185
  $region4: #{double_conv_with_bn.4} parent=0 // loop_header_branch
    %17 = sbr.rel (%p15) target = $region8
  $region5: #{double_conv_with_bn.4} parent=0 // loop_body
    %s19 = ssub.s32 %s14, 1
    %s20 = ssub.s32 %s14, 2
    %s21 = sadd.s32 %s14, 1
    %s22 = ssub.s32 %s14, %s21
    %p23 = scmp.eq.s32.totalorder %s22, 0
    %s25 = sadd.s32 %s24, 1
    %s26 = scalar_select %p23, %s24, %s25
    %p29 = pneg %p23
    %p30 = scmp.eq.s32.totalorder %s14, 1
    %p31 = por %p29, %p30
    %p32 = scmp.ne.s32.totalorder %s24, %s27
    %p33 = scmp.eq.s32.totalorder %s14, 0
    %p34 = por %p32, %p33
    %p35 = scmp.ne.s32.totalorder %s24, %s27
    %p36 = scmp.eq.s32.totalorder %s19, 1
    %p37 = por %p35, %p36
    %p38 = scmp.ne.s32.totalorder %s27, %s28
    %p39 = scmp.eq.s32.totalorder %s19, 0
    %p40 = por %p38, %p39
    %p41 = scmp.ne.s32.totalorder %s27, %s28
    %p42 = scmp.eq.s32.totalorder %s20, 1
    %p43 = por %p41, %p42
    %p45 = scmp.ne.s32.totalorder %s28, %s44
    %p46 = scmp.eq.s32.totalorder %s20, 0
    %p47 = por %p45, %p46
    %s49 = sadd.s32 %s48, 1
    %p52 = scmp.eq.s32.totalorder %s14, 1
    %p53 = scmp.ne.s32.totalorder %s48, %s50
    %p54 = scmp.eq.s32.totalorder %s14, 0
    %p55 = por %p53, %p54
    %p56 = scmp.ne.s32.totalorder %s48, %s50
    %p57 = scmp.eq.s32.totalorder %s19, 1
    %p58 = por %p56, %p57
    %p59 = scmp.ne.s32.totalorder %s50, %s51
    %p60 = scmp.eq.s32.totalorder %s19, 0
    %p61 = por %p59, %p60
    %p62 = scmp.ne.s32.totalorder %s50, %s51
    %p63 = scmp.eq.s32.totalorder %s20, 1
    %p64 = por %p62, %p63
    %p66 = scmp.ne.s32.totalorder %s51, %s65
    %p67 = scmp.eq.s32.totalorder %s20, 0
    %p68 = por %p66, %p67
    %s70 = sadd.s32 %s69, 1
    %p73 = scmp.eq.s32.totalorder %s14, 1
    %p74 = scmp.ne.s32.totalorder %s69, %s71
    %p75 = scmp.eq.s32.totalorder %s14, 0
    %p76 = por %p74, %p75
    %p77 = scmp.ne.s32.totalorder %s69, %s71
    %p78 = scmp.eq.s32.totalorder %s19, 1
    %p79 = por %p77, %p78
    %p80 = scmp.ne.s32.totalorder %s71, %s72
    %p81 = scmp.eq.s32.totalorder %s19, 0
    %p82 = por %p80, %p81
    %p83 = scmp.ne.s32.totalorder %s71, %s72
    %p84 = scmp.eq.s32.totalorder %s20, 1
    %p85 = por %p83, %p84
    %p87 = scmp.ne.s32.totalorder %s72, %s86
    %p88 = scmp.eq.s32.totalorder %s20, 0
    %p89 = por %p87, %p88
    %s91 = sadd.s32 %s90, 1
    %p94 = scmp.eq.s32.totalorder %s14, 1
    %p95 = scmp.ne.s32.totalorder %s90, %s92
    %p96 = scmp.eq.s32.totalorder %s14, 0
    %p97 = por %p95, %p96
    %p98 = scmp.ne.s32.totalorder %s90, %s92
    %p99 = scmp.eq.s32.totalorder %s19, 1
    %p100 = por %p98, %p99
    %p101 = scmp.ne.s32.totalorder %s92, %s93
    %p102 = scmp.eq.s32.totalorder %s19, 0
    %p103 = por %p101, %p102
    %p104 = scmp.ne.s32.totalorder %s92, %s93
    %p105 = scmp.eq.s32.totalorder %s20, 1
    %p106 = por %p104, %p105
    %p108 = scmp.ne.s32.totalorder %s93, %s107
    %p109 = scmp.eq.s32.totalorder %s20, 0
    %p110 = por %p108, %p109
    %s112 = sadd.s32 %s111, 1
    %p115 = scmp.eq.s32.totalorder %s14, 1
    %p116 = scmp.ne.s32.totalorder %s111, %s113
    %p117 = scmp.eq.s32.totalorder %s14, 0
    %p118 = por %p116, %p117
    %p119 = scmp.ne.s32.totalorder %s111, %s113
    %p120 = scmp.eq.s32.totalorder %s19, 1
    %p121 = por %p119, %p120
    %p122 = scmp.ne.s32.totalorder %s113, %s114
    %p123 = scmp.eq.s32.totalorder %s19, 0
    %p124 = por %p122, %p123
    %p125 = scmp.ne.s32.totalorder %s113, %s114
    %p126 = scmp.eq.s32.totalorder %s20, 1
    %p127 = por %p125, %p126
    %p129 = scmp.ne.s32.totalorder %s114, %s128
    %p130 = scmp.eq.s32.totalorder %s20, 0
    %p131 = por %p129, %p130
    %s133 = sadd.s32 %s132, 1
    %p136 = scmp.eq.s32.totalorder %s14, 1
    %p137 = scmp.ne.s32.totalorder %s132, %s134
    %p138 = scmp.eq.s32.totalorder %s14, 0
    %p139 = por %p137, %p138
    %p140 = scmp.ne.s32.totalorder %s132, %s134
    %p141 = scmp.eq.s32.totalorder %s19, 1
    %p142 = por %p140, %p141
    %p143 = scmp.ne.s32.totalorder %s134, %s135
    %p144 = scmp.eq.s32.totalorder %s19, 0
    %p145 = por %p143, %p144
    %p146 = scmp.ne.s32.totalorder %s134, %s135
    %p147 = scmp.eq.s32.totalorder %s20, 1
    %p148 = por %p146, %p147
    %p150 = scmp.ne.s32.totalorder %s135, %s149
    %p151 = scmp.eq.s32.totalorder %s20, 0
    %p152 = por %p150, %p151
    %s153 = ssub.s32 %s14, %s21
    %p154 = scmp.eq.s32.totalorder %s153, 0
    %s156 = sadd.s32 %s155, 1
    %s157 = scalar_select %p154, %s155, %s156
    %p160 = pneg %p154
    %p161 = scmp.eq.s32.totalorder %s14, 1
    %p162 = por %p160, %p161
    %p163 = scmp.ne.s32.totalorder %s155, %s158
    %p164 = scmp.eq.s32.totalorder %s14, 0
    %p165 = por %p163, %p164
    %p166 = scmp.ne.s32.totalorder %s155, %s158
    %p167 = scmp.eq.s32.totalorder %s19, 1
    %p168 = por %p166, %p167
    %p169 = scmp.ne.s32.totalorder %s158, %s159
    %p170 = scmp.eq.s32.totalorder %s19, 0
    %p171 = por %p169, %p170
    %p172 = scmp.ne.s32.totalorder %s158, %s159
    %p173 = scmp.eq.s32.totalorder %s20, 1
    %p174 = por %p172, %p173
    %p176 = scmp.ne.s32.totalorder %s159, %s175
    %p177 = scmp.eq.s32.totalorder %s20, 0
    %p178 = por %p176, %p177
    %s179 = ssub.s32 %s14, %s21
    %p180 = scmp.eq.s32.totalorder %s179, 0
    %s182 = sadd.s32 %s181, 1
    %s183 = scalar_select %p180, %s181, %s182
    %p186 = pneg %p180
    %p187 = scmp.eq.s32.totalorder %s14, 1
    %p188 = por %p186, %p187
    %p189 = scmp.ne.s32.totalorder %s181, %s184
    %p190 = scmp.eq.s32.totalorder %s14, 0
    %p191 = por %p189, %p190
    %p192 = scmp.ne.s32.totalorder %s181, %s184
    %p193 = scmp.eq.s32.totalorder %s19, 1
    %p194 = por %p192, %p193
    %p195 = scmp.ne.s32.totalorder %s184, %s185
    %p196 = scmp.eq.s32.totalorder %s19, 0
    %p197 = por %p195, %p196
    %p198 = scmp.ne.s32.totalorder %s184, %s185
    %p199 = scmp.eq.s32.totalorder %s20, 1
    %p200 = por %p198, %p199
    %p202 = scmp.ne.s32.totalorder %s185, %s201
    %p203 = scmp.eq.s32.totalorder %s20, 0
    %p204 = por %p202, %p203
    %p205 = scmp.le.s32.totalorder 1, %s14
    %p206 = scmp.lt.s32.totalorder %s14, 3
    %p207 = pnand %p205, %p206
    %p208 = pneg %p207
    // Predicated region
    $region9: #{double_conv_with_bn.4} parent=5 // pred_check
      _
    $region10: #{double_conv_with_bn.4} parent=5 // pred_check_branch
      %210 = sbr.rel (%p207) target = $region12
    $region11: #{double_conv_with_bn.4} parent=5 // pred_region
      %s211 = ssub.s32 %s14, 1
      // Predicated region
      $region13: #{double_conv_with_bn.4} parent=11 // pred_check
        %p212 = pneg %p61
      $region14: #{double_conv_with_bn.4} parent=11 // pred_check_branch
        %214 = sbr.rel (%p212) target = $region16
      $region15: #{double_conv_with_bn.4} parent=11 // pred_region
        _
      $region16: #{double_conv_with_bn.4} parent=11 // pred_fallthru
        _
      // Predicated region
      $region17: #{double_conv_with_bn.4} parent=11 // pred_check
        %p215 = pneg %p82
      $region18: #{double_conv_with_bn.4} parent=11 // pred_check_branch
        %217 = sbr.rel (%p215) target = $region20
      $region19: #{double_conv_with_bn.4} parent=11 // pred_region
        _
      $region20: #{double_conv_with_bn.4} parent=11 // pred_fallthru
        _
      // Predicated region
      $region21: #{double_conv_with_bn.4} parent=11 // pred_check
        %p218 = pneg %p103
      $region22: #{double_conv_with_bn.4} parent=11 // pred_check_branch
        %220 = sbr.rel (%p218) target = $region24
      $region23: #{double_conv_with_bn.4} parent=11 // pred_region
        _
      $region24: #{double_conv_with_bn.4} parent=11 // pred_fallthru
        _
      // Predicated region
      $region25: #{double_conv_with_bn.4} parent=11 // pred_check
        %p221 = pneg %p124
      $region26: #{double_conv_with_bn.4} parent=11 // pred_check_branch
        %223 = sbr.rel (%p221) target = $region28
      $region27: #{double_conv_with_bn.4} parent=11 // pred_region
        _
      $region28: #{double_conv_with_bn.4} parent=11 // pred_fallthru
        _
      // Predicated region
      $region29: #{double_conv_with_bn.4} parent=11 // pred_check
        %p224 = pneg %p145
      $region30: #{double_conv_with_bn.4} parent=11 // pred_check_branch
        %226 = sbr.rel (%p224) target = $region32
      $region31: #{double_conv_with_bn.4} parent=11 // pred_region
        _
      $region32: #{double_conv_with_bn.4} parent=11 // pred_fallthru
        _
    $region12: #{double_conv_with_bn.4} parent=5 // pred_fallthru
      _
    %p227 = scmp.lt.s32.totalorder %s14, 2
    // Predicated region
    $region33: #{double_conv_with_bn.4} parent=5 // pred_check
      %p228 = pneg %p227
    $region34: #{double_conv_with_bn.4} parent=5 // pred_check_branch
      %230 = sbr.rel (%p228) target = $region36
    $region35: #{double_conv_with_bn.4} parent=5 // pred_region
      // Predicated region
      $region37: #{double_conv_with_bn.4} parent=35 // pred_check
        %p231 = pneg %p34
      $region38: #{double_conv_with_bn.4} parent=35 // pred_check_branch
        %233 = sbr.rel (%p231) target = $region40
      $region39: #{double_conv_with_bn.4} parent=35 // pred_region
        %p234 = scmp.lt.s32.totalorder %s14, 1
        %s235 = scalar_select %p234, %s14, 1
        %s236 = smul.addr %s235, 3
        %s237 = smul.addr %s236, 8
        %s238 = scalar_lea.vmem %s0, %s237
      $region40: #{double_conv_with_bn.4} parent=35 // pred_fallthru
        _
    $region36: #{double_conv_with_bn.4} parent=5 // pred_fallthru
      _
    %p239 = scmp.le.s32.totalorder 1, %s14
    %p240 = scmp.lt.s32.totalorder %s14, 3
    %p241 = pnand %p239, %p240
    %p242 = pneg %p241
    // Predicated region
    $region41: #{double_conv_with_bn.4} parent=5 // pred_check
      _
    $region42: #{double_conv_with_bn.4} parent=5 // pred_check_branch
      %244 = sbr.rel (%p241) target = $region44
    $region43: #{double_conv_with_bn.4} parent=5 // pred_region
      %s245 = ssub.s32 %s14, 1
      %p246 = scmp.lt.s32.totalorder %s19, 1
      %s247 = scalar_select %p246, %s19, 1
      %s248 = smul.addr %s247, 3
      %s249 = smul.addr %s248, 8
      %s250 = scalar_lea.vmem %s0, %s249
      %p251 = pneg %p40
      %p252 = pneg %p37
      %p253 = pneg %p61
      %p254 = pneg %p58
      %p255 = pneg %p82
      %p256 = pneg %p79
      %p257 = pneg %p103
      %p258 = pneg %p100
      %p259 = pneg %p124
      %p260 = pneg %p121
      %p261 = pneg %p145
      %p262 = pneg %p142
      %p263 = pneg %p171
      %p264 = pneg %p168
      %p265 = scmp.lt.s32.totalorder %s19, 1
      %s266 = scalar_select %p265, %s19, 1
      %s267 = smul.addr %s266, 3
      %s268 = smul.addr %s267, 8
      %s269 = scalar_lea.vmem %s6, %s268
      %p270 = pneg %p197
      %p271 = pneg %p194
      %p272 = scmp.lt.s32.totalorder %s19, 1
      %s273 = scalar_select %p272, %s19, 1
      %s274 = smul.addr %s273, 8
      %s275 = scalar_lea.vmem %s7, %s274
      %p276 = scmp.lt.s32.totalorder %s19, 1
      %s277 = scalar_select %p276, %s19, 1
      %s278 = smul.addr %s277, 3
      %s279 = smul.addr %s278, 8
      %s280 = scalar_lea.vmem %s0, %s279
      %p281 = scmp.lt.s32.totalorder %s19, 1
      %s282 = scalar_select %p281, %s19, 1
      %s283 = smul.addr %s282, 3
      %s284 = smul.addr %s283, 8
      %s285 = scalar_lea.vmem %s6, %s284
      %p286 = scmp.lt.s32.totalorder %s19, 1
      %s287 = scalar_select %p286, %s19, 1
      %s288 = smul.addr %s287, 8
      %s289 = scalar_lea.vmem %s7, %s288
      %v290 = vld [vmem:[%s1] sm:$0x7]
      %v291 = vld [vmem:[%s280] sm:$0xff]
      %v292 = vld [vmem:[%s280 + $0x8] sm:$0xff]
      %v293 = vld [vmem:[%s280 + $0x10] sm:$0xff]
      %v294 = vld [vmem:[%s4] sm:$0xff]
      %296 = vset.pattern.permute.xlu0 0
      %297 = vperm.xlu0 %296, %v294
      %v298 = vpop.permute.xlu0 %297
      %v300 = vmul.f32 %v291, %v298
      %v301 = vmul.f32 %v292, %v298
      %v302 = vmul.f32 %v293, %v298
      %v303 = vld [vmem:[%s5] sm:$0xff]
      %305 = vset.pattern.permute.xlu0 0
      %306 = vperm.xlu0 %305, %v303
      %v307 = vpop.permute.xlu0 %306
      %v310 = vperm.slane %v290, 0
      %v311 = vperm.slane %v290, 1
      %v312 = vperm.slane %v290, 2
      %v316 = vmul.f32 %v307, %v310
      %v317 = vmul.f32 %v307, %v311
      %v318 = vmul.f32 %v307, %v312
      %v319 = vadd.f32 %v300, %v316
      %v320 = vadd.f32 %v301, %v317
      %v321 = vadd.f32 %v302, %v318
      %322 = vrot.lane.b32.xlu0 %v319, 19
      %v323 = vpop.permute.xlu0 %322
      %324 = vrot.lane.b32.xlu0 %v320, 19
      %v325 = vpop.permute.xlu0 %324
      %326 = vrot.lane.b32.xlu0 %v321, 19
      %v327 = vpop.permute.xlu0 %326
      %v328 = vlaneseq
      %v329 = vand.u32 %v328, 127
      %vm330 = vcmp.lt.s32.totalorder %v329, 19
      %v331 = vsel %vm330, %v325, %v327
      %v332 = vsel %vm330, %v323, %v325
      %v333 = vsel %vm330, %v327, %v323
      %v334 = vld [vmem:[%s2] sm:$0xff]
      %335 = vrot.lane.b32.xlu0 %v319, 18
      %v336 = vpop.permute.xlu0 %335
      %337 = vrot.lane.b32.xlu0 %v320, 18
      %v338 = vpop.permute.xlu0 %337
      %339 = vrot.lane.b32.xlu0 %v321, 18
      %v340 = vpop.permute.xlu0 %339
      %vm341 = vcmp.lt.s32.totalorder %v329, 18
      %v342 = vsel %vm341, %v338, %v340
      %v343 = vsel %vm341, %v336, %v338
      %v344 = vsel %vm341, %v340, %v336
      %s345 = scalar_lea.vmem %s2, 8
      %v346 = vld [vmem:[%s345] sm:$0xff]
      %vm347 = vcmask 64512
      %v349 = vsel %vm347, %v346, 0
      %351 = vmatpush.msra.mxu0 0.0
      %352 = vmatpush.msra.mxu0 0.0
      %353 = vmatpush.msra.mxu0 0.0
      %354 = vmatpush.msra.mxu0 0.0
      %355 = vmatpush.msra.mxu0 0.0
      %356 = vmatpush.msra.mxu0 0.0
      %357 = vmatpush.msra.mxu0 0.0
      %358 = vmatpush.msra.mxu0 0.0
      %359 = vmatpush.msra.mxu0 0.0
      %360 = vmatpush.msra.mxu0 0.0
      %361 = vmatpush.msra.mxu0 0.0
      %362 = vmatpush.msra.mxu0 0.0
      %363 = vmatpush.msra.mxu0 0.0
      %364 = vmatpush.msra.mxu0 0.0
      %365 = vmatpush.msra.mxu0 0.0
      %366 = vmatpush.msra.mxu0 %v344
      %367 = vmatmul.f32.gmra.mxu0 %v349
      %v368 = vpop.f32.mrf.mxu0
      %v369 = vadd.f32 0.0, %v368
      %370 = vdwg.mxu0
      %371 = vmatpush.msra.mxu0 0.0
      %372 = vmatpush.msra.mxu0 0.0
      %373 = vmatpush.msra.mxu0 0.0
      %374 = vmatpush.msra.mxu0 0.0
      %375 = vmatpush.msra.mxu0 0.0
      %376 = vmatpush.msra.mxu0 0.0
      %377 = vmatpush.msra.mxu0 0.0
      %378 = vmatpush.msra.mxu0 0.0
      %379 = vmatpush.msra.mxu0 0.0
      %380 = vmatpush.msra.mxu0 0.0
      %381 = vmatpush.msra.mxu0 0.0
      %382 = vmatpush.msra.mxu0 0.0
      %383 = vmatpush.msra.mxu0 0.0
      %384 = vmatpush.msra.mxu0 0.0
      %385 = vmatpush.msra.mxu0 0.0
      %386 = vmatpush.msra.mxu0 %v343
      %387 = vmatmul.f32.gmra.mxu0 %v349
      %v388 = vpop.f32.mrf.mxu0
      %v389 = vadd.f32 0.0, %v388
      %390 = vdwg.mxu0
      %391 = vmatpush.msra.mxu0 0.0
      %392 = vmatpush.msra.mxu0 0.0
      %393 = vmatpush.msra.mxu0 0.0
      %394 = vmatpush.msra.mxu0 0.0
      %395 = vmatpush.msra.mxu0 0.0
      %396 = vmatpush.msra.mxu0 0.0
      %397 = vmatpush.msra.mxu0 0.0
      %398 = vmatpush.msra.mxu0 0.0
      %399 = vmatpush.msra.mxu0 0.0
      %400 = vmatpush.msra.mxu0 0.0
      %401 = vmatpush.msra.mxu0 0.0
      %402 = vmatpush.msra.mxu0 0.0
      %403 = vmatpush.msra.mxu0 0.0
      %404 = vmatpush.msra.mxu0 0.0
      %405 = vmatpush.msra.mxu0 0.0
      %406 = vmatpush.msra.mxu0 %v342
      %407 = vmatmul.f32.gmra.mxu0 %v349
      %v408 = vpop.f32.mrf.mxu0
      %v409 = vadd.f32 0.0, %v408
      %410 = vdwg.mxu0
      %v412 = vsel %vm347, %v334, 0
      %414 = vmatpush.msra.mxu0 0.0
      %415 = vmatpush.msra.mxu0 0.0
      %416 = vmatpush.msra.mxu0 0.0
      %417 = vmatpush.msra.mxu0 0.0
      %418 = vmatpush.msra.mxu0 0.0
      %419 = vmatpush.msra.mxu0 0.0
      %420 = vmatpush.msra.mxu0 0.0
      %421 = vmatpush.msra.mxu0 0.0
      %422 = vmatpush.msra.mxu0 0.0
      %423 = vmatpush.msra.mxu0 0.0
      %424 = vmatpush.msra.mxu0 0.0
      %425 = vmatpush.msra.mxu0 0.0
      %426 = vmatpush.msra.mxu0 0.0
      %427 = vmatpush.msra.mxu0 0.0
      %428 = vmatpush.msra.mxu0 0.0
      %429 = vmatpush.msra.mxu0 %v333
      %430 = vmatmul.f32.gmra.mxu0 %v412
      %v431 = vpop.f32.mrf.mxu0
      %v432 = vadd.f32 %v369, %v431
      %433 = vdwg.mxu0
      %434 = vmatpush.msra.mxu0 0.0
      %435 = vmatpush.msra.mxu0 0.0
      %436 = vmatpush.msra.mxu0 0.0
      %437 = vmatpush.msra.mxu0 0.0
      %438 = vmatpush.msra.mxu0 0.0
      %439 = vmatpush.msra.mxu0 0.0
      %440 = vmatpush.msra.mxu0 0.0
      %441 = vmatpush.msra.mxu0 0.0
      %442 = vmatpush.msra.mxu0 0.0
      %443 = vmatpush.msra.mxu0 0.0
      %444 = vmatpush.msra.mxu0 0.0
      %445 = vmatpush.msra.mxu0 0.0
      %446 = vmatpush.msra.mxu0 0.0
      %447 = vmatpush.msra.mxu0 0.0
      %448 = vmatpush.msra.mxu0 0.0
      %449 = vmatpush.msra.mxu0 %v332
      %450 = vmatmul.f32.gmra.mxu0 %v412
      %v451 = vpop.f32.mrf.mxu0
      %v452 = vadd.f32 %v389, %v451
      %453 = vdwg.mxu0
      %454 = vmatpush.msra.mxu0 0.0
      %455 = vmatpush.msra.mxu0 0.0
      %456 = vmatpush.msra.mxu0 0.0
      %457 = vmatpush.msra.mxu0 0.0
      %458 = vmatpush.msra.mxu0 0.0
      %459 = vmatpush.msra.mxu0 0.0
      %460 = vmatpush.msra.mxu0 0.0
      %461 = vmatpush.msra.mxu0 0.0
      %462 = vmatpush.msra.mxu0 0.0
      %463 = vmatpush.msra.mxu0 0.0
      %464 = vmatpush.msra.mxu0 0.0
      %465 = vmatpush.msra.mxu0 0.0
      %466 = vmatpush.msra.mxu0 0.0
      %467 = vmatpush.msra.mxu0 0.0
      %468 = vmatpush.msra.mxu0 0.0
      %469 = vmatpush.msra.mxu0 %v331
      %470 = vmatmul.f32.gmra.mxu0 %v412
      %v471 = vpop.f32.mrf.mxu0
      %v472 = vadd.f32 %v409, %v471
      %473 = vdwg.mxu0
      %474 = vrot.lane.b32.xlu0 %v319, 17
      %v475 = vpop.permute.xlu0 %474
      %476 = vrot.lane.b32.xlu0 %v320, 17
      %v477 = vpop.permute.xlu0 %476
      %478 = vrot.lane.b32.xlu0 %v321, 17
      %v479 = vpop.permute.xlu0 %478
      %vm480 = vcmp.lt.s32.totalorder %v329, 17
      %v481 = vsel %vm480, %v477, %v479
      %v482 = vsel %vm480, %v475, %v477
      %v483 = vsel %vm480, %v479, %v475
      %s484 = scalar_lea.vmem %s2, 16
      %v485 = vld [vmem:[%s484] sm:$0xff]
      %v487 = vsel %vm347, %v485, 0
      %489 = vmatpush.msra.mxu0 0.0
      %490 = vmatpush.msra.mxu0 0.0
      %491 = vmatpush.msra.mxu0 0.0
      %492 = vmatpush.msra.mxu0 0.0
      %493 = vmatpush.msra.mxu0 0.0
      %494 = vmatpush.msra.mxu0 0.0
      %495 = vmatpush.msra.mxu0 0.0
      %496 = vmatpush.msra.mxu0 0.0
      %497 = vmatpush.msra.mxu0 0.0
      %498 = vmatpush.msra.mxu0 0.0
      %499 = vmatpush.msra.mxu0 0.0
      %500 = vmatpush.msra.mxu0 0.0
      %501 = vmatpush.msra.mxu0 0.0
      %502 = vmatpush.msra.mxu0 0.0
      %503 = vmatpush.msra.mxu0 0.0
      %504 = vmatpush.msra.mxu0 %v483
      %505 = vmatmul.f32.gmra.mxu0 %v487
      %v506 = vpop.f32.mrf.mxu0
      %v507 = vadd.f32 0.0, %v506
      %508 = vdwg.mxu0
      %509 = vmatpush.msra.mxu0 0.0
      %510 = vmatpush.msra.mxu0 0.0
      %511 = vmatpush.msra.mxu0 0.0
      %512 = vmatpush.msra.mxu0 0.0
      %513 = vmatpush.msra.mxu0 0.0
      %514 = vmatpush.msra.mxu0 0.0
      %515 = vmatpush.msra.mxu0 0.0
      %516 = vmatpush.msra.mxu0 0.0
      %517 = vmatpush.msra.mxu0 0.0
      %518 = vmatpush.msra.mxu0 0.0
      %519 = vmatpush.msra.mxu0 0.0
      %520 = vmatpush.msra.mxu0 0.0
      %521 = vmatpush.msra.mxu0 0.0
      %522 = vmatpush.msra.mxu0 0.0
      %523 = vmatpush.msra.mxu0 0.0
      %524 = vmatpush.msra.mxu0 %v482
      %525 = vmatmul.f32.gmra.mxu0 %v487
      %v526 = vpop.f32.mrf.mxu0
      %v527 = vadd.f32 0.0, %v526
      %528 = vdwg.mxu0
      %529 = vmatpush.msra.mxu0 0.0
      %530 = vmatpush.msra.mxu0 0.0
      %531 = vmatpush.msra.mxu0 0.0
      %532 = vmatpush.msra.mxu0 0.0
      %533 = vmatpush.msra.mxu0 0.0
      %534 = vmatpush.msra.mxu0 0.0
      %535 = vmatpush.msra.mxu0 0.0
      %536 = vmatpush.msra.mxu0 0.0
      %537 = vmatpush.msra.mxu0 0.0
      %538 = vmatpush.msra.mxu0 0.0
      %539 = vmatpush.msra.mxu0 0.0
      %540 = vmatpush.msra.mxu0 0.0
      %541 = vmatpush.msra.mxu0 0.0
      %542 = vmatpush.msra.mxu0 0.0
      %543 = vmatpush.msra.mxu0 0.0
      %544 = vmatpush.msra.mxu0 %v481
      %545 = vmatmul.f32.gmra.mxu0 %v487
      %v546 = vpop.f32.mrf.mxu0
      %v547 = vadd.f32 0.0, %v546
      %548 = vdwg.mxu0
      %v549 = vadd.f32 %v432, %v507
      %v550 = vadd.f32 %v452, %v527
      %v551 = vadd.f32 %v472, %v547
      %552 = vrot.lane.b32.xlu0 %v319, 1
      %v553 = vpop.permute.xlu0 %552
      %554 = vrot.lane.b32.xlu0 %v320, 1
      %v555 = vpop.permute.xlu0 %554
      %556 = vrot.lane.b32.xlu0 %v321, 1
      %v557 = vpop.permute.xlu0 %556
      %vm558 = vcmp.lt.s32.totalorder %v329, 1
      %v559 = vsel %vm558, %v555, %v557
      %v560 = vsel %vm558, %v553, %v555
      %v561 = vsel %vm558, %v557, %v553
      %s562 = scalar_lea.vmem %s2, 24
      %v563 = vld [vmem:[%s562] sm:$0xff]
      %v565 = vsel %vm347, %v563, 0
      %567 = vmatpush.msra.mxu0 0.0
      %568 = vmatpush.msra.mxu0 0.0
      %569 = vmatpush.msra.mxu0 0.0
      %570 = vmatpush.msra.mxu0 0.0
      %571 = vmatpush.msra.mxu0 0.0
      %572 = vmatpush.msra.mxu0 0.0
      %573 = vmatpush.msra.mxu0 0.0
      %574 = vmatpush.msra.mxu0 0.0
      %575 = vmatpush.msra.mxu0 0.0
      %576 = vmatpush.msra.mxu0 0.0
      %577 = vmatpush.msra.mxu0 0.0
      %578 = vmatpush.msra.mxu0 0.0
      %579 = vmatpush.msra.mxu0 0.0
      %580 = vmatpush.msra.mxu0 0.0
      %581 = vmatpush.msra.mxu0 0.0
      %582 = vmatpush.msra.mxu0 %v561
      %583 = vmatmul.f32.gmra.mxu0 %v565
      %v584 = vpop.f32.mrf.mxu0
      %v585 = vadd.f32 0.0, %v584
      %586 = vdwg.mxu0
      %587 = vmatpush.msra.mxu0 0.0
      %588 = vmatpush.msra.mxu0 0.0
      %589 = vmatpush.msra.mxu0 0.0
      %590 = vmatpush.msra.mxu0 0.0
      %591 = vmatpush.msra.mxu0 0.0
      %592 = vmatpush.msra.mxu0 0.0
      %593 = vmatpush.msra.mxu0 0.0
      %594 = vmatpush.msra.mxu0 0.0
      %595 = vmatpush.msra.mxu0 0.0
      %596 = vmatpush.msra.mxu0 0.0
      %597 = vmatpush.msra.mxu0 0.0
      %598 = vmatpush.msra.mxu0 0.0
      %599 = vmatpush.msra.mxu0 0.0
      %600 = vmatpush.msra.mxu0 0.0
      %601 = vmatpush.msra.mxu0 0.0
      %602 = vmatpush.msra.mxu0 %v560
      %603 = vmatmul.f32.gmra.mxu0 %v565
      %v604 = vpop.f32.mrf.mxu0
      %v605 = vadd.f32 0.0, %v604
      %606 = vdwg.mxu0
      %607 = vmatpush.msra.mxu0 0.0
      %608 = vmatpush.msra.mxu0 0.0
      %609 = vmatpush.msra.mxu0 0.0
      %610 = vmatpush.msra.mxu0 0.0
      %611 = vmatpush.msra.mxu0 0.0
      %612 = vmatpush.msra.mxu0 0.0
      %613 = vmatpush.msra.mxu0 0.0
      %614 = vmatpush.msra.mxu0 0.0
      %615 = vmatpush.msra.mxu0 0.0
      %616 = vmatpush.msra.mxu0 0.0
      %617 = vmatpush.msra.mxu0 0.0
      %618 = vmatpush.msra.mxu0 0.0
      %619 = vmatpush.msra.mxu0 0.0
      %620 = vmatpush.msra.mxu0 0.0
      %621 = vmatpush.msra.mxu0 0.0
      %622 = vmatpush.msra.mxu0 %v559
      %623 = vmatmul.f32.gmra.mxu0 %v565
      %v624 = vpop.f32.mrf.mxu0
      %v625 = vadd.f32 0.0, %v624
      %626 = vdwg.mxu0
      %v627 = vadd.f32 %v549, %v585
      %v628 = vadd.f32 %v550, %v605
      %v629 = vadd.f32 %v551, %v625
      %s630 = scalar_lea.vmem %s2, 32
      %v631 = vld [vmem:[%s630] sm:$0xff]
      %v633 = vsel %vm347, %v631, 0
      %635 = vmatpush.msra.mxu0 0.0
      %636 = vmatpush.msra.mxu0 0.0
      %637 = vmatpush.msra.mxu0 0.0
      %638 = vmatpush.msra.mxu0 0.0
      %639 = vmatpush.msra.mxu0 0.0
      %640 = vmatpush.msra.mxu0 0.0
      %641 = vmatpush.msra.mxu0 0.0
      %642 = vmatpush.msra.mxu0 0.0
      %643 = vmatpush.msra.mxu0 0.0
      %644 = vmatpush.msra.mxu0 0.0
      %645 = vmatpush.msra.mxu0 0.0
      %646 = vmatpush.msra.mxu0 0.0
      %647 = vmatpush.msra.mxu0 0.0
      %648 = vmatpush.msra.mxu0 0.0
      %649 = vmatpush.msra.mxu0 0.0
      %650 = vmatpush.msra.mxu0 %v319
      %651 = vmatmul.f32.gmra.mxu0 %v633
      %v652 = vpop.f32.mrf.mxu0
      %v653 = vadd.f32 0.0, %v652
      %654 = vdwg.mxu0
      %655 = vmatpush.msra.mxu0 0.0
      %656 = vmatpush.msra.mxu0 0.0
      %657 = vmatpush.msra.mxu0 0.0
      %658 = vmatpush.msra.mxu0 0.0
      %659 = vmatpush.msra.mxu0 0.0
      %660 = vmatpush.msra.mxu0 0.0
      %661 = vmatpush.msra.mxu0 0.0
      %662 = vmatpush.msra.mxu0 0.0
      %663 = vmatpush.msra.mxu0 0.0
      %664 = vmatpush.msra.mxu0 0.0
      %665 = vmatpush.msra.mxu0 0.0
      %666 = vmatpush.msra.mxu0 0.0
      %667 = vmatpush.msra.mxu0 0.0
      %668 = vmatpush.msra.mxu0 0.0
      %669 = vmatpush.msra.mxu0 0.0
      %670 = vmatpush.msra.mxu0 %v320
      %671 = vmatmul.f32.gmra.mxu0 %v633
      %v672 = vpop.f32.mrf.mxu0
      %v673 = vadd.f32 0.0, %v672
      %674 = vdwg.mxu0
      %675 = vmatpush.msra.mxu0 0.0
      %676 = vmatpush.msra.mxu0 0.0
      %677 = vmatpush.msra.mxu0 0.0
      %678 = vmatpush.msra.mxu0 0.0
      %679 = vmatpush.msra.mxu0 0.0
      %680 = vmatpush.msra.mxu0 0.0
      %681 = vmatpush.msra.mxu0 0.0
      %682 = vmatpush.msra.mxu0 0.0
      %683 = vmatpush.msra.mxu0 0.0
      %684 = vmatpush.msra.mxu0 0.0
      %685 = vmatpush.msra.mxu0 0.0
      %686 = vmatpush.msra.mxu0 0.0
      %687 = vmatpush.msra.mxu0 0.0
      %688 = vmatpush.msra.mxu0 0.0
      %689 = vmatpush.msra.mxu0 0.0
      %690 = vmatpush.msra.mxu0 %v321
      %691 = vmatmul.f32.gmra.mxu0 %v633
      %v692 = vpop.f32.mrf.mxu0
      %v693 = vadd.f32 0.0, %v692
      %694 = vdwg.mxu0
      %v695 = vadd.f32 %v627, %v653
      %v696 = vadd.f32 %v628, %v673
      %v697 = vadd.f32 %v629, %v693
      %698 = vrot.lane.b32.xlu0 %v319, 127
      %v699 = vpop.permute.xlu0 %698
      %700 = vrot.lane.b32.xlu0 %v320, 127
      %v701 = vpop.permute.xlu0 %700
      %702 = vrot.lane.b32.xlu0 %v321, 127
      %v703 = vpop.permute.xlu0 %702
      %vm704 = vcmp.lt.s32.totalorder %v329, 127
      %v705 = vsel %vm704, %v701, %v703
      %v706 = vsel %vm704, %v699, %v701
      %v707 = vsel %vm704, %v703, %v699
      %s708 = scalar_lea.vmem %s2, 40
      %v709 = vld [vmem:[%s708] sm:$0xff]
      %v711 = vsel %vm347, %v709, 0
      %713 = vmatpush.msra.mxu0 0.0
      %714 = vmatpush.msra.mxu0 0.0
      %715 = vmatpush.msra.mxu0 0.0
      %716 = vmatpush.msra.mxu0 0.0
      %717 = vmatpush.msra.mxu0 0.0
      %718 = vmatpush.msra.mxu0 0.0
      %719 = vmatpush.msra.mxu0 0.0
      %720 = vmatpush.msra.mxu0 0.0
      %721 = vmatpush.msra.mxu0 0.0
      %722 = vmatpush.msra.mxu0 0.0
      %723 = vmatpush.msra.mxu0 0.0
      %724 = vmatpush.msra.mxu0 0.0
      %725 = vmatpush.msra.mxu0 0.0
      %726 = vmatpush.msra.mxu0 0.0
      %727 = vmatpush.msra.mxu0 0.0
      %728 = vmatpush.msra.mxu0 %v706
      %729 = vmatmul.f32.gmra.mxu0 %v711
      %v730 = vpop.f32.mrf.mxu0
      %v731 = vadd.f32 0.0, %v730
      %732 = vdwg.mxu0
      %733 = vmatpush.msra.mxu0 0.0
      %734 = vmatpush.msra.mxu0 0.0
      %735 = vmatpush.msra.mxu0 0.0
      %736 = vmatpush.msra.mxu0 0.0
      %737 = vmatpush.msra.mxu0 0.0
      %738 = vmatpush.msra.mxu0 0.0
      %739 = vmatpush.msra.mxu0 0.0
      %740 = vmatpush.msra.mxu0 0.0
      %741 = vmatpush.msra.mxu0 0.0
      %742 = vmatpush.msra.mxu0 0.0
      %743 = vmatpush.msra.mxu0 0.0
      %744 = vmatpush.msra.mxu0 0.0
      %745 = vmatpush.msra.mxu0 0.0
      %746 = vmatpush.msra.mxu0 0.0
      %747 = vmatpush.msra.mxu0 0.0
      %748 = vmatpush.msra.mxu0 %v705
      %749 = vmatmul.f32.gmra.mxu0 %v711
      %v750 = vpop.f32.mrf.mxu0
      %v751 = vadd.f32 0.0, %v750
      %752 = vdwg.mxu0
      %753 = vmatpush.msra.mxu0 0.0
      %754 = vmatpush.msra.mxu0 0.0
      %755 = vmatpush.msra.mxu0 0.0
      %756 = vmatpush.msra.mxu0 0.0
      %757 = vmatpush.msra.mxu0 0.0
      %758 = vmatpush.msra.mxu0 0.0
      %759 = vmatpush.msra.mxu0 0.0
      %760 = vmatpush.msra.mxu0 0.0
      %761 = vmatpush.msra.mxu0 0.0
      %762 = vmatpush.msra.mxu0 0.0
      %763 = vmatpush.msra.mxu0 0.0
      %764 = vmatpush.msra.mxu0 0.0
      %765 = vmatpush.msra.mxu0 0.0
      %766 = vmatpush.msra.mxu0 0.0
      %767 = vmatpush.msra.mxu0 0.0
      %768 = vmatpush.msra.mxu0 %v707
      %769 = vmatmul.f32.gmra.mxu0 %v711
      %v770 = vpop.f32.mrf.mxu0
      %v771 = vadd.f32 0.0, %v770
      %772 = vdwg.mxu0
      %v773 = vadd.f32 %v695, %v731
      %v774 = vadd.f32 %v696, %v751
      %v775 = vadd.f32 %v697, %v771
      %776 = vrot.lane.b32.xlu0 %v319, 111
      %v777 = vpop.permute.xlu0 %776
      %778 = vrot.lane.b32.xlu0 %v320, 111
      %v779 = vpop.permute.xlu0 %778
      %780 = vrot.lane.b32.xlu0 %v321, 111
      %v781 = vpop.permute.xlu0 %780
      %vm782 = vcmp.lt.s32.totalorder %v329, 111
      %v783 = vsel %vm782, %v779, %v781
      %v784 = vsel %vm782, %v777, %v779
      %v785 = vsel %vm782, %v781, %v777
      %s786 = scalar_lea.vmem %s2, 48
      %v787 = vld [vmem:[%s786] sm:$0xff]
      %v789 = vsel %vm347, %v787, 0
      %791 = vmatpush.msra.mxu0 0.0
      %792 = vmatpush.msra.mxu0 0.0
      %793 = vmatpush.msra.mxu0 0.0
      %794 = vmatpush.msra.mxu0 0.0
      %795 = vmatpush.msra.mxu0 0.0
      %796 = vmatpush.msra.mxu0 0.0
      %797 = vmatpush.msra.mxu0 0.0
      %798 = vmatpush.msra.mxu0 0.0
      %799 = vmatpush.msra.mxu0 0.0
      %800 = vmatpush.msra.mxu0 0.0
      %801 = vmatpush.msra.mxu0 0.0
      %802 = vmatpush.msra.mxu0 0.0
      %803 = vmatpush.msra.mxu0 0.0
      %804 = vmatpush.msra.mxu0 0.0
      %805 = vmatpush.msra.mxu0 0.0
      %806 = vmatpush.msra.mxu0 %v784
      %807 = vmatmul.f32.gmra.mxu0 %v789
      %v808 = vpop.f32.mrf.mxu0
      %v809 = vadd.f32 0.0, %v808
      %810 = vdwg.mxu0
      %811 = vmatpush.msra.mxu0 0.0
      %812 = vmatpush.msra.mxu0 0.0
      %813 = vmatpush.msra.mxu0 0.0
      %814 = vmatpush.msra.mxu0 0.0
      %815 = vmatpush.msra.mxu0 0.0
      %816 = vmatpush.msra.mxu0 0.0
      %817 = vmatpush.msra.mxu0 0.0
      %818 = vmatpush.msra.mxu0 0.0
      %819 = vmatpush.msra.mxu0 0.0
      %820 = vmatpush.msra.mxu0 0.0
      %821 = vmatpush.msra.mxu0 0.0
      %822 = vmatpush.msra.mxu0 0.0
      %823 = vmatpush.msra.mxu0 0.0
      %824 = vmatpush.msra.mxu0 0.0
      %825 = vmatpush.msra.mxu0 0.0
      %826 = vmatpush.msra.mxu0 %v783
      %827 = vmatmul.f32.gmra.mxu0 %v789
      %v828 = vpop.f32.mrf.mxu0
      %v829 = vadd.f32 0.0, %v828
      %830 = vdwg.mxu0
      %831 = vmatpush.msra.mxu0 0.0
      %832 = vmatpush.msra.mxu0 0.0
      %833 = vmatpush.msra.mxu0 0.0
      %834 = vmatpush.msra.mxu0 0.0
      %835 = vmatpush.msra.mxu0 0.0
      %836 = vmatpush.msra.mxu0 0.0
      %837 = vmatpush.msra.mxu0 0.0
      %838 = vmatpush.msra.mxu0 0.0
      %839 = vmatpush.msra.mxu0 0.0
      %840 = vmatpush.msra.mxu0 0.0
      %841 = vmatpush.msra.mxu0 0.0
      %842 = vmatpush.msra.mxu0 0.0
      %843 = vmatpush.msra.mxu0 0.0
      %844 = vmatpush.msra.mxu0 0.0
      %845 = vmatpush.msra.mxu0 0.0
      %846 = vmatpush.msra.mxu0 %v785
      %847 = vmatmul.f32.gmra.mxu0 %v789
      %v848 = vpop.f32.mrf.mxu0
      %v849 = vadd.f32 0.0, %v848
      %850 = vdwg.mxu0
      %v851 = vadd.f32 %v773, %v809
      %v852 = vadd.f32 %v774, %v829
      %v853 = vadd.f32 %v775, %v849
      %854 = vrot.lane.b32.xlu0 %v319, 110
      %v855 = vpop.permute.xlu0 %854
      %856 = vrot.lane.b32.xlu0 %v320, 110
      %v857 = vpop.permute.xlu0 %856
      %858 = vrot.lane.b32.xlu0 %v321, 110
      %v859 = vpop.permute.xlu0 %858
      %vm860 = vcmp.lt.s32.totalorder %v329, 110
      %v861 = vsel %vm860, %v857, %v859
      %v862 = vsel %vm860, %v855, %v857
      %v863 = vsel %vm860, %v859, %v855
      %s864 = scalar_lea.vmem %s2, 56
      %v865 = vld [vmem:[%s864] sm:$0xff]
      %v867 = vsel %vm347, %v865, 0
      %869 = vmatpush.msra.mxu0 0.0
      %870 = vmatpush.msra.mxu0 0.0
      %871 = vmatpush.msra.mxu0 0.0
      %872 = vmatpush.msra.mxu0 0.0
      %873 = vmatpush.msra.mxu0 0.0
      %874 = vmatpush.msra.mxu0 0.0
      %875 = vmatpush.msra.mxu0 0.0
      %876 = vmatpush.msra.mxu0 0.0
      %877 = vmatpush.msra.mxu0 0.0
      %878 = vmatpush.msra.mxu0 0.0
      %879 = vmatpush.msra.mxu0 0.0
      %880 = vmatpush.msra.mxu0 0.0
      %881 = vmatpush.msra.mxu0 0.0
      %882 = vmatpush.msra.mxu0 0.0
      %883 = vmatpush.msra.mxu0 0.0
      %884 = vmatpush.msra.mxu0 %v862
      %885 = vmatmul.f32.gmra.mxu0 %v867
      %v886 = vpop.f32.mrf.mxu0
      %v887 = vadd.f32 0.0, %v886
      %888 = vdwg.mxu0
      %889 = vmatpush.msra.mxu0 0.0
      %890 = vmatpush.msra.mxu0 0.0
      %891 = vmatpush.msra.mxu0 0.0
      %892 = vmatpush.msra.mxu0 0.0
      %893 = vmatpush.msra.mxu0 0.0
      %894 = vmatpush.msra.mxu0 0.0
      %895 = vmatpush.msra.mxu0 0.0
      %896 = vmatpush.msra.mxu0 0.0
      %897 = vmatpush.msra.mxu0 0.0
      %898 = vmatpush.msra.mxu0 0.0
      %899 = vmatpush.msra.mxu0 0.0
      %900 = vmatpush.msra.mxu0 0.0
      %901 = vmatpush.msra.mxu0 0.0
      %902 = vmatpush.msra.mxu0 0.0
      %903 = vmatpush.msra.mxu0 0.0
      %904 = vmatpush.msra.mxu0 %v861
      %905 = vmatmul.f32.gmra.mxu0 %v867
      %v906 = vpop.f32.mrf.mxu0
      %v907 = vadd.f32 0.0, %v906
      %908 = vdwg.mxu0
      %909 = vmatpush.msra.mxu0 0.0
      %910 = vmatpush.msra.mxu0 0.0
      %911 = vmatpush.msra.mxu0 0.0
      %912 = vmatpush.msra.mxu0 0.0
      %913 = vmatpush.msra.mxu0 0.0
      %914 = vmatpush.msra.mxu0 0.0
      %915 = vmatpush.msra.mxu0 0.0
      %916 = vmatpush.msra.mxu0 0.0
      %917 = vmatpush.msra.mxu0 0.0
      %918 = vmatpush.msra.mxu0 0.0
      %919 = vmatpush.msra.mxu0 0.0
      %920 = vmatpush.msra.mxu0 0.0
      %921 = vmatpush.msra.mxu0 0.0
      %922 = vmatpush.msra.mxu0 0.0
      %923 = vmatpush.msra.mxu0 0.0
      %924 = vmatpush.msra.mxu0 %v863
      %925 = vmatmul.f32.gmra.mxu0 %v867
      %v926 = vpop.f32.mrf.mxu0
      %v927 = vadd.f32 0.0, %v926
      %928 = vdwg.mxu0
      %v929 = vadd.f32 %v851, %v887
      %v930 = vadd.f32 %v852, %v907
      %v931 = vadd.f32 %v853, %v927
      %932 = vrot.lane.b32.xlu0 %v319, 109
      %v933 = vpop.permute.xlu0 %932
      %934 = vrot.lane.b32.xlu0 %v320, 109
      %v935 = vpop.permute.xlu0 %934
      %936 = vrot.lane.b32.xlu0 %v321, 109
      %v937 = vpop.permute.xlu0 %936
      %vm938 = vcmp.lt.s32.totalorder %v329, 109
      %v939 = vsel %vm938, %v935, %v937
      %v940 = vsel %vm938, %v933, %v935
      %v941 = vsel %vm938, %v937, %v933
      %s942 = scalar_lea.vmem %s2, 64
      %v943 = vld [vmem:[%s942] sm:$0xff]
      %v945 = vsel %vm347, %v943, 0
      %947 = vmatpush.msra.mxu0 0.0
      %948 = vmatpush.msra.mxu0 0.0
      %949 = vmatpush.msra.mxu0 0.0
      %950 = vmatpush.msra.mxu0 0.0
      %951 = vmatpush.msra.mxu0 0.0
      %952 = vmatpush.msra.mxu0 0.0
      %953 = vmatpush.msra.mxu0 0.0
      %954 = vmatpush.msra.mxu0 0.0
      %955 = vmatpush.msra.mxu0 0.0
      %956 = vmatpush.msra.mxu0 0.0
      %957 = vmatpush.msra.mxu0 0.0
      %958 = vmatpush.msra.mxu0 0.0
      %959 = vmatpush.msra.mxu0 0.0
      %960 = vmatpush.msra.mxu0 0.0
      %961 = vmatpush.msra.mxu0 0.0
      %962 = vmatpush.msra.mxu0 %v940
      %963 = vmatmul.f32.gmra.mxu0 %v945
      %v964 = vpop.f32.mrf.mxu0
      %v965 = vadd.f32 0.0, %v964
      %966 = vdwg.mxu0
      %967 = vmatpush.msra.mxu0 0.0
      %968 = vmatpush.msra.mxu0 0.0
      %969 = vmatpush.msra.mxu0 0.0
      %970 = vmatpush.msra.mxu0 0.0
      %971 = vmatpush.msra.mxu0 0.0
      %972 = vmatpush.msra.mxu0 0.0
      %973 = vmatpush.msra.mxu0 0.0
      %974 = vmatpush.msra.mxu0 0.0
      %975 = vmatpush.msra.mxu0 0.0
      %976 = vmatpush.msra.mxu0 0.0
      %977 = vmatpush.msra.mxu0 0.0
      %978 = vmatpush.msra.mxu0 0.0
      %979 = vmatpush.msra.mxu0 0.0
      %980 = vmatpush.msra.mxu0 0.0
      %981 = vmatpush.msra.mxu0 0.0
      %982 = vmatpush.msra.mxu0 %v939
      %983 = vmatmul.f32.gmra.mxu0 %v945
      %v984 = vpop.f32.mrf.mxu0
      %v985 = vadd.f32 0.0, %v984
      %986 = vdwg.mxu0
      %987 = vmatpush.msra.mxu0 0.0
      %988 = vmatpush.msra.mxu0 0.0
      %989 = vmatpush.msra.mxu0 0.0
      %990 = vmatpush.msra.mxu0 0.0
      %991 = vmatpush.msra.mxu0 0.0
      %992 = vmatpush.msra.mxu0 0.0
      %993 = vmatpush.msra.mxu0 0.0
      %994 = vmatpush.msra.mxu0 0.0
      %995 = vmatpush.msra.mxu0 0.0
      %996 = vmatpush.msra.mxu0 0.0
      %997 = vmatpush.msra.mxu0 0.0
      %998 = vmatpush.msra.mxu0 0.0
      %999 = vmatpush.msra.mxu0 0.0
      %1000 = vmatpush.msra.mxu0 0.0
      %1001 = vmatpush.msra.mxu0 0.0
      %1002 = vmatpush.msra.mxu0 %v941
      %1003 = vmatmul.f32.gmra.mxu0 %v945
      %v1004 = vpop.f32.mrf.mxu0
      %v1005 = vadd.f32 0.0, %v1004
      %1006 = vdwg.mxu0
      %v1007 = vadd.f32 %v929, %v965
      %v1008 = vadd.f32 %v930, %v985
      %v1009 = vadd.f32 %v931, %v1005
      %v1010 = vld [vmem:[%s3] sm:$0xff]
      %1012 = vset.pattern.permute.xlu0 0
      %1013 = vperm.xlu0 %1012, %v1010
      %v1014 = vpop.permute.xlu0 %1013
      %v1016 = vadd.f32 %v1007, %v1014
      %v1017 = vadd.f32 %v1008, %v1014
      %v1018 = vadd.f32 %v1009, %v1014
      %v1019 = vmax.f32 %v1016, 0.0
      %v1020 = vmax.f32 %v1017, 0.0
      %v1021 = vmax.f32 %v1018, 0.0
      %v1022 = vmul.f32 %v1019, %v310
      %v1023 = vmul.f32 %v1020, %v311
      %v1024 = vmul.f32 %v1021, %v312
      %1025 = vst [vmem:[%s285] sm:$0xff] %v1022
      %1026 = vst [vmem:[%s285 + $0x8] sm:$0xff] %v1023
      %1027 = vst [vmem:[%s285 + $0x10] sm:$0xff] %v1024
      %v1028 = vadd.f32 %v1022, %v1023
      %v1029 = vadd.f32 %v1028, %v1024
      %1030 = vadd.xlane.f32.xlu0 %v1029
      %v1031 = vpop.xlane.xlu0 %1030
      %v1032 = vmul.f32 %v1022, %v1022
      %v1033 = vmul.f32 %v1023, %v1023
      %v1034 = vmul.f32 %v1024, %v1024
      %v1035 = vadd.f32 %v1032, %v1033
      %v1036 = vadd.f32 %v1035, %v1034
      %1037 = vadd.xlane.f32.xlu0 %v1036
      %v1038 = vpop.xlane.xlu0 %1037
      %vm1039 = vcmask 7168
      %v1040 = vsel %vm1039, %v1031, %v1038
      %vm1041 = vcmask 15360
      %v1042 = vsel %vm1041, %v1040, 0.0
      %1043 = vst [vmem:[%s289] sm:$0xff] %v1042
      %p1044 = scmp.lt.s32.totalorder %s19, 1
      %s1045 = scalar_select %p1044, %s19, 1
      %s1046 = smul.addr %s1045, 3
      %s1047 = smul.addr %s1046, 8
      %s1048 = scalar_lea.vmem %s6, %s1047
      %p1049 = scmp.lt.s32.totalorder %s19, 1
      %s1050 = scalar_select %p1049, %s19, 1
      %s1051 = smul.addr %s1050, 8
      %s1052 = scalar_lea.vmem %s7, %s1051
      // Predicated region
      $region45: #{double_conv_with_bn.4} parent=43 // pred_check
        %p1053 = pneg %p168
      $region46: #{double_conv_with_bn.4} parent=43 // pred_check_branch
        %1055 = sbr.rel (%p1053) target = $region48
      $region47: #{double_conv_with_bn.4} parent=43 // pred_region
        _
      $region48: #{double_conv_with_bn.4} parent=43 // pred_fallthru
        _
      // Predicated region
      $region49: #{double_conv_with_bn.4} parent=43 // pred_check
        %p1056 = pneg %p194
      $region50: #{double_conv_with_bn.4} parent=43 // pred_check_branch
        %1058 = sbr.rel (%p1056) target = $region52
      $region51: #{double_conv_with_bn.4} parent=43 // pred_region
        _
      $region52: #{double_conv_with_bn.4} parent=43 // pred_fallthru
        _
    $region44: #{double_conv_with_bn.4} parent=5 // pred_fallthru
      _
    %p1059 = scmp.le.s32.totalorder 2, %s14
    // Predicated region
    $region53: #{double_conv_with_bn.4} parent=5 // pred_check
      %p1060 = pneg %p1059
    $region54: #{double_conv_with_bn.4} parent=5 // pred_check_branch
      %1062 = sbr.rel (%p1060) target = $region56
    $region55: #{double_conv_with_bn.4} parent=5 // pred_region
      %s1063 = ssub.s32 %s14, 2
      // Predicated region
      $region57: #{double_conv_with_bn.4} parent=55 // pred_check
        %p1064 = pneg %p174
      $region58: #{double_conv_with_bn.4} parent=55 // pred_check_branch
        %1066 = sbr.rel (%p1064) target = $region60
      $region59: #{double_conv_with_bn.4} parent=55 // pred_region
        %p1067 = scmp.lt.s32.totalorder %s20, 1
        %s1068 = scalar_select %p1067, %s20, 1
        %s1069 = smul.addr %s1068, 3
        %s1070 = smul.addr %s1069, 8
        %s1071 = scalar_lea.vmem %s6, %s1070
      $region60: #{double_conv_with_bn.4} parent=55 // pred_fallthru
        _
      // Predicated region
      $region61: #{double_conv_with_bn.4} parent=55 // pred_check
        %p1072 = pneg %p200
      $region62: #{double_conv_with_bn.4} parent=55 // pred_check_branch
        %1074 = sbr.rel (%p1072) target = $region64
      $region63: #{double_conv_with_bn.4} parent=55 // pred_region
        %p1075 = scmp.lt.s32.totalorder %s20, 1
        %s1076 = scalar_select %p1075, %s20, 1
        %s1077 = smul.addr %s1076, 8
        %s1078 = scalar_lea.vmem %s7, %s1077
      $region64: #{double_conv_with_bn.4} parent=55 // pred_fallthru
        _
    $region56: #{double_conv_with_bn.4} parent=5 // pred_fallthru
      _
  $region6: #{double_conv_with_bn.4} parent=0 // loop_footer
    %s18 = sadd.s32 1, %s14
  $region7: #{double_conv_with_bn.4} parent=0 // loop_footer_branch
    %13 = sbr.rel target = $region3
  $region8: #{double_conv_with_bn.4} parent=0 // loop_exit
    _

// kernel: double_conv_with_bn.5
$region0: #{double_conv_with_bn.5}
  #allocation0 [shape = 'u32[]', space=smem, size = 0x4, offset = 0x4, fixed_abs, tag = 'smem constant byte address 0x4 - core index']
  #allocation1 [shape = 'u32[72,128]{1,0:T(1,128)}', space=vmem, size = 0x9000, scoped, tag = 'internal scratch']
  %s0 = inlined_call_operand.vmem [shape: f32[2,8,384], index: 0, kind: input, shape index: {}]
  %s1 = inlined_call_operand.vmem [shape: f32[8,1], index: 1, kind: input, shape index: {}]
  %s2 = inlined_call_operand.vmem [shape: f32[8,1], index: 2, kind: input, shape index: {}]
  %s3 = inlined_call_operand.hbm [shape: f32[2,8,16,16], index: 3, kind: output, shape index: {}]
  %s4 = sld [smem:[#allocation0]]
  $region45: #{double_conv_with_bn.5} parent=0
    _
  %s6 = ssub.s32 1, %s4
  %s7 = scalar_select 0, %s6, %s4
  $region1: #{double_conv_with_bn.5} parent=0
    #allocation2 [shape = 'u8[131072]{0}', space=vmem, size = 0x20000, scoped, tag = 'output window, operand 0']
    #allocation3 [shape = 's32[2]{0}', space=sflag, size = 0x8, scoped, tag = 'scoped memory for double_conv_with_bn.5']
    %8 = vsyncpa [#allocation3], 0
    %s9 = scalar_lea.sflag [#allocation3], 1
    %10 = vsyncpa %s9, 0
    loop: start=0, step=1, limit=4
    $region2: #{double_conv_with_bn.5} parent=1 // loop_pre_header
      _
    $region3: #{double_conv_with_bn.5} parent=1 // loop_header
      %s12 = sphi 0, %s16
      %p13 = scmp.ge.s32.totalorder %s12, 4
      %s22 = sphi 0, %s24
      %s25 = sphi 0, %s22
      %s26 = sphi 0, %s25
      %s42 = sphi 0, %s26
      %s46 = sphi 0, %s46
      %s48 = sphi 0, %s46
      %s49 = sphi 0, %s48
      %s63 = sphi 0, %s49
      %s67 = sphi 0, %s67
      %s69 = sphi 0, %s67
      %s70 = sphi 0, %s69
      %s84 = sphi 0, %s70
      %s90 = sphi 0, %s92
      %s93 = sphi 0, %s90
      %s94 = sphi 0, %s93
      %s110 = sphi 0, %s94
    $region4: #{double_conv_with_bn.5} parent=1 // loop_header_branch
      %15 = sbr.rel (%p13) target = $region8
    $region5: #{double_conv_with_bn.5} parent=1 // loop_body
      %s17 = ssub.s32 %s12, 1
      %s18 = ssub.s32 %s12, 2
      %s19 = sadd.s32 %s12, 1
      %s20 = ssub.s32 %s12, %s19
      %p21 = scmp.eq.s32.totalorder %s20, 0
      %s23 = sadd.s32 %s22, 1
      %s24 = scalar_select %p21, %s22, %s23
      %p27 = pneg %p21
      %p28 = scmp.eq.s32.totalorder %s12, 1
      %p29 = por %p27, %p28
      %p30 = scmp.ne.s32.totalorder %s22, %s25
      %p31 = scmp.eq.s32.totalorder %s12, 0
      %p32 = por %p30, %p31
      %p33 = scmp.ne.s32.totalorder %s22, %s25
      %p34 = scmp.eq.s32.totalorder %s17, 1
      %p35 = por %p33, %p34
      %p36 = scmp.ne.s32.totalorder %s25, %s26
      %p37 = scmp.eq.s32.totalorder %s17, 0
      %p38 = por %p36, %p37
      %p39 = scmp.ne.s32.totalorder %s25, %s26
      %p40 = scmp.eq.s32.totalorder %s18, 1
      %p41 = por %p39, %p40
      %p43 = scmp.ne.s32.totalorder %s26, %s42
      %p44 = scmp.eq.s32.totalorder %s18, 0
      %p45 = por %p43, %p44
      %s47 = sadd.s32 %s46, 1
      %p50 = scmp.eq.s32.totalorder %s12, 1
      %p51 = scmp.ne.s32.totalorder %s46, %s48
      %p52 = scmp.eq.s32.totalorder %s12, 0
      %p53 = por %p51, %p52
      %p54 = scmp.ne.s32.totalorder %s46, %s48
      %p55 = scmp.eq.s32.totalorder %s17, 1
      %p56 = por %p54, %p55
      %p57 = scmp.ne.s32.totalorder %s48, %s49
      %p58 = scmp.eq.s32.totalorder %s17, 0
      %p59 = por %p57, %p58
      %p60 = scmp.ne.s32.totalorder %s48, %s49
      %p61 = scmp.eq.s32.totalorder %s18, 1
      %p62 = por %p60, %p61
      %p64 = scmp.ne.s32.totalorder %s49, %s63
      %p65 = scmp.eq.s32.totalorder %s18, 0
      %p66 = por %p64, %p65
      %s68 = sadd.s32 %s67, 1
      %p71 = scmp.eq.s32.totalorder %s12, 1
      %p72 = scmp.ne.s32.totalorder %s67, %s69
      %p73 = scmp.eq.s32.totalorder %s12, 0
      %p74 = por %p72, %p73
      %p75 = scmp.ne.s32.totalorder %s67, %s69
      %p76 = scmp.eq.s32.totalorder %s17, 1
      %p77 = por %p75, %p76
      %p78 = scmp.ne.s32.totalorder %s69, %s70
      %p79 = scmp.eq.s32.totalorder %s17, 0
      %p80 = por %p78, %p79
      %p81 = scmp.ne.s32.totalorder %s69, %s70
      %p82 = scmp.eq.s32.totalorder %s18, 1
      %p83 = por %p81, %p82
      %p85 = scmp.ne.s32.totalorder %s70, %s84
      %p86 = scmp.eq.s32.totalorder %s18, 0
      %p87 = por %p85, %p86
      %s88 = ssub.s32 %s12, %s19
      %p89 = scmp.eq.s32.totalorder %s88, 0
      %s91 = sadd.s32 %s90, 1
      %s92 = scalar_select %p89, %s90, %s91
      %p95 = pneg %p89
      %p96 = scmp.eq.s32.totalorder %s12, 1
      %p97 = por %p95, %p96
      %p98 = scmp.ne.s32.totalorder %s90, %s93
      %p99 = scmp.eq.s32.totalorder %s12, 0
      %p100 = por %p98, %p99
      %p101 = scmp.ne.s32.totalorder %s90, %s93
      %p102 = scmp.eq.s32.totalorder %s17, 1
      %p103 = por %p101, %p102
      %p104 = scmp.ne.s32.totalorder %s93, %s94
      %p105 = scmp.eq.s32.totalorder %s17, 0
      %p106 = por %p104, %p105
      %p107 = scmp.ne.s32.totalorder %s93, %s94
      %p108 = scmp.eq.s32.totalorder %s18, 1
      %p109 = por %p107, %p108
      %p111 = scmp.ne.s32.totalorder %s94, %s110
      %p112 = scmp.eq.s32.totalorder %s18, 0
      %p113 = por %p111, %p112
      %p114 = scmp.le.s32.totalorder 1, %s12
      %p115 = scmp.lt.s32.totalorder %s12, 3
      %p116 = pnand %p114, %p115
      %p117 = pneg %p116
      // Predicated region
      $region9: #{double_conv_with_bn.5} parent=5 // pred_check
        _
      $region10: #{double_conv_with_bn.5} parent=5 // pred_check_branch
        %119 = sbr.rel (%p116) target = $region12
      $region11: #{double_conv_with_bn.5} parent=5 // pred_region
        %s120 = ssub.s32 %s12, 1
        // Predicated region
        $region13: #{double_conv_with_bn.5} parent=11 // pred_check
          %p121 = pneg %p59
        $region14: #{double_conv_with_bn.5} parent=11 // pred_check_branch
          %123 = sbr.rel (%p121) target = $region16
        $region15: #{double_conv_with_bn.5} parent=11 // pred_region
          _
        $region16: #{double_conv_with_bn.5} parent=11 // pred_fallthru
          _
        // Predicated region
        $region17: #{double_conv_with_bn.5} parent=11 // pred_check
          %p124 = pneg %p80
        $region18: #{double_conv_with_bn.5} parent=11 // pred_check_branch
          %126 = sbr.rel (%p124) target = $region20
        $region19: #{double_conv_with_bn.5} parent=11 // pred_region
          _
        $region20: #{double_conv_with_bn.5} parent=11 // pred_fallthru
          _
      $region12: #{double_conv_with_bn.5} parent=5 // pred_fallthru
        _
      %p127 = scmp.lt.s32.totalorder %s12, 2
      // Predicated region
      $region21: #{double_conv_with_bn.5} parent=5 // pred_check
        %p128 = pneg %p127
      $region22: #{double_conv_with_bn.5} parent=5 // pred_check_branch
        %130 = sbr.rel (%p128) target = $region24
      $region23: #{double_conv_with_bn.5} parent=5 // pred_region
        // Predicated region
        $region25: #{double_conv_with_bn.5} parent=23 // pred_check
          %p131 = pneg %p32
        $region26: #{double_conv_with_bn.5} parent=23 // pred_check_branch
          %133 = sbr.rel (%p131) target = $region28
        $region27: #{double_conv_with_bn.5} parent=23 // pred_region
          %p134 = scmp.lt.s32.totalorder %s12, 1
          %s135 = scalar_select %p134, %s12, 1
          %s136 = smul.addr %s135, 3
          %s137 = smul.addr %s136, 8
          %s138 = scalar_lea.vmem %s0, %s137
        $region28: #{double_conv_with_bn.5} parent=23 // pred_fallthru
          _
      $region24: #{double_conv_with_bn.5} parent=5 // pred_fallthru
        _
      %p139 = scmp.le.s32.totalorder 1, %s12
      %p140 = scmp.lt.s32.totalorder %s12, 3
      %p141 = pnand %p139, %p140
      %p142 = pneg %p141
      // Predicated region
      $region29: #{double_conv_with_bn.5} parent=5 // pred_check
        _
      $region30: #{double_conv_with_bn.5} parent=5 // pred_check_branch
        %144 = sbr.rel (%p141) target = $region32
      $region31: #{double_conv_with_bn.5} parent=5 // pred_region
        %s145 = ssub.s32 %s12, 1
        %p146 = scmp.lt.s32.totalorder %s17, 1
        %s147 = scalar_select %p146, %s17, 1
        %s148 = smul.addr %s147, 3
        %s149 = smul.addr %s148, 8
        %s150 = scalar_lea.vmem %s0, %s149
        %p151 = pneg %p38
        %p152 = pneg %p35
        %p153 = pneg %p59
        %p154 = pneg %p56
        %p155 = pneg %p80
        %p156 = pneg %p77
        %p157 = pneg %p106
        %p158 = pneg %p103
        %s159 = sand.u32 %s93, 1
        %s160 = scalar_lea.sflag [#allocation3], %s159
        %s161 = sand.u32 %s93, 1
        %s162 = smul.addr %s161, 128
        %s163 = scalar_lea.vmem [#allocation2], %s162
        %p164 = scmp.lt.s32.totalorder %s17, 1
        %s165 = scalar_select %p164, %s17, 1
        %s166 = smul.addr %s165, 3
        %s167 = smul.addr %s166, 8
        %s168 = scalar_lea.vmem %s0, %s167
        %v169 = vld [vmem:[%s168] sm:$0xff]
        %v170 = vld [vmem:[%s168 + $0x8] sm:$0xff]
        %v171 = vld [vmem:[%s168 + $0x10] sm:$0xff]
        %v172 = vld [vmem:[%s1] sm:$0xff]
        %174 = vset.pattern.permute.xlu0 0
        %175 = vperm.xlu0 %174, %v172
        %v176 = vpop.permute.xlu0 %175
        %v178 = vmul.f32 %v169, %v176
        %v179 = vmul.f32 %v170, %v176
        %v180 = vmul.f32 %v171, %v176
        %v181 = vld [vmem:[%s2] sm:$0xff]
        %183 = vset.pattern.permute.xlu0 0
        %184 = vperm.xlu0 %183, %v181
        %v185 = vpop.permute.xlu0 %184
        %v187 = vadd.f32 %v178, %v185
        %v188 = vadd.f32 %v179, %v185
        %v189 = vadd.f32 %v180, %v185
        %v191 = vrot.slane %v187, 1
        %v192 = vrot.slane %v187, 2
        %v193 = vrot.slane %v187, 3
        %v194 = vrot.slane %v187, 4
        %v195 = vrot.slane %v187, 5
        %v196 = vrot.slane %v187, 6
        %v197 = vrot.slane %v187, 7
        %v198 = vperm.slane %v187, 0
        %v199 = vperm.slane %v191, 0
        %v200 = vperm.slane %v192, 0
        %v201 = vperm.slane %v193, 0
        %v202 = vperm.slane %v194, 0
        %v203 = vperm.slane %v195, 0
        %v204 = vperm.slane %v196, 0
        %v205 = vperm.slane %v197, 0
        %206 = vrot.lane.b32.xlu0 %v198, 109
        %v207 = vpop.permute.xlu0 %206
        %208 = vrot.lane.b32.xlu0 %v199, 109
        %v209 = vpop.permute.xlu0 %208
        %210 = vrot.lane.b32.xlu0 %v200, 109
        %v211 = vpop.permute.xlu0 %210
        %212 = vrot.lane.b32.xlu0 %v201, 109
        %v213 = vpop.permute.xlu0 %212
        %214 = vrot.lane.b32.xlu0 %v202, 109
        %v215 = vpop.permute.xlu0 %214
        %216 = vrot.lane.b32.xlu0 %v203, 109
        %v217 = vpop.permute.xlu0 %216
        %218 = vrot.lane.b32.xlu0 %v204, 109
        %v219 = vpop.permute.xlu0 %218
        %220 = vrot.lane.b32.xlu0 %v205, 109
        %v221 = vpop.permute.xlu0 %220
        %vm230 = vcmask 122880
        %231 = vst.msk [vmem:[%s163] sm:$0x1] %vm230, %v207
        %232 = vst.msk [vmem:[%s163 + $0x10] sm:$0x1] %vm230, %v209
        %233 = vst.msk [vmem:[%s163 + $0x20] sm:$0x1] %vm230, %v211
        %234 = vst.msk [vmem:[%s163 + $0x30] sm:$0x1] %vm230, %v213
        %235 = vst.msk [vmem:[%s163 + $0x40] sm:$0x1] %vm230, %v215
        %236 = vst.msk [vmem:[%s163 + $0x50] sm:$0x1] %vm230, %v217
        %237 = vst.msk [vmem:[%s163 + $0x60] sm:$0x1] %vm230, %v219
        %238 = vst.msk [vmem:[%s163 + $0x70] sm:$0x1] %vm230, %v221
        %239 = vrot.lane.b32.xlu0 %v198, 91
        %v240 = vpop.permute.xlu0 %239
        %241 = vrot.lane.b32.xlu0 %v199, 91
        %v242 = vpop.permute.xlu0 %241
        %243 = vrot.lane.b32.xlu0 %v200, 91
        %v244 = vpop.permute.xlu0 %243
        %245 = vrot.lane.b32.xlu0 %v201, 91
        %v246 = vpop.permute.xlu0 %245
        %247 = vrot.lane.b32.xlu0 %v202, 91
        %v248 = vpop.permute.xlu0 %247
        %249 = vrot.lane.b32.xlu0 %v203, 91
        %v250 = vpop.permute.xlu0 %249
        %251 = vrot.lane.b32.xlu0 %v204, 91
        %v252 = vpop.permute.xlu0 %251
        %253 = vrot.lane.b32.xlu0 %v205, 91
        %v254 = vpop.permute.xlu0 %253
        %263 = vst.msk [vmem:[%s163 + $0x1] sm:$0x1] %vm230, %v240
        %264 = vst.msk [vmem:[%s163 + $0x11] sm:$0x1] %vm230, %v242
        %265 = vst.msk [vmem:[%s163 + $0x21] sm:$0x1] %vm230, %v244
        %266 = vst.msk [vmem:[%s163 + $0x31] sm:$0x1] %vm230, %v246
        %267 = vst.msk [vmem:[%s163 + $0x41] sm:$0x1] %vm230, %v248
        %268 = vst.msk [vmem:[%s163 + $0x51] sm:$0x1] %vm230, %v250
        %269 = vst.msk [vmem:[%s163 + $0x61] sm:$0x1] %vm230, %v252
        %270 = vst.msk [vmem:[%s163 + $0x71] sm:$0x1] %vm230, %v254
        %271 = vrot.lane.b32.xlu0 %v198, 73
        %v272 = vpop.permute.xlu0 %271
        %273 = vrot.lane.b32.xlu0 %v199, 73
        %v274 = vpop.permute.xlu0 %273
        %275 = vrot.lane.b32.xlu0 %v200, 73
        %v276 = vpop.permute.xlu0 %275
        %277 = vrot.lane.b32.xlu0 %v201, 73
        %v278 = vpop.permute.xlu0 %277
        %279 = vrot.lane.b32.xlu0 %v202, 73
        %v280 = vpop.permute.xlu0 %279
        %281 = vrot.lane.b32.xlu0 %v203, 73
        %v282 = vpop.permute.xlu0 %281
        %283 = vrot.lane.b32.xlu0 %v204, 73
        %v284 = vpop.permute.xlu0 %283
        %285 = vrot.lane.b32.xlu0 %v205, 73
        %v286 = vpop.permute.xlu0 %285
        %295 = vst.msk [vmem:[%s163 + $0x2] sm:$0x1] %vm230, %v272
        %296 = vst.msk [vmem:[%s163 + $0x12] sm:$0x1] %vm230, %v274
        %297 = vst.msk [vmem:[%s163 + $0x22] sm:$0x1] %vm230, %v276
        %298 = vst.msk [vmem:[%s163 + $0x32] sm:$0x1] %vm230, %v278
        %299 = vst.msk [vmem:[%s163 + $0x42] sm:$0x1] %vm230, %v280
        %300 = vst.msk [vmem:[%s163 + $0x52] sm:$0x1] %vm230, %v282
        %301 = vst.msk [vmem:[%s163 + $0x62] sm:$0x1] %vm230, %v284
        %302 = vst.msk [vmem:[%s163 + $0x72] sm:$0x1] %vm230, %v286
        %303 = vrot.lane.b32.xlu0 %v198, 55
        %v304 = vpop.permute.xlu0 %303
        %305 = vrot.lane.b32.xlu0 %v199, 55
        %v306 = vpop.permute.xlu0 %305
        %307 = vrot.lane.b32.xlu0 %v200, 55
        %v308 = vpop.permute.xlu0 %307
        %309 = vrot.lane.b32.xlu0 %v201, 55
        %v310 = vpop.permute.xlu0 %309
        %311 = vrot.lane.b32.xlu0 %v202, 55
        %v312 = vpop.permute.xlu0 %311
        %313 = vrot.lane.b32.xlu0 %v203, 55
        %v314 = vpop.permute.xlu0 %313
        %315 = vrot.lane.b32.xlu0 %v204, 55
        %v316 = vpop.permute.xlu0 %315
        %317 = vrot.lane.b32.xlu0 %v205, 55
        %v318 = vpop.permute.xlu0 %317
        %327 = vst.msk [vmem:[%s163 + $0x3] sm:$0x1] %vm230, %v304
        %328 = vst.msk [vmem:[%s163 + $0x13] sm:$0x1] %vm230, %v306
        %329 = vst.msk [vmem:[%s163 + $0x23] sm:$0x1] %vm230, %v308
        %330 = vst.msk [vmem:[%s163 + $0x33] sm:$0x1] %vm230, %v310
        %331 = vst.msk [vmem:[%s163 + $0x43] sm:$0x1] %vm230, %v312
        %332 = vst.msk [vmem:[%s163 + $0x53] sm:$0x1] %vm230, %v314
        %333 = vst.msk [vmem:[%s163 + $0x63] sm:$0x1] %vm230, %v316
        %334 = vst.msk [vmem:[%s163 + $0x73] sm:$0x1] %vm230, %v318
        %335 = vrot.lane.b32.xlu0 %v198, 37
        %v336 = vpop.permute.xlu0 %335
        %337 = vrot.lane.b32.xlu0 %v199, 37
        %v338 = vpop.permute.xlu0 %337
        %339 = vrot.lane.b32.xlu0 %v200, 37
        %v340 = vpop.permute.xlu0 %339
        %341 = vrot.lane.b32.xlu0 %v201, 37
        %v342 = vpop.permute.xlu0 %341
        %343 = vrot.lane.b32.xlu0 %v202, 37
        %v344 = vpop.permute.xlu0 %343
        %345 = vrot.lane.b32.xlu0 %v203, 37
        %v346 = vpop.permute.xlu0 %345
        %347 = vrot.lane.b32.xlu0 %v204, 37
        %v348 = vpop.permute.xlu0 %347
        %349 = vrot.lane.b32.xlu0 %v205, 37
        %v350 = vpop.permute.xlu0 %349
        %359 = vst.msk [vmem:[%s163 + $0x4] sm:$0x1] %vm230, %v336
        %360 = vst.msk [vmem:[%s163 + $0x14] sm:$0x1] %vm230, %v338
        %361 = vst.msk [vmem:[%s163 + $0x24] sm:$0x1] %vm230, %v340
        %362 = vst.msk [vmem:[%s163 + $0x34] sm:$0x1] %vm230, %v342
        %363 = vst.msk [vmem:[%s163 + $0x44] sm:$0x1] %vm230, %v344
        %364 = vst.msk [vmem:[%s163 + $0x54] sm:$0x1] %vm230, %v346
        %365 = vst.msk [vmem:[%s163 + $0x64] sm:$0x1] %vm230, %v348
        %366 = vst.msk [vmem:[%s163 + $0x74] sm:$0x1] %vm230, %v350
        %367 = vrot.lane.b32.xlu0 %v198, 19
        %v368 = vpop.permute.xlu0 %367
        %369 = vrot.lane.b32.xlu0 %v199, 19
        %v370 = vpop.permute.xlu0 %369
        %371 = vrot.lane.b32.xlu0 %v200, 19
        %v372 = vpop.permute.xlu0 %371
        %373 = vrot.lane.b32.xlu0 %v201, 19
        %v374 = vpop.permute.xlu0 %373
        %375 = vrot.lane.b32.xlu0 %v202, 19
        %v376 = vpop.permute.xlu0 %375
        %377 = vrot.lane.b32.xlu0 %v203, 19
        %v378 = vpop.permute.xlu0 %377
        %379 = vrot.lane.b32.xlu0 %v204, 19
        %v380 = vpop.permute.xlu0 %379
        %381 = vrot.lane.b32.xlu0 %v205, 19
        %v382 = vpop.permute.xlu0 %381
        %391 = vst.msk [vmem:[%s163 + $0x5] sm:$0x1] %vm230, %v368
        %392 = vst.msk [vmem:[%s163 + $0x15] sm:$0x1] %vm230, %v370
        %393 = vst.msk [vmem:[%s163 + $0x25] sm:$0x1] %vm230, %v372
        %394 = vst.msk [vmem:[%s163 + $0x35] sm:$0x1] %vm230, %v374
        %395 = vst.msk [vmem:[%s163 + $0x45] sm:$0x1] %vm230, %v376
        %396 = vst.msk [vmem:[%s163 + $0x55] sm:$0x1] %vm230, %v378
        %397 = vst.msk [vmem:[%s163 + $0x65] sm:$0x1] %vm230, %v380
        %398 = vst.msk [vmem:[%s163 + $0x75] sm:$0x1] %vm230, %v382
        %v400 = vrot.slane %v188, 7
        %vm401 = vcmask 1040384
        %v402 = vsel %vm401, %v187, %v400
        %vm403 = vcmask 1041409
        %v404 = vsel %vm403, %v187, %v400
        %v405 = vrot.slane %v404, 1
        %vm406 = vcmask 1042434
        %v407 = vsel %vm406, %v187, %v400
        %v408 = vrot.slane %v407, 2
        %vm409 = vcmask 1043459
        %v410 = vsel %vm409, %v187, %v400
        %v411 = vrot.slane %v410, 3
        %vm412 = vcmask 1044484
        %v413 = vsel %vm412, %v187, %v400
        %v414 = vrot.slane %v413, 4
        %vm415 = vcmask 1045509
        %v416 = vsel %vm415, %v187, %v400
        %v417 = vrot.slane %v416, 5
        %vm418 = vcmask 1046534
        %v419 = vsel %vm418, %v187, %v400
        %v420 = vrot.slane %v419, 6
        %vm421 = vcmask 1046528
        %v422 = vsel %vm421, %v400, %v187
        %v423 = vrot.slane %v422, 7
        %v424 = vperm.slane %v402, 0
        %v425 = vperm.slane %v402, 1
        %v426 = vperm.slane %v405, 0
        %v427 = vperm.slane %v405, 1
        %v428 = vperm.slane %v408, 0
        %v429 = vperm.slane %v408, 1
        %v430 = vperm.slane %v411, 0
        %v431 = vperm.slane %v411, 1
        %v432 = vperm.slane %v414, 0
        %v433 = vperm.slane %v414, 1
        %v434 = vperm.slane %v417, 0
        %v435 = vperm.slane %v417, 1
        %v436 = vperm.slane %v420, 0
        %v437 = vperm.slane %v420, 1
        %v438 = vperm.slane %v423, 0
        %v439 = vperm.slane %v423, 1
        %440 = vrot.lane.b32.xlu0 %v424, 1
        %v441 = vpop.permute.xlu0 %440
        %442 = vrot.lane.b32.xlu0 %v425, 1
        %v443 = vpop.permute.xlu0 %442
        %444 = vrot.lane.b32.xlu0 %v426, 1
        %v445 = vpop.permute.xlu0 %444
        %446 = vrot.lane.b32.xlu0 %v427, 1
        %v447 = vpop.permute.xlu0 %446
        %448 = vrot.lane.b32.xlu0 %v428, 1
        %v449 = vpop.permute.xlu0 %448
        %450 = vrot.lane.b32.xlu0 %v429, 1
        %v451 = vpop.permute.xlu0 %450
        %452 = vrot.lane.b32.xlu0 %v430, 1
        %v453 = vpop.permute.xlu0 %452
        %454 = vrot.lane.b32.xlu0 %v431, 1
        %v455 = vpop.permute.xlu0 %454
        %456 = vrot.lane.b32.xlu0 %v432, 1
        %v457 = vpop.permute.xlu0 %456
        %458 = vrot.lane.b32.xlu0 %v433, 1
        %v459 = vpop.permute.xlu0 %458
        %460 = vrot.lane.b32.xlu0 %v434, 1
        %v461 = vpop.permute.xlu0 %460
        %462 = vrot.lane.b32.xlu0 %v435, 1
        %v463 = vpop.permute.xlu0 %462
        %464 = vrot.lane.b32.xlu0 %v436, 1
        %v465 = vpop.permute.xlu0 %464
        %466 = vrot.lane.b32.xlu0 %v437, 1
        %v467 = vpop.permute.xlu0 %466
        %468 = vrot.lane.b32.xlu0 %v438, 1
        %v469 = vpop.permute.xlu0 %468
        %470 = vrot.lane.b32.xlu0 %v439, 1
        %v471 = vpop.permute.xlu0 %470
        %vm472 = vcmask 7168
        %v473 = vsel %vm472, %v441, %v443
        %v474 = vsel %vm472, %v445, %v447
        %v475 = vsel %vm472, %v449, %v451
        %v476 = vsel %vm472, %v453, %v455
        %v477 = vsel %vm472, %v457, %v459
        %v478 = vsel %vm472, %v461, %v463
        %v479 = vsel %vm472, %v465, %v467
        %v480 = vsel %vm472, %v469, %v471
        %489 = vst.msk [vmem:[%s163 + $0x6] sm:$0x1] %vm230, %v473
        %490 = vst.msk [vmem:[%s163 + $0x16] sm:$0x1] %vm230, %v474
        %491 = vst.msk [vmem:[%s163 + $0x26] sm:$0x1] %vm230, %v475
        %492 = vst.msk [vmem:[%s163 + $0x36] sm:$0x1] %vm230, %v476
        %493 = vst.msk [vmem:[%s163 + $0x46] sm:$0x1] %vm230, %v477
        %494 = vst.msk [vmem:[%s163 + $0x56] sm:$0x1] %vm230, %v478
        %495 = vst.msk [vmem:[%s163 + $0x66] sm:$0x1] %vm230, %v479
        %496 = vst.msk [vmem:[%s163 + $0x76] sm:$0x1] %vm230, %v480
        %v497 = vrot.slane %v188, 1
        %v498 = vrot.slane %v188, 2
        %v499 = vrot.slane %v188, 3
        %v500 = vrot.slane %v188, 4
        %v501 = vrot.slane %v188, 5
        %v502 = vrot.slane %v188, 6
        %v503 = vperm.slane %v188, 0
        %v504 = vperm.slane %v497, 0
        %v505 = vperm.slane %v498, 0
        %v506 = vperm.slane %v499, 0
        %v507 = vperm.slane %v500, 0
        %v508 = vperm.slane %v501, 0
        %v509 = vperm.slane %v502, 0
        %v510 = vperm.slane %v400, 0
        %511 = vrot.lane.b32.xlu0 %v503, 111
        %v512 = vpop.permute.xlu0 %511
        %513 = vrot.lane.b32.xlu0 %v504, 111
        %v514 = vpop.permute.xlu0 %513
        %515 = vrot.lane.b32.xlu0 %v505, 111
        %v516 = vpop.permute.xlu0 %515
        %517 = vrot.lane.b32.xlu0 %v506, 111
        %v518 = vpop.permute.xlu0 %517
        %519 = vrot.lane.b32.xlu0 %v507, 111
        %v520 = vpop.permute.xlu0 %519
        %521 = vrot.lane.b32.xlu0 %v508, 111
        %v522 = vpop.permute.xlu0 %521
        %523 = vrot.lane.b32.xlu0 %v509, 111
        %v524 = vpop.permute.xlu0 %523
        %525 = vrot.lane.b32.xlu0 %v510, 111
        %v526 = vpop.permute.xlu0 %525
        %535 = vst.msk [vmem:[%s163 + $0x7] sm:$0x1] %vm230, %v512
        %536 = vst.msk [vmem:[%s163 + $0x17] sm:$0x1] %vm230, %v514
        %537 = vst.msk [vmem:[%s163 + $0x27] sm:$0x1] %vm230, %v516
        %538 = vst.msk [vmem:[%s163 + $0x37] sm:$0x1] %vm230, %v518
        %539 = vst.msk [vmem:[%s163 + $0x47] sm:$0x1] %vm230, %v520
        %540 = vst.msk [vmem:[%s163 + $0x57] sm:$0x1] %vm230, %v522
        %541 = vst.msk [vmem:[%s163 + $0x67] sm:$0x1] %vm230, %v524
        %542 = vst.msk [vmem:[%s163 + $0x77] sm:$0x1] %vm230, %v526
        %543 = vrot.lane.b32.xlu0 %v503, 93
        %v544 = vpop.permute.xlu0 %543
        %545 = vrot.lane.b32.xlu0 %v504, 93
        %v546 = vpop.permute.xlu0 %545
        %547 = vrot.lane.b32.xlu0 %v505, 93
        %v548 = vpop.permute.xlu0 %547
        %549 = vrot.lane.b32.xlu0 %v506, 93
        %v550 = vpop.permute.xlu0 %549
        %551 = vrot.lane.b32.xlu0 %v507, 93
        %v552 = vpop.permute.xlu0 %551
        %553 = vrot.lane.b32.xlu0 %v508, 93
        %v554 = vpop.permute.xlu0 %553
        %555 = vrot.lane.b32.xlu0 %v509, 93
        %v556 = vpop.permute.xlu0 %555
        %557 = vrot.lane.b32.xlu0 %v510, 93
        %v558 = vpop.permute.xlu0 %557
        %567 = vst.msk [vmem:[%s163 + $0x8] sm:$0x1] %vm230, %v544
        %568 = vst.msk [vmem:[%s163 + $0x18] sm:$0x1] %vm230, %v546
        %569 = vst.msk [vmem:[%s163 + $0x28] sm:$0x1] %vm230, %v548
        %570 = vst.msk [vmem:[%s163 + $0x38] sm:$0x1] %vm230, %v550
        %571 = vst.msk [vmem:[%s163 + $0x48] sm:$0x1] %vm230, %v552
        %572 = vst.msk [vmem:[%s163 + $0x58] sm:$0x1] %vm230, %v554
        %573 = vst.msk [vmem:[%s163 + $0x68] sm:$0x1] %vm230, %v556
        %574 = vst.msk [vmem:[%s163 + $0x78] sm:$0x1] %vm230, %v558
        %575 = vrot.lane.b32.xlu0 %v503, 75
        %v576 = vpop.permute.xlu0 %575
        %577 = vrot.lane.b32.xlu0 %v504, 75
        %v578 = vpop.permute.xlu0 %577
        %579 = vrot.lane.b32.xlu0 %v505, 75
        %v580 = vpop.permute.xlu0 %579
        %581 = vrot.lane.b32.xlu0 %v506, 75
        %v582 = vpop.permute.xlu0 %581
        %583 = vrot.lane.b32.xlu0 %v507, 75
        %v584 = vpop.permute.xlu0 %583
        %585 = vrot.lane.b32.xlu0 %v508, 75
        %v586 = vpop.permute.xlu0 %585
        %587 = vrot.lane.b32.xlu0 %v509, 75
        %v588 = vpop.permute.xlu0 %587
        %589 = vrot.lane.b32.xlu0 %v510, 75
        %v590 = vpop.permute.xlu0 %589
        %599 = vst.msk [vmem:[%s163 + $0x9] sm:$0x1] %vm230, %v576
        %600 = vst.msk [vmem:[%s163 + $0x19] sm:$0x1] %vm230, %v578
        %601 = vst.msk [vmem:[%s163 + $0x29] sm:$0x1] %vm230, %v580
        %602 = vst.msk [vmem:[%s163 + $0x39] sm:$0x1] %vm230, %v582
        %603 = vst.msk [vmem:[%s163 + $0x49] sm:$0x1] %vm230, %v584
        %604 = vst.msk [vmem:[%s163 + $0x59] sm:$0x1] %vm230, %v586
        %605 = vst.msk [vmem:[%s163 + $0x69] sm:$0x1] %vm230, %v588
        %606 = vst.msk [vmem:[%s163 + $0x79] sm:$0x1] %vm230, %v590
        %607 = vrot.lane.b32.xlu0 %v503, 57
        %v608 = vpop.permute.xlu0 %607
        %609 = vrot.lane.b32.xlu0 %v504, 57
        %v610 = vpop.permute.xlu0 %609
        %611 = vrot.lane.b32.xlu0 %v505, 57
        %v612 = vpop.permute.xlu0 %611
        %613 = vrot.lane.b32.xlu0 %v506, 57
        %v614 = vpop.permute.xlu0 %613
        %615 = vrot.lane.b32.xlu0 %v507, 57
        %v616 = vpop.permute.xlu0 %615
        %617 = vrot.lane.b32.xlu0 %v508, 57
        %v618 = vpop.permute.xlu0 %617
        %619 = vrot.lane.b32.xlu0 %v509, 57
        %v620 = vpop.permute.xlu0 %619
        %621 = vrot.lane.b32.xlu0 %v510, 57
        %v622 = vpop.permute.xlu0 %621
        %631 = vst.msk [vmem:[%s163 + $0xa] sm:$0x1] %vm230, %v608
        %632 = vst.msk [vmem:[%s163 + $0x1a] sm:$0x1] %vm230, %v610
        %633 = vst.msk [vmem:[%s163 + $0x2a] sm:$0x1] %vm230, %v612
        %634 = vst.msk [vmem:[%s163 + $0x3a] sm:$0x1] %vm230, %v614
        %635 = vst.msk [vmem:[%s163 + $0x4a] sm:$0x1] %vm230, %v616
        %636 = vst.msk [vmem:[%s163 + $0x5a] sm:$0x1] %vm230, %v618
        %637 = vst.msk [vmem:[%s163 + $0x6a] sm:$0x1] %vm230, %v620
        %638 = vst.msk [vmem:[%s163 + $0x7a] sm:$0x1] %vm230, %v622
        %639 = vrot.lane.b32.xlu0 %v503, 39
        %v640 = vpop.permute.xlu0 %639
        %641 = vrot.lane.b32.xlu0 %v504, 39
        %v642 = vpop.permute.xlu0 %641
        %643 = vrot.lane.b32.xlu0 %v505, 39
        %v644 = vpop.permute.xlu0 %643
        %645 = vrot.lane.b32.xlu0 %v506, 39
        %v646 = vpop.permute.xlu0 %645
        %647 = vrot.lane.b32.xlu0 %v507, 39
        %v648 = vpop.permute.xlu0 %647
        %649 = vrot.lane.b32.xlu0 %v508, 39
        %v650 = vpop.permute.xlu0 %649
        %651 = vrot.lane.b32.xlu0 %v509, 39
        %v652 = vpop.permute.xlu0 %651
        %653 = vrot.lane.b32.xlu0 %v510, 39
        %v654 = vpop.permute.xlu0 %653
        %663 = vst.msk [vmem:[%s163 + $0xb] sm:$0x1] %vm230, %v640
        %664 = vst.msk [vmem:[%s163 + $0x1b] sm:$0x1] %vm230, %v642
        %665 = vst.msk [vmem:[%s163 + $0x2b] sm:$0x1] %vm230, %v644
        %666 = vst.msk [vmem:[%s163 + $0x3b] sm:$0x1] %vm230, %v646
        %667 = vst.msk [vmem:[%s163 + $0x4b] sm:$0x1] %vm230, %v648
        %668 = vst.msk [vmem:[%s163 + $0x5b] sm:$0x1] %vm230, %v650
        %669 = vst.msk [vmem:[%s163 + $0x6b] sm:$0x1] %vm230, %v652
        %670 = vst.msk [vmem:[%s163 + $0x7b] sm:$0x1] %vm230, %v654
        %671 = vrot.lane.b32.xlu0 %v503, 21
        %v672 = vpop.permute.xlu0 %671
        %673 = vrot.lane.b32.xlu0 %v504, 21
        %v674 = vpop.permute.xlu0 %673
        %675 = vrot.lane.b32.xlu0 %v505, 21
        %v676 = vpop.permute.xlu0 %675
        %677 = vrot.lane.b32.xlu0 %v506, 21
        %v678 = vpop.permute.xlu0 %677
        %679 = vrot.lane.b32.xlu0 %v507, 21
        %v680 = vpop.permute.xlu0 %679
        %681 = vrot.lane.b32.xlu0 %v508, 21
        %v682 = vpop.permute.xlu0 %681
        %683 = vrot.lane.b32.xlu0 %v509, 21
        %v684 = vpop.permute.xlu0 %683
        %685 = vrot.lane.b32.xlu0 %v510, 21
        %v686 = vpop.permute.xlu0 %685
        %695 = vst.msk [vmem:[%s163 + $0xc] sm:$0x1] %vm230, %v672
        %696 = vst.msk [vmem:[%s163 + $0x1c] sm:$0x1] %vm230, %v674
        %697 = vst.msk [vmem:[%s163 + $0x2c] sm:$0x1] %vm230, %v676
        %698 = vst.msk [vmem:[%s163 + $0x3c] sm:$0x1] %vm230, %v678
        %699 = vst.msk [vmem:[%s163 + $0x4c] sm:$0x1] %vm230, %v680
        %700 = vst.msk [vmem:[%s163 + $0x5c] sm:$0x1] %vm230, %v682
        %701 = vst.msk [vmem:[%s163 + $0x6c] sm:$0x1] %vm230, %v684
        %702 = vst.msk [vmem:[%s163 + $0x7c] sm:$0x1] %vm230, %v686
        %v704 = vrot.slane %v189, 7
        %v705 = vsel %vm401, %v188, %v704
        %v706 = vsel %vm403, %v188, %v704
        %v707 = vrot.slane %v706, 1
        %v708 = vsel %vm406, %v188, %v704
        %v709 = vrot.slane %v708, 2
        %v710 = vsel %vm409, %v188, %v704
        %v711 = vrot.slane %v710, 3
        %v712 = vsel %vm412, %v188, %v704
        %v713 = vrot.slane %v712, 4
        %v714 = vsel %vm415, %v188, %v704
        %v715 = vrot.slane %v714, 5
        %v716 = vsel %vm418, %v188, %v704
        %v717 = vrot.slane %v716, 6
        %v718 = vsel %vm421, %v704, %v188
        %v719 = vrot.slane %v718, 7
        %v720 = vperm.slane %v705, 0
        %v721 = vperm.slane %v705, 1
        %v722 = vperm.slane %v707, 0
        %v723 = vperm.slane %v707, 1
        %v724 = vperm.slane %v709, 0
        %v725 = vperm.slane %v709, 1
        %v726 = vperm.slane %v711, 0
        %v727 = vperm.slane %v711, 1
        %v728 = vperm.slane %v713, 0
        %v729 = vperm.slane %v713, 1
        %v730 = vperm.slane %v715, 0
        %v731 = vperm.slane %v715, 1
        %v732 = vperm.slane %v717, 0
        %v733 = vperm.slane %v717, 1
        %v734 = vperm.slane %v719, 0
        %v735 = vperm.slane %v719, 1
        %736 = vrot.lane.b32.xlu0 %v720, 3
        %v737 = vpop.permute.xlu0 %736
        %738 = vrot.lane.b32.xlu0 %v721, 3
        %v739 = vpop.permute.xlu0 %738
        %740 = vrot.lane.b32.xlu0 %v722, 3
        %v741 = vpop.permute.xlu0 %740
        %742 = vrot.lane.b32.xlu0 %v723, 3
        %v743 = vpop.permute.xlu0 %742
        %744 = vrot.lane.b32.xlu0 %v724, 3
        %v745 = vpop.permute.xlu0 %744
        %746 = vrot.lane.b32.xlu0 %v725, 3
        %v747 = vpop.permute.xlu0 %746
        %748 = vrot.lane.b32.xlu0 %v726, 3
        %v749 = vpop.permute.xlu0 %748
        %750 = vrot.lane.b32.xlu0 %v727, 3
        %v751 = vpop.permute.xlu0 %750
        %752 = vrot.lane.b32.xlu0 %v728, 3
        %v753 = vpop.permute.xlu0 %752
        %754 = vrot.lane.b32.xlu0 %v729, 3
        %v755 = vpop.permute.xlu0 %754
        %756 = vrot.lane.b32.xlu0 %v730, 3
        %v757 = vpop.permute.xlu0 %756
        %758 = vrot.lane.b32.xlu0 %v731, 3
        %v759 = vpop.permute.xlu0 %758
        %760 = vrot.lane.b32.xlu0 %v732, 3
        %v761 = vpop.permute.xlu0 %760
        %762 = vrot.lane.b32.xlu0 %v733, 3
        %v763 = vpop.permute.xlu0 %762
        %764 = vrot.lane.b32.xlu0 %v734, 3
        %v765 = vpop.permute.xlu0 %764
        %766 = vrot.lane.b32.xlu0 %v735, 3
        %v767 = vpop.permute.xlu0 %766
        %vm768 = vcmask 23552
        %v769 = vsel %vm768, %v737, %v739
        %v770 = vsel %vm768, %v741, %v743
        %v771 = vsel %vm768, %v745, %v747
        %v772 = vsel %vm768, %v749, %v751
        %v773 = vsel %vm768, %v753, %v755
        %v774 = vsel %vm768, %v757, %v759
        %v775 = vsel %vm768, %v761, %v763
        %v776 = vsel %vm768, %v765, %v767
        %785 = vst.msk [vmem:[%s163 + $0xd] sm:$0x1] %vm230, %v769
        %786 = vst.msk [vmem:[%s163 + $0x1d] sm:$0x1] %vm230, %v770
        %787 = vst.msk [vmem:[%s163 + $0x2d] sm:$0x1] %vm230, %v771
        %788 = vst.msk [vmem:[%s163 + $0x3d] sm:$0x1] %vm230, %v772
        %789 = vst.msk [vmem:[%s163 + $0x4d] sm:$0x1] %vm230, %v773
        %790 = vst.msk [vmem:[%s163 + $0x5d] sm:$0x1] %vm230, %v774
        %791 = vst.msk [vmem:[%s163 + $0x6d] sm:$0x1] %vm230, %v775
        %792 = vst.msk [vmem:[%s163 + $0x7d] sm:$0x1] %vm230, %v776
        %v793 = vrot.slane %v189, 1
        %v794 = vrot.slane %v189, 2
        %v795 = vrot.slane %v189, 3
        %v796 = vrot.slane %v189, 4
        %v797 = vrot.slane %v189, 5
        %v798 = vrot.slane %v189, 6
        %v799 = vperm.slane %v189, 0
        %v800 = vperm.slane %v793, 0
        %v801 = vperm.slane %v794, 0
        %v802 = vperm.slane %v795, 0
        %v803 = vperm.slane %v796, 0
        %v804 = vperm.slane %v797, 0
        %v805 = vperm.slane %v798, 0
        %v806 = vperm.slane %v704, 0
        %807 = vrot.lane.b32.xlu0 %v799, 113
        %v808 = vpop.permute.xlu0 %807
        %809 = vrot.lane.b32.xlu0 %v800, 113
        %v810 = vpop.permute.xlu0 %809
        %811 = vrot.lane.b32.xlu0 %v801, 113
        %v812 = vpop.permute.xlu0 %811
        %813 = vrot.lane.b32.xlu0 %v802, 113
        %v814 = vpop.permute.xlu0 %813
        %815 = vrot.lane.b32.xlu0 %v803, 113
        %v816 = vpop.permute.xlu0 %815
        %817 = vrot.lane.b32.xlu0 %v804, 113
        %v818 = vpop.permute.xlu0 %817
        %819 = vrot.lane.b32.xlu0 %v805, 113
        %v820 = vpop.permute.xlu0 %819
        %821 = vrot.lane.b32.xlu0 %v806, 113
        %v822 = vpop.permute.xlu0 %821
        %831 = vst.msk [vmem:[%s163 + $0xe] sm:$0x1] %vm230, %v808
        %832 = vst.msk [vmem:[%s163 + $0x1e] sm:$0x1] %vm230, %v810
        %833 = vst.msk [vmem:[%s163 + $0x2e] sm:$0x1] %vm230, %v812
        %834 = vst.msk [vmem:[%s163 + $0x3e] sm:$0x1] %vm230, %v814
        %835 = vst.msk [vmem:[%s163 + $0x4e] sm:$0x1] %vm230, %v816
        %836 = vst.msk [vmem:[%s163 + $0x5e] sm:$0x1] %vm230, %v818
        %837 = vst.msk [vmem:[%s163 + $0x6e] sm:$0x1] %vm230, %v820
        %838 = vst.msk [vmem:[%s163 + $0x7e] sm:$0x1] %vm230, %v822
        %839 = vrot.lane.b32.xlu0 %v799, 95
        %v840 = vpop.permute.xlu0 %839
        %841 = vrot.lane.b32.xlu0 %v800, 95
        %v842 = vpop.permute.xlu0 %841
        %843 = vrot.lane.b32.xlu0 %v801, 95
        %v844 = vpop.permute.xlu0 %843
        %845 = vrot.lane.b32.xlu0 %v802, 95
        %v846 = vpop.permute.xlu0 %845
        %847 = vrot.lane.b32.xlu0 %v803, 95
        %v848 = vpop.permute.xlu0 %847
        %849 = vrot.lane.b32.xlu0 %v804, 95
        %v850 = vpop.permute.xlu0 %849
        %851 = vrot.lane.b32.xlu0 %v805, 95
        %v852 = vpop.permute.xlu0 %851
        %853 = vrot.lane.b32.xlu0 %v806, 95
        %v854 = vpop.permute.xlu0 %853
        %863 = vst.msk [vmem:[%s163 + $0xf] sm:$0x1] %vm230, %v840
        %864 = vst.msk [vmem:[%s163 + $0x1f] sm:$0x1] %vm230, %v842
        %865 = vst.msk [vmem:[%s163 + $0x2f] sm:$0x1] %vm230, %v844
        %866 = vst.msk [vmem:[%s163 + $0x3f] sm:$0x1] %vm230, %v846
        %867 = vst.msk [vmem:[%s163 + $0x4f] sm:$0x1] %vm230, %v848
        %868 = vst.msk [vmem:[%s163 + $0x5f] sm:$0x1] %vm230, %v850
        %869 = vst.msk [vmem:[%s163 + $0x6f] sm:$0x1] %vm230, %v852
        %870 = vst.msk [vmem:[%s163 + $0x7f] sm:$0x1] %vm230, %v854
        %s871 = sand.u32 %s93, 1
        %s872 = scalar_lea.sflag [#allocation3], %s871
        %s873 = sand.u32 %s93, 1
        %s874 = smul.addr %s873, 128
        %s875 = scalar_lea.vmem [#allocation2], %s874
        // Predicated region
        $region33: #{double_conv_with_bn.5} parent=31 // pred_check
          %p876 = pneg %p103
        $region34: #{double_conv_with_bn.5} parent=31 // pred_check_branch
          %878 = sbr.rel (%p876) target = $region36
        $region35: #{double_conv_with_bn.5} parent=31 // pred_region
          %880 = vsyncadd %s872, 0
          %s881 = smul.addr %s17, 16
          %s882 = smul.addr %s881, 8
          %s883 = scalar_lea.hbm %s3, %s882
          %s884 = sshll.u32 %s875, 4
          %s885 = int_to_ptr.vmem [resolvable:$true] %s884
          %s886 = sshll.u32 %s883, 4
          %s887 = int_to_ptr.hbm [resolvable:$true] %s886
          %892 = dma.vmem_to_hbm [thread:$0]  %s885, 2048, %s887, %s872, 128, 128, 8
        $region36: #{double_conv_with_bn.5} parent=31 // pred_fallthru
          _
      $region32: #{double_conv_with_bn.5} parent=5 // pred_fallthru
        _
      %p893 = scmp.le.s32.totalorder 2, %s12
      // Predicated region
      $region37: #{double_conv_with_bn.5} parent=5 // pred_check
        %p894 = pneg %p893
      $region38: #{double_conv_with_bn.5} parent=5 // pred_check_branch
        %896 = sbr.rel (%p894) target = $region40
      $region39: #{double_conv_with_bn.5} parent=5 // pred_region
        %s897 = ssub.s32 %s12, 2
        // Predicated region
        $region41: #{double_conv_with_bn.5} parent=39 // pred_check
          %p898 = pneg %p109
        $region42: #{double_conv_with_bn.5} parent=39 // pred_check_branch
          %900 = sbr.rel (%p898) target = $region44
        $region43: #{double_conv_with_bn.5} parent=39 // pred_region
          %s901 = sand.u32 %s94, 1
          %s902 = scalar_lea.sflag [#allocation3], %s901
          %s903 = sand.u32 %s94, 1
          %s904 = smul.addr %s903, 128
          %s905 = scalar_lea.vmem [#allocation2], %s904
          %907 = dma.done %s902, 2048
        $region44: #{double_conv_with_bn.5} parent=39 // pred_fallthru
          _
      $region40: #{double_conv_with_bn.5} parent=5 // pred_fallthru
        _
    $region6: #{double_conv_with_bn.5} parent=1 // loop_footer
      %s16 = sadd.s32 1, %s12
    $region7: #{double_conv_with_bn.5} parent=1 // loop_footer_branch
      %11 = sbr.rel target = $region3
    $region8: #{double_conv_with_bn.5} parent=1 // loop_exit
      _
    %908 = vsyncpa [#allocation3], 1
    %s909 = scalar_lea.sflag [#allocation3], 1
    %910 = vsyncpa %s909, 1

</llo_original>
